<compile_context>
chip_gen: v7x
topology: tpu7x:2x2x1
jax: 0.10.0
libtpu: 0.0.40
codegen_flags: <defaults>
</compile_context>

<pallas_src>
import functools

import jax
import jax.numpy as jnp
from jax.experimental import pallas as pl
from jax.experimental.pallas import tpu as pltpu

_NEG_SLOPE = 0.2
_K = 3
_DILATIONS = (1, 3, 5)
# Halo (columns per side) needed so three chained residual branches can be
# computed for one output tile: sum of (dilation + 1) = 2 + 4 + 6 = 12.
_HALO = sum(d + 1 for d in _DILATIONS)


def _leaky(x):
    return jnp.where(x >= 0, x, _NEG_SLOPE * x)


def _mask_valid(a, start, seq_len):
    """Zero columns whose absolute time position lies outside [0, seq_len).

    Applied to the bf16 conv operand, so the (C, W) select moves half the
    vregs of an f32 mask; the iota/compare are a single (1, W) sublane row
    broadcast over C inside the select.
    """
    w = a.shape[-1]
    col = jax.lax.broadcasted_iota(jnp.int32, (1, w), 1)
    ok = (col >= -start) & (col < seq_len - start)
    return jnp.where(ok, a, 0.0)


def _conv3(xb, w_folded, bias, dilation, fold):
    """Kernel-3 dilated conv on a bf16 window; output width = W - 2*dilation.

    xb: (C, W) bf16 (already leaky+masked); w_folded: (C, 3C) bf16 with tap-k
    block at columns [k*C, (k+1)*C); bias: (C, 1) f32.
    """
    C, W = xb.shape
    Wo = W - 2 * dilation
    if fold:
        # Build the shifted-tap slab directly in bf16 (halves XLU/store traffic
        # vs. slicing in f32 and casting afterwards), then one MXU matmul:
        # (C, 3C) x (3C, Wo) with f32 accumulation.
        s = jnp.concatenate(
            [xb[:, k * dilation: k * dilation + Wo] for k in range(_K)], axis=0)
        y = jnp.dot(w_folded, s, preferred_element_type=jnp.float32)
    else:
        # Fallback for C not sublane-aligned (tiny toy channel counts).
        y = jnp.zeros((C, Wo), jnp.float32)
        for k in range(_K):
            wk = w_folded[:, k * C:(k + 1) * C]
            y = y + jnp.dot(wk, xb[:, k * dilation: k * dilation + Wo],
                            preferred_element_type=jnp.float32)
    return y + bias


def _branch(x, start, dilation, w1, b1, w2, b2, seq_len, fold):
    """One residual branch on a window of absolute positions [start, start+W).

    Returns the branch output on [start + dilation + 1, start + W - dilation - 1).
    x stays f32 (residual math); conv operands are bf16 (bf16-early).
    """
    xt = _mask_valid(_leaky(x).astype(jnp.bfloat16), start, seq_len)
    y1 = _conv3(xt, w1, b1, dilation, fold)                  # covers [start+d, ...)
    z = _mask_valid(_leaky(y1).astype(jnp.bfloat16), start + dilation, seq_len)
    y2 = _conv3(z, w2, b2, 1, fold)                          # covers [start+d+1, ...)
    wo = y2.shape[-1]
    return y2 + x[:, dilation + 1: dilation + 1 + wo]        # residual in f32


def _resblock_kernel(center_ref, halo_ref,
                     w1a_ref, b1a_ref, w2a_ref, b2a_ref,
                     w1b_ref, b1b_ref, w2b_ref, b2b_ref,
                     w1c_ref, b1c_ref, w2c_ref, b2c_ref,
                     out_ref, *, seq_len, t_tile, fold):
    t = pl.program_id(1)
    start = t * t_tile - _HALO          # absolute position of window column 0

    halo = halo_ref[0, 0]               # (C, 2*_HALO)
    x = jnp.concatenate(
        [halo[:, :_HALO], center_ref[0], halo[:, _HALO:]], axis=-1
    ).astype(jnp.float32)               # (C, t_tile + 2*_HALO)

    params = ((w1a_ref, b1a_ref, w2a_ref, b2a_ref),
              (w1b_ref, b1b_ref, w2b_ref, b2b_ref),
              (w1c_ref, b1c_ref, w2c_ref, b2c_ref))
    for d, (w1, b1, w2, b2) in zip(_DILATIONS, params):
        # All branches mask their conv inputs: the ragged last time-block and
        # the halos may contain garbage / out-of-sequence columns (no host-side
        # zero padding of the activation anymore).
        x = _branch(x, start, d, w1[...], b1[...], w2[...], b2[...],
                    seq_len, fold)
        start = start + d + 1

    out_ref[0] = x.astype(out_ref.dtype)


# --------------------------- tiling / VMEM sizing ---------------------------

def _pick_vmem_limit_bytes():
    try:
        cap = pltpu.get_tpu_info().vmem_capacity_bytes
    except Exception:
        cap = 64 * 1024 * 1024          # conservative (v7x-sized) fallback
    # ~75% of physical VMEM: ~48 MiB on v7x (64 MiB), ~96 MiB on v5e/v6e (128 MiB).
    return int(min(100 * 1024 * 1024, max(32 * 1024 * 1024, (cap * 3) // 4)))


def _estimate_vmem_bytes(C, t_tile):
    w = t_tile + 2 * _HALO
    # Double-buffered center input + output + halos (f32).
    io = 2 * 2 * (C * t_tile * 4) + 2 * 2 * (C * 2 * _HALO * 4)
    # Weights/biases are resident in VMEM once (single-buffered, not per-step).
    weights = 6 * (C * 3 * C * 2) + 6 * (C * 4)
    # Live working set: f32 window / y1 / y2 / next-x + bf16 masked copies and
    # the (3C, Wo) bf16 tap slab (bf16-early shrinks this vs. the f32 version).
    live = 4 * (C * w * 4) + 2 * (C * w * 2) + (3 * C * w * 2) + (C * w * 4)
    return io + weights + live


def _choose_t_tile(N, C, T, vmem_limit_bytes):
    budget = int(0.6 * vmem_limit_bytes)     # headroom for compiler temporaries
    tile = 128
    for cand in (2048, 1024, 512, 256, 128):
        if _estimate_vmem_bytes(C, cand) <= budget:
            tile = cand
            break
    t_round = max(128, ((T + 127) // 128) * 128)
    tile = min(tile, t_round)
    # Keep >= 2 independent (n, t) grid steps when N == 1 so both v7x
    # TensorCores get work (cheap no-op on single-TC v5e/v6e).
    if N == 1 and T > 128:
        half = max(128, (((T + 1) // 2 + 127) // 128) * 128)
        tile = min(tile, half)
    return tile


# --------------------------------- wrapper ----------------------------------

def fold_conv_weight(w):
    """PyTorch (C_out, C_in, K) -> folded (C_out, K*C_in) bf16 (tap-major blocks)."""
    return jnp.concatenate([w[:, :, k] for k in range(w.shape[-1])],
                           axis=1).astype(jnp.bfloat16)


def resblock_forward(x, params, *, t_tile=None):
    """x: (N, C, T); params: list of 3 tuples (w1 (C,C,3), b1 (C,), w2 (C,C,3), b2 (C,))."""
    N, C, T = x.shape
    vmem_limit = _pick_vmem_limit_bytes()
    if t_tile is None:
        t_tile = _choose_t_tile(N, C, T, vmem_limit)
    assert t_tile % 128 == 0
    nt = int(pl.cdiv(T, t_tile))

    # Per-tile halo columns (12 per side), gathered once from x (no padded copy
    # of the activation); out-of-range columns -> 0.
    base = jnp.concatenate([jnp.arange(-_HALO, 0), jnp.arange(t_tile, t_tile + _HALO)])
    cols = (jnp.arange(nt)[:, None] * t_tile + base[None, :]).reshape(-1)
    valid = (cols >= 0) & (cols < T)
    halos = jnp.take(x, jnp.clip(cols, 0, T - 1), axis=2)
    halos = jnp.where(valid[None, None, :], halos, 0.0).astype(x.dtype)
    halos = halos.reshape(N, C, nt, 2 * _HALO).transpose(0, 2, 1, 3)   # (N, nt, C, 2H)

    flat_params = []
    for (w1, b1, w2, b2) in params:
        flat_params += [fold_conv_weight(w1), b1.reshape(C, 1).astype(jnp.float32),
                        fold_conv_weight(w2), b2.reshape(C, 1).astype(jnp.float32)]

    fold = (C % 8 == 0)   # folded (C,3C)x(3C,T) matmul needs sublane-aligned C
    kernel = functools.partial(_resblock_kernel, seq_len=T, t_tile=t_tile, fold=fold)

    flops = 2 * 2 * _K * len(_DILATIONS) * C * C * T * N
    bytes_accessed = int(x.size * x.dtype.itemsize
                         + halos.size * halos.dtype.itemsize
                         + sum(p.size * p.dtype.itemsize for p in flat_params)
                         + N * C * T * x.dtype.itemsize)

    center_spec = pl.BlockSpec((1, C, t_tile), lambda n, t: (n, 0, t))
    halo_spec = pl.BlockSpec((1, 1, C, 2 * _HALO), lambda n, t: (n, t, 0, 0))
    out_spec = pl.BlockSpec((1, C, t_tile), lambda n, t: (n, 0, t))

    def _call(weight_specs):
        return pl.pallas_call(
            kernel,
            out_shape=jax.ShapeDtypeStruct((N, C, T), x.dtype),
            grid=(N, nt),
            in_specs=[center_spec, halo_spec] + weight_specs,
            out_specs=out_spec,
            compiler_params=pltpu.CompilerParams(
                dimension_semantics=("parallel", "parallel"),
                vmem_limit_bytes=vmem_limit),
            cost_estimate=pl.CostEstimate(flops=int(flops), transcendentals=0,
                                          bytes_accessed=bytes_accessed),
        )(x, halos, *flat_params)

    # Weights/biases are small constants reused by every grid step: keep a
    # single whole-array copy resident in VMEM (no per-step DMA, no double
    # buffering).  Fall back to ordinary index-mapped specs if the untiled
    # VMEM placement is not supported by the installed jax version.
    try:
        resident = [pl.BlockSpec(memory_space=pltpu.MemorySpace.VMEM)
                    for _ in flat_params]
        return _call(resident)
    except Exception:
        tiled = [pl.BlockSpec(p.shape, lambda n, t: (0, 0)) for p in flat_params]
        return _call(tiled)


# ----------------------- parameter init (deterministic) ----------------------

def init_resblock_params(key, channels):
    params = []
    bound = 1.0 / float(channels * _K) ** 0.5
    for _ in _DILATIONS:
        key, k1, k2, k3, k4 = jax.random.split(key, 5)
        # PyTorch Conv1d weight layout (out, in, k); init_weights -> N(0, 0.01).
        w1 = 0.01 * jax.random.normal(k1, (channels, channels, _K), jnp.float32)
        w2 = 0.01 * jax.random.normal(k2, (channels, channels, _K), jnp.float32)
        b1 = jax.random.uniform(k3, (channels,), jnp.float32, -bound, bound)
        b2 = jax.random.uniform(k4, (channels,), jnp.float32, -bound, bound)
        params.append((w1, b1, w2, b2))
    return params


# ----------------------------- pure-JAX reference ----------------------------

def _conv1d_ref(x, w, b, dilation):
    pad = dilation  # get_padding(3, d) == d
    y = jax.lax.conv_general_dilated(
        x, w, window_strides=(1,), padding=[(pad, pad)],
        rhs_dilation=(dilation,), dimension_numbers=("NCH", "OIH", "NCH"))
    return y + b[None, :, None]


def resblock_ref(x, params):
    for (w1, b1, w2, b2), d in zip(params, _DILATIONS):
        xt = _leaky(x)
        xt = _conv1d_ref(xt, w1, b1, d)
        xt = _leaky(xt)
        xt = _conv1d_ref(xt, w2, b2, 1)
        x = xt + x
    return x


if __name__ == "__main__":
    key = jax.random.PRNGKey(0)
    kx, kp = jax.random.split(key)

    # Small shapes; T=200 with t_tile=128 exercises 2 time-tiles, halo exchange
    # between tiles, the ragged (masked) tail block and the clipped write-back.
    N, C, T = 2, 16, 200
    x = jax.random.normal(kx, (N, C, T), jnp.float32)
    params = init_resblock_params(kp, C)
    ref = resblock_ref(x, params)

    # Explicit small tile (multi-tile path).
    out = jax.block_until_ready(resblock_forward(x, params, t_tile=128))
    assert out.shape == (N, C, T)
    err = float(jnp.max(jnp.abs(out - ref)))
    # bf16 MXU operands with f32 accumulation -> tiny deviation vs f32 reference.
    assert err < 2e-3, f"mismatch vs reference (t_tile=128): max abs err = {err}"

    # Auto tile selection (single ragged tile covering the whole sequence).
    out2 = jax.block_until_ready(resblock_forward(x, params))
    err2 = float(jnp.max(jnp.abs(out2 - ref)))
    assert err2 < 2e-3, f"mismatch vs reference (auto tile): max abs err = {err2}"

    print("KERNEL_OK")
</pallas_src>

<mosaic_0001>
module attributes {stable_mosaic.version = 11 : i64} {
  func.func @_resblock_kernel(%arg0: i32, %arg1: i32, %arg2: memref<1x16x128xf32, #tpu.memory_space<vmem>>, %arg3: memref<1x1x16x24xf32, #tpu.memory_space<vmem>>, %arg4: memref<16x48xbf16, #tpu.memory_space<vmem>>, %arg5: memref<16x1xf32, #tpu.memory_space<vmem>>, %arg6: memref<16x48xbf16, #tpu.memory_space<vmem>>, %arg7: memref<16x1xf32, #tpu.memory_space<vmem>>, %arg8: memref<16x48xbf16, #tpu.memory_space<vmem>>, %arg9: memref<16x1xf32, #tpu.memory_space<vmem>>, %arg10: memref<16x48xbf16, #tpu.memory_space<vmem>>, %arg11: memref<16x1xf32, #tpu.memory_space<vmem>>, %arg12: memref<16x48xbf16, #tpu.memory_space<vmem>>, %arg13: memref<16x1xf32, #tpu.memory_space<vmem>>, %arg14: memref<16x48xbf16, #tpu.memory_space<vmem>>, %arg15: memref<16x1xf32, #tpu.memory_space<vmem>>, %arg16: memref<1x16x128xf32, #tpu.memory_space<vmem>>) attributes {dimension_semantics = [#tpu.dimension_semantics<parallel>, #tpu.dimension_semantics<parallel>], iteration_bounds = array<i64: 2, 2>, scalar_prefetch = 0 : i64, scratch_operands = 0 : i64, tpu.core_type = #tpu.core_type<tc>, window_params = [{transform_indices = @transform_0, window_bounds = array<i64: 1, 16, 128>}, {transform_indices = @transform_1, window_bounds = array<i64: 1, 1, 16, 24>}, {pipeline_mode = #tpu.pipeline_mode<synchronous>, transform_indices = @transform_2, window_bounds = array<i64: 16, 48>}, {pipeline_mode = #tpu.pipeline_mode<synchronous>, transform_indices = @transform_3, window_bounds = array<i64: 16, 1>}, {pipeline_mode = #tpu.pipeline_mode<synchronous>, transform_indices = @transform_4, window_bounds = array<i64: 16, 48>}, {pipeline_mode = #tpu.pipeline_mode<synchronous>, transform_indices = @transform_5, window_bounds = array<i64: 16, 1>}, {pipeline_mode = #tpu.pipeline_mode<synchronous>, transform_indices = @transform_6, window_bounds = array<i64: 16, 48>}, {pipeline_mode = #tpu.pipeline_mode<synchronous>, transform_indices = @transform_7, window_bounds = array<i64: 16, 1>}, {pipeline_mode = #tpu.pipeline_mode<synchronous>, transform_indices = @transform_8, window_bounds = array<i64: 16, 48>}, {pipeline_mode = #tpu.pipeline_mode<synchronous>, transform_indices = @transform_9, window_bounds = array<i64: 16, 1>}, {pipeline_mode = #tpu.pipeline_mode<synchronous>, transform_indices = @transform_10, window_bounds = array<i64: 16, 48>}, {pipeline_mode = #tpu.pipeline_mode<synchronous>, transform_indices = @transform_11, window_bounds = array<i64: 16, 1>}, {pipeline_mode = #tpu.pipeline_mode<synchronous>, transform_indices = @transform_12, window_bounds = array<i64: 16, 48>}, {pipeline_mode = #tpu.pipeline_mode<synchronous>, transform_indices = @transform_13, window_bounds = array<i64: 16, 1>}, {transform_indices = @transform_14, window_bounds = array<i64: 1, 16, 128>}]} {
    %c128_i32 = arith.constant 128 : i32
    %0 = arith.muli %arg1, %c128_i32 : i32
    %c12_i32 = arith.constant 12 : i32
    %1 = arith.subi %0, %c12_i32 : i32
    %c0 = arith.constant 0 : index
    %c0_0 = arith.constant 0 : index
    %c0_1 = arith.constant 0 : index
    %c0_2 = arith.constant 0 : index
    %2 = vector.load %arg3[%c0, %c0_0, %c0_1, %c0_2] : memref<1x1x16x24xf32, #tpu.memory_space<vmem>>, vector<1x1x16x24xf32>
    %3 = vector.shape_cast %2 : vector<1x1x16x24xf32> to vector<16x24xf32>
    %4 = vector.extract_strided_slice %3 {offsets = [0, 0], sizes = [16, 12], strides = [1, 1]} : vector<16x24xf32> to vector<16x12xf32>
    %c0_3 = arith.constant 0 : index
    %c0_4 = arith.constant 0 : index
    %c0_5 = arith.constant 0 : index
    %5 = vector.load %arg2[%c0_3, %c0_4, %c0_5] : memref<1x16x128xf32, #tpu.memory_space<vmem>>, vector<1x16x128xf32>
    %6 = vector.shape_cast %5 : vector<1x16x128xf32> to vector<16x128xf32>
    %7 = vector.extract_strided_slice %3 {offsets = [0, 12], sizes = [16, 12], strides = [1, 1]} : vector<16x24xf32> to vector<16x12xf32>
    %8 = tpu.concatenate %4, %6, %7 in 1 : vector<16x12xf32>, vector<16x128xf32>, vector<16x12xf32> -> vector<16x152xf32>
    %c0_6 = arith.constant 0 : index
    %c0_7 = arith.constant 0 : index
    %9 = vector.load %arg4[%c0_6, %c0_7] : memref<16x48xbf16, #tpu.memory_space<vmem>>, vector<16x48xbf16>
    %c0_8 = arith.constant 0 : index
    %c0_9 = arith.constant 0 : index
    %10 = vector.load %arg5[%c0_8, %c0_9] : memref<16x1xf32, #tpu.memory_space<vmem>>, vector<16x1xf32>
    %c0_10 = arith.constant 0 : index
    %c0_11 = arith.constant 0 : index
    %11 = vector.load %arg6[%c0_10, %c0_11] : memref<16x48xbf16, #tpu.memory_space<vmem>>, vector<16x48xbf16>
    %c0_12 = arith.constant 0 : index
    %c0_13 = arith.constant 0 : index
    %12 = vector.load %arg7[%c0_12, %c0_13] : memref<16x1xf32, #tpu.memory_space<vmem>>, vector<16x1xf32>
    %cst = arith.constant 0.000000e+00 : f32
    %13 = vector.broadcast %cst : f32 to vector<16x152xf32>
    %14 = arith.cmpf oge, %8, %13 : vector<16x152xf32>
    %cst_14 = arith.constant 2.000000e-01 : f32
    %15 = vector.broadcast %cst_14 : f32 to vector<16x152xf32>
    %16 = arith.mulf %15, %8 : vector<16x152xf32>
    %17 = arith.select %14, %8, %16 : vector<16x152xi1>, vector<16x152xf32>
    %18 = arith.truncf %17 : vector<16x152xf32> to vector<16x152xbf16>
    %19 = tpu.iota {dimensions = array<i32: 1>} : vector<1x152xi32>
    %c0_i32 = arith.constant 0 : i32
    %20 = arith.subi %c0_i32, %1 : i32
    %21 = vector.broadcast %20 : i32 to vector<1x152xi32>
    %22 = arith.cmpi sge, %19, %21 : vector<1x152xi32>
    %c200_i32 = arith.constant 200 : i32
    %23 = arith.subi %c200_i32, %1 : i32
    %24 = vector.broadcast %23 : i32 to vector<1x152xi32>
    %25 = arith.cmpi slt, %19, %24 : vector<1x152xi32>
    %26 = arith.andi %22, %25 : vector<1x152xi1>
    %cst_15 = arith.constant 0.000000e+00 : f32
    %27 = arith.truncf %cst_15 : f32 to bf16
    %28 = vector.shape_cast %26 : vector<1x152xi1> to vector<1x152xi1>
    %29 = vector.broadcast %28 : vector<1x152xi1> to vector<16x152xi1>
    %30 = vector.broadcast %27 : bf16 to vector<16x152xbf16>
    %31 = arith.select %29, %18, %30 : vector<16x152xi1>, vector<16x152xbf16>
    %32 = vector.extract_strided_slice %31 {offsets = [0, 0], sizes = [16, 150], strides = [1, 1]} : vector<16x152xbf16> to vector<16x150xbf16>
    %33 = vector.extract_strided_slice %31 {offsets = [0, 1], sizes = [16, 150], strides = [1, 1]} : vector<16x152xbf16> to vector<16x150xbf16>
    %34 = vector.extract_strided_slice %31 {offsets = [0, 2], sizes = [16, 150], strides = [1, 1]} : vector<16x152xbf16> to vector<16x150xbf16>
    %35 = tpu.concatenate %32, %33, %34 in 0 : vector<16x150xbf16>, vector<16x150xbf16>, vector<16x150xbf16> -> vector<48x150xbf16>
    %cst_16 = arith.constant dense<0.000000e+00> : vector<16x150xf32>
    %36 = tpu.matmul %9, %35, %cst_16 {dimension_numbers = #tpu.dot_dimension_numbers<[1], [0], [0], [1], [0, 0, 1, 1], [], []>} : vector<16x48xbf16>, vector<48x150xbf16>, vector<16x150xf32> -> vector<16x150xf32>
    %37 = vector.broadcast %10 : vector<16x1xf32> to vector<16x150xf32>
    %38 = arith.addf %36, %37 : vector<16x150xf32>
    %cst_17 = arith.constant 0.000000e+00 : f32
    %39 = vector.broadcast %cst_17 : f32 to vector<16x150xf32>
    %40 = arith.cmpf oge, %38, %39 : vector<16x150xf32>
    %cst_18 = arith.constant 2.000000e-01 : f32
    %41 = vector.broadcast %cst_18 : f32 to vector<16x150xf32>
    %42 = arith.mulf %41, %38 : vector<16x150xf32>
    %43 = arith.select %40, %38, %42 : vector<16x150xi1>, vector<16x150xf32>
    %44 = arith.truncf %43 : vector<16x150xf32> to vector<16x150xbf16>
    %c1_i32 = arith.constant 1 : i32
    %45 = arith.addi %1, %c1_i32 : i32
    %46 = tpu.iota {dimensions = array<i32: 1>} : vector<1x150xi32>
    %c0_i32_19 = arith.constant 0 : i32
    %47 = arith.subi %c0_i32_19, %45 : i32
    %48 = vector.broadcast %47 : i32 to vector<1x150xi32>
    %49 = arith.cmpi sge, %46, %48 : vector<1x150xi32>
    %c200_i32_20 = arith.constant 200 : i32
    %50 = arith.subi %c200_i32_20, %45 : i32
    %51 = vector.broadcast %50 : i32 to vector<1x150xi32>
    %52 = arith.cmpi slt, %46, %51 : vector<1x150xi32>
    %53 = arith.andi %49, %52 : vector<1x150xi1>
    %cst_21 = arith.constant 0.000000e+00 : f32
    %54 = arith.truncf %cst_21 : f32 to bf16
    %55 = vector.shape_cast %53 : vector<1x150xi1> to vector<1x150xi1>
    %56 = vector.broadcast %55 : vector<1x150xi1> to vector<16x150xi1>
    %57 = vector.broadcast %54 : bf16 to vector<16x150xbf16>
    %58 = arith.select %56, %44, %57 : vector<16x150xi1>, vector<16x150xbf16>
    %59 = vector.extract_strided_slice %58 {offsets = [0, 0], sizes = [16, 148], strides = [1, 1]} : vector<16x150xbf16> to vector<16x148xbf16>
    %60 = vector.extract_strided_slice %58 {offsets = [0, 1], sizes = [16, 148], strides = [1, 1]} : vector<16x150xbf16> to vector<16x148xbf16>
    %61 = vector.extract_strided_slice %58 {offsets = [0, 2], sizes = [16, 148], strides = [1, 1]} : vector<16x150xbf16> to vector<16x148xbf16>
    %62 = tpu.concatenate %59, %60, %61 in 0 : vector<16x148xbf16>, vector<16x148xbf16>, vector<16x148xbf16> -> vector<48x148xbf16>
    %cst_22 = arith.constant dense<0.000000e+00> : vector<16x148xf32>
    %63 = tpu.matmul %11, %62, %cst_22 {dimension_numbers = #tpu.dot_dimension_numbers<[1], [0], [0], [1], [0, 0, 1, 1], [], []>} : vector<16x48xbf16>, vector<48x148xbf16>, vector<16x148xf32> -> vector<16x148xf32>
    %64 = vector.broadcast %12 : vector<16x1xf32> to vector<16x148xf32>
    %65 = arith.addf %63, %64 : vector<16x148xf32>
    %66 = vector.extract_strided_slice %8 {offsets = [0, 2], sizes = [16, 148], strides = [1, 1]} : vector<16x152xf32> to vector<16x148xf32>
    %67 = arith.addf %65, %66 : vector<16x148xf32>
    %c1_i32_23 = arith.constant 1 : i32
    %68 = arith.addi %1, %c1_i32_23 : i32
    %c1_i32_24 = arith.constant 1 : i32
    %69 = arith.addi %68, %c1_i32_24 : i32
    %c0_25 = arith.constant 0 : index
    %c0_26 = arith.constant 0 : index
    %70 = vector.load %arg8[%c0_25, %c0_26] : memref<16x48xbf16, #tpu.memory_space<vmem>>, vector<16x48xbf16>
    %c0_27 = arith.constant 0 : index
    %c0_28 = arith.constant 0 : index
    %71 = vector.load %arg9[%c0_27, %c0_28] : memref<16x1xf32, #tpu.memory_space<vmem>>, vector<16x1xf32>
    %c0_29 = arith.constant 0 : index
    %c0_30 = arith.constant 0 : index
    %72 = vector.load %arg10[%c0_29, %c0_30] : memref<16x48xbf16, #tpu.memory_space<vmem>>, vector<16x48xbf16>
    %c0_31 = arith.constant 0 : index
    %c0_32 = arith.constant 0 : index
    %73 = vector.load %arg11[%c0_31, %c0_32] : memref<16x1xf32, #tpu.memory_space<vmem>>, vector<16x1xf32>
    %cst_33 = arith.constant 0.000000e+00 : f32
    %74 = vector.broadcast %cst_33 : f32 to vector<16x148xf32>
    %75 = arith.cmpf oge, %67, %74 : vector<16x148xf32>
    %cst_34 = arith.constant 2.000000e-01 : f32
    %76 = vector.broadcast %cst_34 : f32 to vector<16x148xf32>
    %77 = arith.mulf %76, %67 : vector<16x148xf32>
    %78 = arith.select %75, %67, %77 : vector<16x148xi1>, vector<16x148xf32>
    %79 = arith.truncf %78 : vector<16x148xf32> to vector<16x148xbf16>
    %80 = tpu.iota {dimensions = array<i32: 1>} : vector<1x148xi32>
    %c0_i32_35 = arith.constant 0 : i32
    %81 = arith.subi %c0_i32_35, %69 : i32
    %82 = vector.broadcast %81 : i32 to vector<1x148xi32>
    %83 = arith.cmpi sge, %80, %82 : vector<1x148xi32>
    %c200_i32_36 = arith.constant 200 : i32
    %84 = arith.subi %c200_i32_36, %69 : i32
    %85 = vector.broadcast %84 : i32 to vector<1x148xi32>
    %86 = arith.cmpi slt, %80, %85 : vector<1x148xi32>
    %87 = arith.andi %83, %86 : vector<1x148xi1>
    %cst_37 = arith.constant 0.000000e+00 : f32
    %88 = arith.truncf %cst_37 : f32 to bf16
    %89 = vector.shape_cast %87 : vector<1x148xi1> to vector<1x148xi1>
    %90 = vector.broadcast %89 : vector<1x148xi1> to vector<16x148xi1>
    %91 = vector.broadcast %88 : bf16 to vector<16x148xbf16>
    %92 = arith.select %90, %79, %91 : vector<16x148xi1>, vector<16x148xbf16>
    %93 = vector.extract_strided_slice %92 {offsets = [0, 0], sizes = [16, 142], strides = [1, 1]} : vector<16x148xbf16> to vector<16x142xbf16>
    %94 = vector.extract_strided_slice %92 {offsets = [0, 3], sizes = [16, 142], strides = [1, 1]} : vector<16x148xbf16> to vector<16x142xbf16>
    %95 = vector.extract_strided_slice %92 {offsets = [0, 6], sizes = [16, 142], strides = [1, 1]} : vector<16x148xbf16> to vector<16x142xbf16>
    %96 = tpu.concatenate %93, %94, %95 in 0 : vector<16x142xbf16>, vector<16x142xbf16>, vector<16x142xbf16> -> vector<48x142xbf16>
    %cst_38 = arith.constant dense<0.000000e+00> : vector<16x142xf32>
    %97 = tpu.matmul %70, %96, %cst_38 {dimension_numbers = #tpu.dot_dimension_numbers<[1], [0], [0], [1], [0, 0, 1, 1], [], []>} : vector<16x48xbf16>, vector<48x142xbf16>, vector<16x142xf32> -> vector<16x142xf32>
    %98 = vector.broadcast %71 : vector<16x1xf32> to vector<16x142xf32>
    %99 = arith.addf %97, %98 : vector<16x142xf32>
    %cst_39 = arith.constant 0.000000e+00 : f32
    %100 = vector.broadcast %cst_39 : f32 to vector<16x142xf32>
    %101 = arith.cmpf oge, %99, %100 : vector<16x142xf32>
    %cst_40 = arith.constant 2.000000e-01 : f32
    %102 = vector.broadcast %cst_40 : f32 to vector<16x142xf32>
    %103 = arith.mulf %102, %99 : vector<16x142xf32>
    %104 = arith.select %101, %99, %103 : vector<16x142xi1>, vector<16x142xf32>
    %105 = arith.truncf %104 : vector<16x142xf32> to vector<16x142xbf16>
    %c3_i32 = arith.constant 3 : i32
    %106 = arith.addi %69, %c3_i32 : i32
    %107 = tpu.iota {dimensions = array<i32: 1>} : vector<1x142xi32>
    %c0_i32_41 = arith.constant 0 : i32
    %108 = arith.subi %c0_i32_41, %106 : i32
    %109 = vector.broadcast %108 : i32 to vector<1x142xi32>
    %110 = arith.cmpi sge, %107, %109 : vector<1x142xi32>
    %c200_i32_42 = arith.constant 200 : i32
    %111 = arith.subi %c200_i32_42, %106 : i32
    %112 = vector.broadcast %111 : i32 to vector<1x142xi32>
    %113 = arith.cmpi slt, %107, %112 : vector<1x142xi32>
    %114 = arith.andi %110, %113 : vector<1x142xi1>
    %cst_43 = arith.constant 0.000000e+00 : f32
    %115 = arith.truncf %cst_43 : f32 to bf16
    %116 = vector.shape_cast %114 : vector<1x142xi1> to vector<1x142xi1>
    %117 = vector.broadcast %116 : vector<1x142xi1> to vector<16x142xi1>
    %118 = vector.broadcast %115 : bf16 to vector<16x142xbf16>
    %119 = arith.select %117, %105, %118 : vector<16x142xi1>, vector<16x142xbf16>
    %120 = vector.extract_strided_slice %119 {offsets = [0, 0], sizes = [16, 140], strides = [1, 1]} : vector<16x142xbf16> to vector<16x140xbf16>
    %121 = vector.extract_strided_slice %119 {offsets = [0, 1], sizes = [16, 140], strides = [1, 1]} : vector<16x142xbf16> to vector<16x140xbf16>
    %122 = vector.extract_strided_slice %119 {offsets = [0, 2], sizes = [16, 140], strides = [1, 1]} : vector<16x142xbf16> to vector<16x140xbf16>
    %123 = tpu.concatenate %120, %121, %122 in 0 : vector<16x140xbf16>, vector<16x140xbf16>, vector<16x140xbf16> -> vector<48x140xbf16>
    %cst_44 = arith.constant dense<0.000000e+00> : vector<16x140xf32>
    %124 = tpu.matmul %72, %123, %cst_44 {dimension_numbers = #tpu.dot_dimension_numbers<[1], [0], [0], [1], [0, 0, 1, 1], [], []>} : vector<16x48xbf16>, vector<48x140xbf16>, vector<16x140xf32> -> vector<16x140xf32>
    %125 = vector.broadcast %73 : vector<16x1xf32> to vector<16x140xf32>
    %126 = arith.addf %124, %125 : vector<16x140xf32>
    %127 = vector.extract_strided_slice %67 {offsets = [0, 4], sizes = [16, 140], strides = [1, 1]} : vector<16x148xf32> to vector<16x140xf32>
    %128 = arith.addf %126, %127 : vector<16x140xf32>
    %c3_i32_45 = arith.constant 3 : i32
    %129 = arith.addi %69, %c3_i32_45 : i32
    %c1_i32_46 = arith.constant 1 : i32
    %130 = arith.addi %129, %c1_i32_46 : i32
    %c0_47 = arith.constant 0 : index
    %c0_48 = arith.constant 0 : index
    %131 = vector.load %arg12[%c0_47, %c0_48] : memref<16x48xbf16, #tpu.memory_space<vmem>>, vector<16x48xbf16>
    %c0_49 = arith.constant 0 : index
    %c0_50 = arith.constant 0 : index
    %132 = vector.load %arg13[%c0_49, %c0_50] : memref<16x1xf32, #tpu.memory_space<vmem>>, vector<16x1xf32>
    %c0_51 = arith.constant 0 : index
    %c0_52 = arith.constant 0 : index
    %133 = vector.load %arg14[%c0_51, %c0_52] : memref<16x48xbf16, #tpu.memory_space<vmem>>, vector<16x48xbf16>
    %c0_53 = arith.constant 0 : index
    %c0_54 = arith.constant 0 : index
    %134 = vector.load %arg15[%c0_53, %c0_54] : memref<16x1xf32, #tpu.memory_space<vmem>>, vector<16x1xf32>
    %cst_55 = arith.constant 0.000000e+00 : f32
    %135 = vector.broadcast %cst_55 : f32 to vector<16x140xf32>
    %136 = arith.cmpf oge, %128, %135 : vector<16x140xf32>
    %cst_56 = arith.constant 2.000000e-01 : f32
    %137 = vector.broadcast %cst_56 : f32 to vector<16x140xf32>
    %138 = arith.mulf %137, %128 : vector<16x140xf32>
    %139 = arith.select %136, %128, %138 : vector<16x140xi1>, vector<16x140xf32>
    %140 = arith.truncf %139 : vector<16x140xf32> to vector<16x140xbf16>
    %141 = tpu.iota {dimensions = array<i32: 1>} : vector<1x140xi32>
    %c0_i32_57 = arith.constant 0 : i32
    %142 = arith.subi %c0_i32_57, %130 : i32
    %143 = vector.broadcast %142 : i32 to vector<1x140xi32>
    %144 = arith.cmpi sge, %141, %143 : vector<1x140xi32>
    %c200_i32_58 = arith.constant 200 : i32
    %145 = arith.subi %c200_i32_58, %130 : i32
    %146 = vector.broadcast %145 : i32 to vector<1x140xi32>
    %147 = arith.cmpi slt, %141, %146 : vector<1x140xi32>
    %148 = arith.andi %144, %147 : vector<1x140xi1>
    %cst_59 = arith.constant 0.000000e+00 : f32
    %149 = arith.truncf %cst_59 : f32 to bf16
    %150 = vector.shape_cast %148 : vector<1x140xi1> to vector<1x140xi1>
    %151 = vector.broadcast %150 : vector<1x140xi1> to vector<16x140xi1>
    %152 = vector.broadcast %149 : bf16 to vector<16x140xbf16>
    %153 = arith.select %151, %140, %152 : vector<16x140xi1>, vector<16x140xbf16>
    %154 = vector.extract_strided_slice %153 {offsets = [0, 0], sizes = [16, 130], strides = [1, 1]} : vector<16x140xbf16> to vector<16x130xbf16>
    %155 = vector.extract_strided_slice %153 {offsets = [0, 5], sizes = [16, 130], strides = [1, 1]} : vector<16x140xbf16> to vector<16x130xbf16>
    %156 = vector.extract_strided_slice %153 {offsets = [0, 10], sizes = [16, 130], strides = [1, 1]} : vector<16x140xbf16> to vector<16x130xbf16>
    %157 = tpu.concatenate %154, %155, %156 in 0 : vector<16x130xbf16>, vector<16x130xbf16>, vector<16x130xbf16> -> vector<48x130xbf16>
    %cst_60 = arith.constant dense<0.000000e+00> : vector<16x130xf32>
    %158 = tpu.matmul %131, %157, %cst_60 {dimension_numbers = #tpu.dot_dimension_numbers<[1], [0], [0], [1], [0, 0, 1, 1], [], []>} : vector<16x48xbf16>, vector<48x130xbf16>, vector<16x130xf32> -> vector<16x130xf32>
    %159 = vector.broadcast %132 : vector<16x1xf32> to vector<16x130xf32>
    %160 = arith.addf %158, %159 : vector<16x130xf32>
    %cst_61 = arith.constant 0.000000e+00 : f32
    %161 = vector.broadcast %cst_61 : f32 to vector<16x130xf32>
    %162 = arith.cmpf oge, %160, %161 : vector<16x130xf32>
    %cst_62 = arith.constant 2.000000e-01 : f32
    %163 = vector.broadcast %cst_62 : f32 to vector<16x130xf32>
    %164 = arith.mulf %163, %160 : vector<16x130xf32>
    %165 = arith.select %162, %160, %164 : vector<16x130xi1>, vector<16x130xf32>
    %166 = arith.truncf %165 : vector<16x130xf32> to vector<16x130xbf16>
    %c5_i32 = arith.constant 5 : i32
    %167 = arith.addi %130, %c5_i32 : i32
    %168 = tpu.iota {dimensions = array<i32: 1>} : vector<1x130xi32>
    %c0_i32_63 = arith.constant 0 : i32
    %169 = arith.subi %c0_i32_63, %167 : i32
    %170 = vector.broadcast %169 : i32 to vector<1x130xi32>
    %171 = arith.cmpi sge, %168, %170 : vector<1x130xi32>
    %c200_i32_64 = arith.constant 200 : i32
    %172 = arith.subi %c200_i32_64, %167 : i32
    %173 = vector.broadcast %172 : i32 to vector<1x130xi32>
    %174 = arith.cmpi slt, %168, %173 : vector<1x130xi32>
    %175 = arith.andi %171, %174 : vector<1x130xi1>
    %cst_65 = arith.constant 0.000000e+00 : f32
    %176 = arith.truncf %cst_65 : f32 to bf16
    %177 = vector.shape_cast %175 : vector<1x130xi1> to vector<1x130xi1>
    %178 = vector.broadcast %177 : vector<1x130xi1> to vector<16x130xi1>
    %179 = vector.broadcast %176 : bf16 to vector<16x130xbf16>
    %180 = arith.select %178, %166, %179 : vector<16x130xi1>, vector<16x130xbf16>
    %181 = vector.extract_strided_slice %180 {offsets = [0, 0], sizes = [16, 128], strides = [1, 1]} : vector<16x130xbf16> to vector<16x128xbf16>
    %182 = vector.extract_strided_slice %180 {offsets = [0, 1], sizes = [16, 128], strides = [1, 1]} : vector<16x130xbf16> to vector<16x128xbf16>
    %183 = vector.extract_strided_slice %180 {offsets = [0, 2], sizes = [16, 128], strides = [1, 1]} : vector<16x130xbf16> to vector<16x128xbf16>
    %184 = tpu.concatenate %181, %182, %183 in 0 : vector<16x128xbf16>, vector<16x128xbf16>, vector<16x128xbf16> -> vector<48x128xbf16>
    %cst_66 = arith.constant dense<0.000000e+00> : vector<16x128xf32>
    %185 = tpu.matmul %133, %184, %cst_66 {dimension_numbers = #tpu.dot_dimension_numbers<[1], [0], [0], [1], [0, 0, 1, 1], [], []>} : vector<16x48xbf16>, vector<48x128xbf16>, vector<16x128xf32> -> vector<16x128xf32>
    %186 = vector.broadcast %134 : vector<16x1xf32> to vector<16x128xf32>
    %187 = arith.addf %185, %186 : vector<16x128xf32>
    %188 = vector.extract_strided_slice %128 {offsets = [0, 6], sizes = [16, 128], strides = [1, 1]} : vector<16x140xf32> to vector<16x128xf32>
    %189 = arith.addf %187, %188 : vector<16x128xf32>
    %c0_67 = arith.constant 0 : index
    %c0_68 = arith.constant 0 : index
    %c0_69 = arith.constant 0 : index
    %190 = vector.load %arg16[%c0_67, %c0_68, %c0_69] : memref<1x16x128xf32, #tpu.memory_space<vmem>>, vector<1x16x128xf32>
    %191 = vector.shape_cast %190 : vector<1x16x128xf32> to vector<16x128xf32>
    %192 = vector.shape_cast %189 : vector<16x128xf32> to vector<1x16x128xf32>
    tpu.vector_store %arg16[%c0_67, %c0_68, %c0_69], %192 {strides = array<i32>} : memref<1x16x128xf32, #tpu.memory_space<vmem>>, vector<1x16x128xf32>,
    return
  }
  func.func @transform_0(%arg0: i32, %arg1: i32) -> (i32, i32, i32) {
    %c0_i32 = arith.constant 0 : i32
    %c0_i32_0 = arith.constant 0 : i32
    return %arg0, %c0_i32, %arg1 : i32, i32, i32
  }
  func.func @transform_1(%arg0: i32, %arg1: i32) -> (i32, i32, i32, i32) {
    %c0_i32 = arith.constant 0 : i32
    %c0_i32_0 = arith.constant 0 : i32
    %c0_i32_1 = arith.constant 0 : i32
    return %arg0, %arg1, %c0_i32, %c0_i32_0 : i32, i32, i32, i32
  }
  func.func @transform_2(%arg0: i32, %arg1: i32) -> (i32, i32) {
    %c0_i32 = arith.constant 0 : i32
    %c0_i32_0 = arith.constant 0 : i32
    %c0_i32_1 = arith.constant 0 : i32
    return %c0_i32, %c0_i32_0 : i32, i32
  }
  func.func @transform_3(%arg0: i32, %arg1: i32) -> (i32, i32) {
    %c0_i32 = arith.constant 0 : i32
    %c0_i32_0 = arith.constant 0 : i32
    %c0_i32_1 = arith.constant 0 : i32
    return %c0_i32, %c0_i32_0 : i32, i32
  }
  func.func @transform_4(%arg0: i32, %arg1: i32) -> (i32, i32) {
    %c0_i32 = arith.constant 0 : i32
    %c0_i32_0 = arith.constant 0 : i32
    %c0_i32_1 = arith.constant 0 : i32
    return %c0_i32, %c0_i32_0 : i32, i32
  }
  func.func @transform_5(%arg0: i32, %arg1: i32) -> (i32, i32) {
    %c0_i32 = arith.constant 0 : i32
    %c0_i32_0 = arith.constant 0 : i32
    %c0_i32_1 = arith.constant 0 : i32
    return %c0_i32, %c0_i32_0 : i32, i32
  }
  func.func @transform_6(%arg0: i32, %arg1: i32) -> (i32, i32) {
    %c0_i32 = arith.constant 0 : i32
    %c0_i32_0 = arith.constant 0 : i32
    %c0_i32_1 = arith.constant 0 : i32
    return %c0_i32, %c0_i32_0 : i32, i32
  }
  func.func @transform_7(%arg0: i32, %arg1: i32) -> (i32, i32) {
    %c0_i32 = arith.constant 0 : i32
    %c0_i32_0 = arith.constant 0 : i32
    %c0_i32_1 = arith.constant 0 : i32
    return %c0_i32, %c0_i32_0 : i32, i32
  }
  func.func @transform_8(%arg0: i32, %arg1: i32) -> (i32, i32) {
    %c0_i32 = arith.constant 0 : i32
    %c0_i32_0 = arith.constant 0 : i32
    %c0_i32_1 = arith.constant 0 : i32
    return %c0_i32, %c0_i32_0 : i32, i32
  }
  func.func @transform_9(%arg0: i32, %arg1: i32) -> (i32, i32) {
    %c0_i32 = arith.constant 0 : i32
    %c0_i32_0 = arith.constant 0 : i32
    %c0_i32_1 = arith.constant 0 : i32
    return %c0_i32, %c0_i32_0 : i32, i32
  }
  func.func @transform_10(%arg0: i32, %arg1: i32) -> (i32, i32) {
    %c0_i32 = arith.constant 0 : i32
    %c0_i32_0 = arith.constant 0 : i32
    %c0_i32_1 = arith.constant 0 : i32
    return %c0_i32, %c0_i32_0 : i32, i32
  }
  func.func @transform_11(%arg0: i32, %arg1: i32) -> (i32, i32) {
    %c0_i32 = arith.constant 0 : i32
    %c0_i32_0 = arith.constant 0 : i32
    %c0_i32_1 = arith.constant 0 : i32
    return %c0_i32, %c0_i32_0 : i32, i32
  }
  func.func @transform_12(%arg0: i32, %arg1: i32) -> (i32, i32) {
    %c0_i32 = arith.constant 0 : i32
    %c0_i32_0 = arith.constant 0 : i32
    %c0_i32_1 = arith.constant 0 : i32
    return %c0_i32, %c0_i32_0 : i32, i32
  }
  func.func @transform_13(%arg0: i32, %arg1: i32) -> (i32, i32) {
    %c0_i32 = arith.constant 0 : i32
    %c0_i32_0 = arith.constant 0 : i32
    %c0_i32_1 = arith.constant 0 : i32
    return %c0_i32, %c0_i32_0 : i32, i32
  }
  func.func @transform_14(%arg0: i32, %arg1: i32) -> (i32, i32, i32) {
    %c0_i32 = arith.constant 0 : i32
    %c0_i32_0 = arith.constant 0 : i32
    return %arg0, %c0_i32, %arg1 : i32, i32, i32
  }
}

module attributes {stable_mosaic.version = 11 : i64} {
  func.func @_resblock_kernel(%arg0: i32, %arg1: i32, %arg2: memref<1x16x128xf32, #tpu.memory_space<vmem>>, %arg3: memref<1x1x16x24xf32, #tpu.memory_space<vmem>>, %arg4: memref<16x48xbf16, #tpu.memory_space<vmem>>, %arg5: memref<16x1xf32, #tpu.memory_space<vmem>>, %arg6: memref<16x48xbf16, #tpu.memory_space<vmem>>, %arg7: memref<16x1xf32, #tpu.memory_space<vmem>>, %arg8: memref<16x48xbf16, #tpu.memory_space<vmem>>, %arg9: memref<16x1xf32, #tpu.memory_space<vmem>>, %arg10: memref<16x48xbf16, #tpu.memory_space<vmem>>, %arg11: memref<16x1xf32, #tpu.memory_space<vmem>>, %arg12: memref<16x48xbf16, #tpu.memory_space<vmem>>, %arg13: memref<16x1xf32, #tpu.memory_space<vmem>>, %arg14: memref<16x48xbf16, #tpu.memory_space<vmem>>, %arg15: memref<16x1xf32, #tpu.memory_space<vmem>>, %arg16: memref<1x16x128xf32, #tpu.memory_space<vmem>>) attributes {dimension_semantics = [#tpu.dimension_semantics<parallel>, #tpu.dimension_semantics<parallel>], iteration_bounds = array<i64: 2, 2>, scalar_prefetch = 0 : i64, scratch_operands = 0 : i64, tpu.core_type = #tpu.core_type<tc>, window_params = [{transform_indices = @transform_0, window_bounds = array<i64: 1, 16, 128>}, {transform_indices = @transform_1, window_bounds = array<i64: 1, 1, 16, 24>}, {pipeline_mode = #tpu.pipeline_mode<synchronous>, transform_indices = @transform_2, window_bounds = array<i64: 16, 48>}, {pipeline_mode = #tpu.pipeline_mode<synchronous>, transform_indices = @transform_3, window_bounds = array<i64: 16, 1>}, {pipeline_mode = #tpu.pipeline_mode<synchronous>, transform_indices = @transform_4, window_bounds = array<i64: 16, 48>}, {pipeline_mode = #tpu.pipeline_mode<synchronous>, transform_indices = @transform_5, window_bounds = array<i64: 16, 1>}, {pipeline_mode = #tpu.pipeline_mode<synchronous>, transform_indices = @transform_6, window_bounds = array<i64: 16, 48>}, {pipeline_mode = #tpu.pipeline_mode<synchronous>, transform_indices = @transform_7, window_bounds = array<i64: 16, 1>}, {pipeline_mode = #tpu.pipeline_mode<synchronous>, transform_indices = @transform_8, window_bounds = array<i64: 16, 48>}, {pipeline_mode = #tpu.pipeline_mode<synchronous>, transform_indices = @transform_9, window_bounds = array<i64: 16, 1>}, {pipeline_mode = #tpu.pipeline_mode<synchronous>, transform_indices = @transform_10, window_bounds = array<i64: 16, 48>}, {pipeline_mode = #tpu.pipeline_mode<synchronous>, transform_indices = @transform_11, window_bounds = array<i64: 16, 1>}, {pipeline_mode = #tpu.pipeline_mode<synchronous>, transform_indices = @transform_12, window_bounds = array<i64: 16, 48>}, {pipeline_mode = #tpu.pipeline_mode<synchronous>, transform_indices = @transform_13, window_bounds = array<i64: 16, 1>}, {transform_indices = @transform_14, window_bounds = array<i64: 1, 16, 128>}]} {
    %c128_i32 = arith.constant 128 : i32
    %0 = arith.muli %arg1, %c128_i32 : i32
    %c12_i32 = arith.constant 12 : i32
    %1 = arith.subi %0, %c12_i32 : i32
    %c0 = arith.constant 0 : index
    %c0_0 = arith.constant 0 : index
    %c0_1 = arith.constant 0 : index
    %c0_2 = arith.constant 0 : index
    %2 = vector.load %arg3[%c0, %c0_0, %c0_1, %c0_2] : memref<1x1x16x24xf32, #tpu.memory_space<vmem>>, vector<1x1x16x24xf32>
    %3 = vector.shape_cast %2 : vector<1x1x16x24xf32> to vector<16x24xf32>
    %4 = vector.extract_strided_slice %3 {offsets = [0, 0], sizes = [16, 12], strides = [1, 1]} : vector<16x24xf32> to vector<16x12xf32>
    %c0_3 = arith.constant 0 : index
    %c0_4 = arith.constant 0 : index
    %c0_5 = arith.constant 0 : index
    %5 = vector.load %arg2[%c0_3, %c0_4, %c0_5] : memref<1x16x128xf32, #tpu.memory_space<vmem>>, vector<1x16x128xf32>
    %6 = vector.shape_cast %5 : vector<1x16x128xf32> to vector<16x128xf32>
    %7 = vector.extract_strided_slice %3 {offsets = [0, 12], sizes = [16, 12], strides = [1, 1]} : vector<16x24xf32> to vector<16x12xf32>
    %8 = tpu.concatenate %4, %6, %7 in 1 : vector<16x12xf32>, vector<16x128xf32>, vector<16x12xf32> -> vector<16x152xf32>
    %c0_6 = arith.constant 0 : index
    %c0_7 = arith.constant 0 : index
    %9 = vector.load %arg4[%c0_6, %c0_7] : memref<16x48xbf16, #tpu.memory_space<vmem>>, vector<16x48xbf16>
    %c0_8 = arith.constant 0 : index
    %c0_9 = arith.constant 0 : index
    %10 = vector.load %arg5[%c0_8, %c0_9] : memref<16x1xf32, #tpu.memory_space<vmem>>, vector<16x1xf32>
    %c0_10 = arith.constant 0 : index
    %c0_11 = arith.constant 0 : index
    %11 = vector.load %arg6[%c0_10, %c0_11] : memref<16x48xbf16, #tpu.memory_space<vmem>>, vector<16x48xbf16>
    %c0_12 = arith.constant 0 : index
    %c0_13 = arith.constant 0 : index
    %12 = vector.load %arg7[%c0_12, %c0_13] : memref<16x1xf32, #tpu.memory_space<vmem>>, vector<16x1xf32>
    %cst = arith.constant 0.000000e+00 : f32
    %13 = vector.broadcast %cst : f32 to vector<16x152xf32>
    %14 = arith.cmpf oge, %8, %13 : vector<16x152xf32>
    %cst_14 = arith.constant 2.000000e-01 : f32
    %15 = vector.broadcast %cst_14 : f32 to vector<16x152xf32>
    %16 = arith.mulf %15, %8 : vector<16x152xf32>
    %17 = arith.select %14, %8, %16 : vector<16x152xi1>, vector<16x152xf32>
    %18 = arith.truncf %17 : vector<16x152xf32> to vector<16x152xbf16>
    %19 = tpu.iota {dimensions = array<i32: 1>} : vector<1x152xi32>
    %c0_i32 = arith.constant 0 : i32
    %20 = arith.subi %c0_i32, %1 : i32
    %21 = vector.broadcast %20 : i32 to vector<1x152xi32>
    %22 = arith.cmpi sge, %19, %21 : vector<1x152xi32>
    %c200_i32 = arith.constant 200 : i32
    %23 = arith.subi %c200_i32, %1 : i32
    %24 = vector.broadcast %23 : i32 to vector<1x152xi32>
    %25 = arith.cmpi slt, %19, %24 : vector<1x152xi32>
    %26 = arith.andi %22, %25 : vector<1x152xi1>
    %cst_15 = arith.constant 0.000000e+00 : f32
    %27 = arith.truncf %cst_15 : f32 to bf16
    %28 = vector.shape_cast %26 : vector<1x152xi1> to vector<1x152xi1>
    %29 = vector.broadcast %28 : vector<1x152xi1> to vector<16x152xi1>
    %30 = vector.broadcast %27 : bf16 to vector<16x152xbf16>
    %31 = arith.select %29, %18, %30 : vector<16x152xi1>, vector<16x152xbf16>
    %32 = vector.extract_strided_slice %31 {offsets = [0, 0], sizes = [16, 150], strides = [1, 1]} : vector<16x152xbf16> to vector<16x150xbf16>
    %33 = vector.extract_strided_slice %31 {offsets = [0, 1], sizes = [16, 150], strides = [1, 1]} : vector<16x152xbf16> to vector<16x150xbf16>
    %34 = vector.extract_strided_slice %31 {offsets = [0, 2], sizes = [16, 150], strides = [1, 1]} : vector<16x152xbf16> to vector<16x150xbf16>
    %35 = tpu.concatenate %32, %33, %34 in 0 : vector<16x150xbf16>, vector<16x150xbf16>, vector<16x150xbf16> -> vector<48x150xbf16>
    %cst_16 = arith.constant dense<0.000000e+00> : vector<16x150xf32>
    %36 = tpu.matmul %9, %35, %cst_16 {dimension_numbers = #tpu.dot_dimension_numbers<[1], [0], [0], [1], [0, 0, 1, 1], [], []>} : vector<16x48xbf16>, vector<48x150xbf16>, vector<16x150xf32> -> vector<16x150xf32>
    %37 = vector.broadcast %10 : vector<16x1xf32> to vector<16x150xf32>
    %38 = arith.addf %36, %37 : vector<16x150xf32>
    %cst_17 = arith.constant 0.000000e+00 : f32
    %39 = vector.broadcast %cst_17 : f32 to vector<16x150xf32>
    %40 = arith.cmpf oge, %38, %39 : vector<16x150xf32>
    %cst_18 = arith.constant 2.000000e-01 : f32
    %41 = vector.broadcast %cst_18 : f32 to vector<16x150xf32>
    %42 = arith.mulf %41, %38 : vector<16x150xf32>
    %43 = arith.select %40, %38, %42 : vector<16x150xi1>, vector<16x150xf32>
    %44 = arith.truncf %43 : vector<16x150xf32> to vector<16x150xbf16>
    %c1_i32 = arith.constant 1 : i32
    %45 = arith.addi %1, %c1_i32 : i32
    %46 = tpu.iota {dimensions = array<i32: 1>} : vector<1x150xi32>
    %c0_i32_19 = arith.constant 0 : i32
    %47 = arith.subi %c0_i32_19, %45 : i32
    %48 = vector.broadcast %47 : i32 to vector<1x150xi32>
    %49 = arith.cmpi sge, %46, %48 : vector<1x150xi32>
    %c200_i32_20 = arith.constant 200 : i32
    %50 = arith.subi %c200_i32_20, %45 : i32
    %51 = vector.broadcast %50 : i32 to vector<1x150xi32>
    %52 = arith.cmpi slt, %46, %51 : vector<1x150xi32>
    %53 = arith.andi %49, %52 : vector<1x150xi1>
    %cst_21 = arith.constant 0.000000e+00 : f32
    %54 = arith.truncf %cst_21 : f32 to bf16
    %55 = vector.shape_cast %53 : vector<1x150xi1> to vector<1x150xi1>
    %56 = vector.broadcast %55 : vector<1x150xi1> to vector<16x150xi1>
    %57 = vector.broadcast %54 : bf16 to vector<16x150xbf16>
    %58 = arith.select %56, %44, %57 : vector<16x150xi1>, vector<16x150xbf16>
    %59 = vector.extract_strided_slice %58 {offsets = [0, 0], sizes = [16, 148], strides = [1, 1]} : vector<16x150xbf16> to vector<16x148xbf16>
    %60 = vector.extract_strided_slice %58 {offsets = [0, 1], sizes = [16, 148], strides = [1, 1]} : vector<16x150xbf16> to vector<16x148xbf16>
    %61 = vector.extract_strided_slice %58 {offsets = [0, 2], sizes = [16, 148], strides = [1, 1]} : vector<16x150xbf16> to vector<16x148xbf16>
    %62 = tpu.concatenate %59, %60, %61 in 0 : vector<16x148xbf16>, vector<16x148xbf16>, vector<16x148xbf16> -> vector<48x148xbf16>
    %cst_22 = arith.constant dense<0.000000e+00> : vector<16x148xf32>
    %63 = tpu.matmul %11, %62, %cst_22 {dimension_numbers = #tpu.dot_dimension_numbers<[1], [0], [0], [1], [0, 0, 1, 1], [], []>} : vector<16x48xbf16>, vector<48x148xbf16>, vector<16x148xf32> -> vector<16x148xf32>
    %64 = vector.broadcast %12 : vector<16x1xf32> to vector<16x148xf32>
    %65 = arith.addf %63, %64 : vector<16x148xf32>
    %66 = vector.extract_strided_slice %8 {offsets = [0, 2], sizes = [16, 148], strides = [1, 1]} : vector<16x152xf32> to vector<16x148xf32>
    %67 = arith.addf %65, %66 : vector<16x148xf32>
    %c1_i32_23 = arith.constant 1 : i32
    %68 = arith.addi %1, %c1_i32_23 : i32
    %c1_i32_24 = arith.constant 1 : i32
    %69 = arith.addi %68, %c1_i32_24 : i32
    %c0_25 = arith.constant 0 : index
    %c0_26 = arith.constant 0 : index
    %70 = vector.load %arg8[%c0_25, %c0_26] : memref<16x48xbf16, #tpu.memory_space<vmem>>, vector<16x48xbf16>
    %c0_27 = arith.constant 0 : index
    %c0_28 = arith.constant 0 : index
    %71 = vector.load %arg9[%c0_27, %c0_28] : memref<16x1xf32, #tpu.memory_space<vmem>>, vector<16x1xf32>
    %c0_29 = arith.constant 0 : index
    %c0_30 = arith.constant 0 : index
    %72 = vector.load %arg10[%c0_29, %c0_30] : memref<16x48xbf16, #tpu.memory_space<vmem>>, vector<16x48xbf16>
    %c0_31 = arith.constant 0 : index
    %c0_32 = arith.constant 0 : index
    %73 = vector.load %arg11[%c0_31, %c0_32] : memref<16x1xf32, #tpu.memory_space<vmem>>, vector<16x1xf32>
    %cst_33 = arith.constant 0.000000e+00 : f32
    %74 = vector.broadcast %cst_33 : f32 to vector<16x148xf32>
    %75 = arith.cmpf oge, %67, %74 : vector<16x148xf32>
    %cst_34 = arith.constant 2.000000e-01 : f32
    %76 = vector.broadcast %cst_34 : f32 to vector<16x148xf32>
    %77 = arith.mulf %76, %67 : vector<16x148xf32>
    %78 = arith.select %75, %67, %77 : vector<16x148xi1>, vector<16x148xf32>
    %79 = arith.truncf %78 : vector<16x148xf32> to vector<16x148xbf16>
    %80 = tpu.iota {dimensions = array<i32: 1>} : vector<1x148xi32>
    %c0_i32_35 = arith.constant 0 : i32
    %81 = arith.subi %c0_i32_35, %69 : i32
    %82 = vector.broadcast %81 : i32 to vector<1x148xi32>
    %83 = arith.cmpi sge, %80, %82 : vector<1x148xi32>
    %c200_i32_36 = arith.constant 200 : i32
    %84 = arith.subi %c200_i32_36, %69 : i32
    %85 = vector.broadcast %84 : i32 to vector<1x148xi32>
    %86 = arith.cmpi slt, %80, %85 : vector<1x148xi32>
    %87 = arith.andi %83, %86 : vector<1x148xi1>
    %cst_37 = arith.constant 0.000000e+00 : f32
    %88 = arith.truncf %cst_37 : f32 to bf16
    %89 = vector.shape_cast %87 : vector<1x148xi1> to vector<1x148xi1>
    %90 = vector.broadcast %89 : vector<1x148xi1> to vector<16x148xi1>
    %91 = vector.broadcast %88 : bf16 to vector<16x148xbf16>
    %92 = arith.select %90, %79, %91 : vector<16x148xi1>, vector<16x148xbf16>
    %93 = vector.extract_strided_slice %92 {offsets = [0, 0], sizes = [16, 142], strides = [1, 1]} : vector<16x148xbf16> to vector<16x142xbf16>
    %94 = vector.extract_strided_slice %92 {offsets = [0, 3], sizes = [16, 142], strides = [1, 1]} : vector<16x148xbf16> to vector<16x142xbf16>
    %95 = vector.extract_strided_slice %92 {offsets = [0, 6], sizes = [16, 142], strides = [1, 1]} : vector<16x148xbf16> to vector<16x142xbf16>
    %96 = tpu.concatenate %93, %94, %95 in 0 : vector<16x142xbf16>, vector<16x142xbf16>, vector<16x142xbf16> -> vector<48x142xbf16>
    %cst_38 = arith.constant dense<0.000000e+00> : vector<16x142xf32>
    %97 = tpu.matmul %70, %96, %cst_38 {dimension_numbers = #tpu.dot_dimension_numbers<[1], [0], [0], [1], [0, 0, 1, 1], [], []>} : vector<16x48xbf16>, vector<48x142xbf16>, vector<16x142xf32> -> vector<16x142xf32>
    %98 = vector.broadcast %71 : vector<16x1xf32> to vector<16x142xf32>
    %99 = arith.addf %97, %98 : vector<16x142xf32>
    %cst_39 = arith.constant 0.000000e+00 : f32
    %100 = vector.broadcast %cst_39 : f32 to vector<16x142xf32>
    %101 = arith.cmpf oge, %99, %100 : vector<16x142xf32>
    %cst_40 = arith.constant 2.000000e-01 : f32
    %102 = vector.broadcast %cst_40 : f32 to vector<16x142xf32>
    %103 = arith.mulf %102, %99 : vector<16x142xf32>
    %104 = arith.select %101, %99, %103 : vector<16x142xi1>, vector<16x142xf32>
    %105 = arith.truncf %104 : vector<16x142xf32> to vector<16x142xbf16>
    %c3_i32 = arith.constant 3 : i32
    %106 = arith.addi %69, %c3_i32 : i32
    %107 = tpu.iota {dimensions = array<i32: 1>} : vector<1x142xi32>
    %c0_i32_41 = arith.constant 0 : i32
    %108 = arith.subi %c0_i32_41, %106 : i32
    %109 = vector.broadcast %108 : i32 to vector<1x142xi32>
    %110 = arith.cmpi sge, %107, %109 : vector<1x142xi32>
    %c200_i32_42 = arith.constant 200 : i32
    %111 = arith.subi %c200_i32_42, %106 : i32
    %112 = vector.broadcast %111 : i32 to vector<1x142xi32>
    %113 = arith.cmpi slt, %107, %112 : vector<1x142xi32>
    %114 = arith.andi %110, %113 : vector<1x142xi1>
    %cst_43 = arith.constant 0.000000e+00 : f32
    %115 = arith.truncf %cst_43 : f32 to bf16
    %116 = vector.shape_cast %114 : vector<1x142xi1> to vector<1x142xi1>
    %117 = vector.broadcast %116 : vector<1x142xi1> to vector<16x142xi1>
    %118 = vector.broadcast %115 : bf16 to vector<16x142xbf16>
    %119 = arith.select %117, %105, %118 : vector<16x142xi1>, vector<16x142xbf16>
    %120 = vector.extract_strided_slice %119 {offsets = [0, 0], sizes = [16, 140], strides = [1, 1]} : vector<16x142xbf16> to vector<16x140xbf16>
    %121 = vector.extract_strided_slice %119 {offsets = [0, 1], sizes = [16, 140], strides = [1, 1]} : vector<16x142xbf16> to vector<16x140xbf16>
    %122 = vector.extract_strided_slice %119 {offsets = [0, 2], sizes = [16, 140], strides = [1, 1]} : vector<16x142xbf16> to vector<16x140xbf16>
    %123 = tpu.concatenate %120, %121, %122 in 0 : vector<16x140xbf16>, vector<16x140xbf16>, vector<16x140xbf16> -> vector<48x140xbf16>
    %cst_44 = arith.constant dense<0.000000e+00> : vector<16x140xf32>
    %124 = tpu.matmul %72, %123, %cst_44 {dimension_numbers = #tpu.dot_dimension_numbers<[1], [0], [0], [1], [0, 0, 1, 1], [], []>} : vector<16x48xbf16>, vector<48x140xbf16>, vector<16x140xf32> -> vector<16x140xf32>
    %125 = vector.broadcast %73 : vector<16x1xf32> to vector<16x140xf32>
    %126 = arith.addf %124, %125 : vector<16x140xf32>
    %127 = vector.extract_strided_slice %67 {offsets = [0, 4], sizes = [16, 140], strides = [1, 1]} : vector<16x148xf32> to vector<16x140xf32>
    %128 = arith.addf %126, %127 : vector<16x140xf32>
    %c3_i32_45 = arith.constant 3 : i32
    %129 = arith.addi %69, %c3_i32_45 : i32
    %c1_i32_46 = arith.constant 1 : i32
    %130 = arith.addi %129, %c1_i32_46 : i32
    %c0_47 = arith.constant 0 : index
    %c0_48 = arith.constant 0 : index
    %131 = vector.load %arg12[%c0_47, %c0_48] : memref<16x48xbf16, #tpu.memory_space<vmem>>, vector<16x48xbf16>
    %c0_49 = arith.constant 0 : index
    %c0_50 = arith.constant 0 : index
    %132 = vector.load %arg13[%c0_49, %c0_50] : memref<16x1xf32, #tpu.memory_space<vmem>>, vector<16x1xf32>
    %c0_51 = arith.constant 0 : index
    %c0_52 = arith.constant 0 : index
    %133 = vector.load %arg14[%c0_51, %c0_52] : memref<16x48xbf16, #tpu.memory_space<vmem>>, vector<16x48xbf16>
    %c0_53 = arith.constant 0 : index
    %c0_54 = arith.constant 0 : index
    %134 = vector.load %arg15[%c0_53, %c0_54] : memref<16x1xf32, #tpu.memory_space<vmem>>, vector<16x1xf32>
    %cst_55 = arith.constant 0.000000e+00 : f32
    %135 = vector.broadcast %cst_55 : f32 to vector<16x140xf32>
    %136 = arith.cmpf oge, %128, %135 : vector<16x140xf32>
    %cst_56 = arith.constant 2.000000e-01 : f32
    %137 = vector.broadcast %cst_56 : f32 to vector<16x140xf32>
    %138 = arith.mulf %137, %128 : vector<16x140xf32>
    %139 = arith.select %136, %128, %138 : vector<16x140xi1>, vector<16x140xf32>
    %140 = arith.truncf %139 : vector<16x140xf32> to vector<16x140xbf16>
    %141 = tpu.iota {dimensions = array<i32: 1>} : vector<1x140xi32>
    %c0_i32_57 = arith.constant 0 : i32
    %142 = arith.subi %c0_i32_57, %130 : i32
    %143 = vector.broadcast %142 : i32 to vector<1x140xi32>
    %144 = arith.cmpi sge, %141, %143 : vector<1x140xi32>
    %c200_i32_58 = arith.constant 200 : i32
    %145 = arith.subi %c200_i32_58, %130 : i32
    %146 = vector.broadcast %145 : i32 to vector<1x140xi32>
    %147 = arith.cmpi slt, %141, %146 : vector<1x140xi32>
    %148 = arith.andi %144, %147 : vector<1x140xi1>
    %cst_59 = arith.constant 0.000000e+00 : f32
    %149 = arith.truncf %cst_59 : f32 to bf16
    %150 = vector.shape_cast %148 : vector<1x140xi1> to vector<1x140xi1>
    %151 = vector.broadcast %150 : vector<1x140xi1> to vector<16x140xi1>
    %152 = vector.broadcast %149 : bf16 to vector<16x140xbf16>
    %153 = arith.select %151, %140, %152 : vector<16x140xi1>, vector<16x140xbf16>
    %154 = vector.extract_strided_slice %153 {offsets = [0, 0], sizes = [16, 130], strides = [1, 1]} : vector<16x140xbf16> to vector<16x130xbf16>
    %155 = vector.extract_strided_slice %153 {offsets = [0, 5], sizes = [16, 130], strides = [1, 1]} : vector<16x140xbf16> to vector<16x130xbf16>
    %156 = vector.extract_strided_slice %153 {offsets = [0, 10], sizes = [16, 130], strides = [1, 1]} : vector<16x140xbf16> to vector<16x130xbf16>
    %157 = tpu.concatenate %154, %155, %156 in 0 : vector<16x130xbf16>, vector<16x130xbf16>, vector<16x130xbf16> -> vector<48x130xbf16>
    %cst_60 = arith.constant dense<0.000000e+00> : vector<16x130xf32>
    %158 = tpu.matmul %131, %157, %cst_60 {dimension_numbers = #tpu.dot_dimension_numbers<[1], [0], [0], [1], [0, 0, 1, 1], [], []>} : vector<16x48xbf16>, vector<48x130xbf16>, vector<16x130xf32> -> vector<16x130xf32>
    %159 = vector.broadcast %132 : vector<16x1xf32> to vector<16x130xf32>
    %160 = arith.addf %158, %159 : vector<16x130xf32>
    %cst_61 = arith.constant 0.000000e+00 : f32
    %161 = vector.broadcast %cst_61 : f32 to vector<16x130xf32>
    %162 = arith.cmpf oge, %160, %161 : vector<16x130xf32>
    %cst_62 = arith.constant 2.000000e-01 : f32
    %163 = vector.broadcast %cst_62 : f32 to vector<16x130xf32>
    %164 = arith.mulf %163, %160 : vector<16x130xf32>
    %165 = arith.select %162, %160, %164 : vector<16x130xi1>, vector<16x130xf32>
    %166 = arith.truncf %165 : vector<16x130xf32> to vector<16x130xbf16>
    %c5_i32 = arith.constant 5 : i32
    %167 = arith.addi %130, %c5_i32 : i32
    %168 = tpu.iota {dimensions = array<i32: 1>} : vector<1x130xi32>
    %c0_i32_63 = arith.constant 0 : i32
    %169 = arith.subi %c0_i32_63, %167 : i32
    %170 = vector.broadcast %169 : i32 to vector<1x130xi32>
    %171 = arith.cmpi sge, %168, %170 : vector<1x130xi32>
    %c200_i32_64 = arith.constant 200 : i32
    %172 = arith.subi %c200_i32_64, %167 : i32
    %173 = vector.broadcast %172 : i32 to vector<1x130xi32>
    %174 = arith.cmpi slt, %168, %173 : vector<1x130xi32>
    %175 = arith.andi %171, %174 : vector<1x130xi1>
    %cst_65 = arith.constant 0.000000e+00 : f32
    %176 = arith.truncf %cst_65 : f32 to bf16
    %177 = vector.shape_cast %175 : vector<1x130xi1> to vector<1x130xi1>
    %178 = vector.broadcast %177 : vector<1x130xi1> to vector<16x130xi1>
    %179 = vector.broadcast %176 : bf16 to vector<16x130xbf16>
    %180 = arith.select %178, %166, %179 : vector<16x130xi1>, vector<16x130xbf16>
    %181 = vector.extract_strided_slice %180 {offsets = [0, 0], sizes = [16, 128], strides = [1, 1]} : vector<16x130xbf16> to vector<16x128xbf16>
    %182 = vector.extract_strided_slice %180 {offsets = [0, 1], sizes = [16, 128], strides = [1, 1]} : vector<16x130xbf16> to vector<16x128xbf16>
    %183 = vector.extract_strided_slice %180 {offsets = [0, 2], sizes = [16, 128], strides = [1, 1]} : vector<16x130xbf16> to vector<16x128xbf16>
    %184 = tpu.concatenate %181, %182, %183 in 0 : vector<16x128xbf16>, vector<16x128xbf16>, vector<16x128xbf16> -> vector<48x128xbf16>
    %cst_66 = arith.constant dense<0.000000e+00> : vector<16x128xf32>
    %185 = tpu.matmul %133, %184, %cst_66 {dimension_numbers = #tpu.dot_dimension_numbers<[1], [0], [0], [1], [0, 0, 1, 1], [], []>} : vector<16x48xbf16>, vector<48x128xbf16>, vector<16x128xf32> -> vector<16x128xf32>
    %186 = vector.broadcast %134 : vector<16x1xf32> to vector<16x128xf32>
    %187 = arith.addf %185, %186 : vector<16x128xf32>
    %188 = vector.extract_strided_slice %128 {offsets = [0, 6], sizes = [16, 128], strides = [1, 1]} : vector<16x140xf32> to vector<16x128xf32>
    %189 = arith.addf %187, %188 : vector<16x128xf32>
    %c0_67 = arith.constant 0 : index
    %c0_68 = arith.constant 0 : index
    %c0_69 = arith.constant 0 : index
    %190 = vector.load %arg16[%c0_67, %c0_68, %c0_69] : memref<1x16x128xf32, #tpu.memory_space<vmem>>, vector<1x16x128xf32>
    %191 = vector.shape_cast %190 : vector<1x16x128xf32> to vector<16x128xf32>
    %192 = vector.shape_cast %189 : vector<16x128xf32> to vector<1x16x128xf32>
    tpu.vector_store %arg16[%c0_67, %c0_68, %c0_69], %192 {strides = array<i32>} : memref<1x16x128xf32, #tpu.memory_space<vmem>>, vector<1x16x128xf32>,
    return
  }
  func.func @transform_0(%arg0: i32, %arg1: i32) -> (i32, i32, i32) {
    %c0_i32 = arith.constant 0 : i32
    %c0_i32_0 = arith.constant 0 : i32
    return %arg0, %c0_i32, %arg1 : i32, i32, i32
  }
  func.func @transform_1(%arg0: i32, %arg1: i32) -> (i32, i32, i32, i32) {
    %c0_i32 = arith.constant 0 : i32
    %c0_i32_0 = arith.constant 0 : i32
    %c0_i32_1 = arith.constant 0 : i32
    return %arg0, %arg1, %c0_i32, %c0_i32_0 : i32, i32, i32, i32
  }
  func.func @transform_2(%arg0: i32, %arg1: i32) -> (i32, i32) {
    %c0_i32 = arith.constant 0 : i32
    %c0_i32_0 = arith.constant 0 : i32
    %c0_i32_1 = arith.constant 0 : i32
    return %c0_i32, %c0_i32_0 : i32, i32
  }
  func.func @transform_3(%arg0: i32, %arg1: i32) -> (i32, i32) {
    %c0_i32 = arith.constant 0 : i32
    %c0_i32_0 = arith.constant 0 : i32
    %c0_i32_1 = arith.constant 0 : i32
    return %c0_i32, %c0_i32_0 : i32, i32
  }
  func.func @transform_4(%arg0: i32, %arg1: i32) -> (i32, i32) {
    %c0_i32 = arith.constant 0 : i32
    %c0_i32_0 = arith.constant 0 : i32
    %c0_i32_1 = arith.constant 0 : i32
    return %c0_i32, %c0_i32_0 : i32, i32
  }
  func.func @transform_5(%arg0: i32, %arg1: i32) -> (i32, i32) {
    %c0_i32 = arith.constant 0 : i32
    %c0_i32_0 = arith.constant 0 : i32
    %c0_i32_1 = arith.constant 0 : i32
    return %c0_i32, %c0_i32_0 : i32, i32
  }
  func.func @transform_6(%arg0: i32, %arg1: i32) -> (i32, i32) {
    %c0_i32 = arith.constant 0 : i32
    %c0_i32_0 = arith.constant 0 : i32
    %c0_i32_1 = arith.constant 0 : i32
    return %c0_i32, %c0_i32_0 : i32, i32
  }
  func.func @transform_7(%arg0: i32, %arg1: i32) -> (i32, i32) {
    %c0_i32 = arith.constant 0 : i32
    %c0_i32_0 = arith.constant 0 : i32
    %c0_i32_1 = arith.constant 0 : i32
    return %c0_i32, %c0_i32_0 : i32, i32
  }
  func.func @transform_8(%arg0: i32, %arg1: i32) -> (i32, i32) {
    %c0_i32 = arith.constant 0 : i32
    %c0_i32_0 = arith.constant 0 : i32
    %c0_i32_1 = arith.constant 0 : i32
    return %c0_i32, %c0_i32_0 : i32, i32
  }
  func.func @transform_9(%arg0: i32, %arg1: i32) -> (i32, i32) {
    %c0_i32 = arith.constant 0 : i32
    %c0_i32_0 = arith.constant 0 : i32
    %c0_i32_1 = arith.constant 0 : i32
    return %c0_i32, %c0_i32_0 : i32, i32
  }
  func.func @transform_10(%arg0: i32, %arg1: i32) -> (i32, i32) {
    %c0_i32 = arith.constant 0 : i32
    %c0_i32_0 = arith.constant 0 : i32
    %c0_i32_1 = arith.constant 0 : i32
    return %c0_i32, %c0_i32_0 : i32, i32
  }
  func.func @transform_11(%arg0: i32, %arg1: i32) -> (i32, i32) {
    %c0_i32 = arith.constant 0 : i32
    %c0_i32_0 = arith.constant 0 : i32
    %c0_i32_1 = arith.constant 0 : i32
    return %c0_i32, %c0_i32_0 : i32, i32
  }
  func.func @transform_12(%arg0: i32, %arg1: i32) -> (i32, i32) {
    %c0_i32 = arith.constant 0 : i32
    %c0_i32_0 = arith.constant 0 : i32
    %c0_i32_1 = arith.constant 0 : i32
    return %c0_i32, %c0_i32_0 : i32, i32
  }
  func.func @transform_13(%arg0: i32, %arg1: i32) -> (i32, i32) {
    %c0_i32 = arith.constant 0 : i32
    %c0_i32_0 = arith.constant 0 : i32
    %c0_i32_1 = arith.constant 0 : i32
    return %c0_i32, %c0_i32_0 : i32, i32
  }
  func.func @transform_14(%arg0: i32, %arg1: i32) -> (i32, i32, i32) {
    %c0_i32 = arith.constant 0 : i32
    %c0_i32_0 = arith.constant 0 : i32
    return %arg0, %c0_i32, %arg1 : i32, i32, i32
  }
}

</mosaic_0001>

<llo_original>
// kernel: tpu_custom_call.1
$region0: #{tpu_custom_call.1}
  #allocation0 [shape = 'u32[]', space=smem, size = 0x4, offset = 0x4, fixed_abs, tag = 'smem constant byte address 0x4 - core index']
  #allocation1 [shape = 'u32[144,128]{1,0:T(1,128)}', space=vmem, size = 0x12000, scoped, tag = 'internal scratch']
  %s0 = inlined_call_operand.vmem [shape: f32[2,16,200], index: 0, kind: input, shape index: {}]
  %s1 = inlined_call_operand.hbm [shape: f32[2,2,16,24], index: 1, kind: input, shape index: {}]
  %s2 = inlined_call_operand.vmem [shape: bf16[16,48], index: 2, kind: input, shape index: {}]
  %s3 = inlined_call_operand.vmem [shape: f32[16,1], index: 3, kind: input, shape index: {}]
  %s4 = inlined_call_operand.vmem [shape: bf16[16,48], index: 4, kind: input, shape index: {}]
  %s5 = inlined_call_operand.vmem [shape: f32[16,1], index: 5, kind: input, shape index: {}]
  %s6 = inlined_call_operand.vmem [shape: bf16[16,48], index: 6, kind: input, shape index: {}]
  %s7 = inlined_call_operand.vmem [shape: f32[16,1], index: 7, kind: input, shape index: {}]
  %s8 = inlined_call_operand.vmem [shape: bf16[16,48], index: 8, kind: input, shape index: {}]
  %s9 = inlined_call_operand.vmem [shape: f32[16,1], index: 9, kind: input, shape index: {}]
  %s10 = inlined_call_operand.vmem [shape: bf16[16,48], index: 10, kind: input, shape index: {}]
  %s11 = inlined_call_operand.vmem [shape: f32[16,1], index: 11, kind: input, shape index: {}]
  %s12 = inlined_call_operand.vmem [shape: bf16[16,48], index: 12, kind: input, shape index: {}]
  %s13 = inlined_call_operand.vmem [shape: f32[16,1], index: 13, kind: input, shape index: {}]
  %s14 = inlined_call_operand.hbm [shape: f32[2,16,200], index: 14, kind: output, shape index: {}]
  %s15 = sld [smem:[#allocation0]]
  $region131: #{tpu_custom_call.1} parent=0
    _
  %s17 = ssub.s32 1, %s15
  %s18 = scalar_select 0, %s17, %s15
  $region1: #{tpu_custom_call.1} parent=0
    #allocation2 [shape = 'u8[16384]{0}', space=vmem, size = 0x4000, scoped, tag = 'input window, operand 0']
    #allocation3 [shape = 'u8[16384]{0}', space=vmem, size = 0x4000, scoped, tag = 'input window, operand 1']
    #allocation4 [shape = 's32[2]{0}', space=sflag, size = 0x8, scoped, tag = 'scoped memory for tpu_custom_call.1']
    #allocation5 [shape = 's32[2]{0}', space=sflag, size = 0x8, scoped, tag = 'scoped memory for tpu_custom_call.1']
    #allocation6 [shape = 'u8[16384]{0}', space=vmem, size = 0x4000, scoped, tag = 'output window, operand 0']
    %19 = vsyncpa [#allocation4], 0
    %s20 = scalar_lea.sflag [#allocation4], 1
    %21 = vsyncpa %s20, 0
    %22 = vsyncpa [#allocation5], 0
    %s23 = scalar_lea.sflag [#allocation5], 1
    %24 = vsyncpa %s23, 0
    loop: start=0, step=1, limit=6
    $region2: #{tpu_custom_call.1} parent=1 // loop_pre_header
      _
    $region3: #{tpu_custom_call.1} parent=1 // loop_header
      %s26 = sphi 0, %s30
      %p27 = scmp.ge.s32.totalorder %s26, 6
      %s33 = sphi 0, %s45
      %s34 = sphi 0, %s41
      %s35 = sphi 0, %s33
      %s36 = sphi 0, %s34
      %s37 = sphi 0, %s35
      %s38 = sphi 0, %s36
      %s50 = sphi 0, %s52
      %s53 = sphi 0, %s50
      %s54 = sphi 0, %s53
      %s70 = sphi 0, %s54
      %s78 = sphi 0, %s80
      %s81 = sphi 0, %s78
      %s82 = sphi 0, %s81
      %s98 = sphi 0, %s82
      %s102 = sphi 0, %s102
      %s104 = sphi 0, %s102
      %s105 = sphi 0, %s104
      %s119 = sphi 0, %s105
      %s123 = sphi 0, %s123
      %s125 = sphi 0, %s123
      %s126 = sphi 0, %s125
      %s140 = sphi 0, %s126
      %s144 = sphi 0, %s144
      %s146 = sphi 0, %s144
      %s147 = sphi 0, %s146
      %s161 = sphi 0, %s147
      %s165 = sphi 0, %s165
      %s167 = sphi 0, %s165
      %s168 = sphi 0, %s167
      %s182 = sphi 0, %s168
      %s186 = sphi 0, %s186
      %s188 = sphi 0, %s186
      %s189 = sphi 0, %s188
      %s203 = sphi 0, %s189
      %s207 = sphi 0, %s207
      %s209 = sphi 0, %s207
      %s210 = sphi 0, %s209
      %s224 = sphi 0, %s210
      %s228 = sphi 0, %s228
      %s230 = sphi 0, %s228
      %s231 = sphi 0, %s230
      %s245 = sphi 0, %s231
      %s249 = sphi 0, %s249
      %s251 = sphi 0, %s249
      %s252 = sphi 0, %s251
      %s266 = sphi 0, %s252
      %s270 = sphi 0, %s270
      %s272 = sphi 0, %s270
      %s273 = sphi 0, %s272
      %s287 = sphi 0, %s273
      %s291 = sphi 0, %s291
      %s293 = sphi 0, %s291
      %s294 = sphi 0, %s293
      %s308 = sphi 0, %s294
      %s312 = sphi 0, %s312
      %s314 = sphi 0, %s312
      %s315 = sphi 0, %s314
      %s329 = sphi 0, %s315
      %s333 = sphi 0, %s333
      %s335 = sphi 0, %s333
      %s336 = sphi 0, %s335
      %s350 = sphi 0, %s336
      %s358 = sphi 0, %s360
      %s361 = sphi 0, %s358
      %s362 = sphi 0, %s361
      %s378 = sphi 0, %s362
    $region4: #{tpu_custom_call.1} parent=1 // loop_header_branch
      %29 = sbr.rel (%p27) target = $region8
    $region5: #{tpu_custom_call.1} parent=1 // loop_body
      %s31 = ssub.s32 %s26, 1
      %s32 = ssub.s32 %s26, 2
      %s39 = sadd.s32 1, %s34
      %p40 = scmp.ge.s32.totalorder %s39, 2
      %s41 = scalar_select %p40, 0, %s39
      %s42 = sadd.s32 1, %s33
      %s43 = scalar_select %p40, %s42, %s33
      %p44 = scmp.ge.s32.totalorder %s43, 2
      %s45 = scalar_select %p44, 0, %s43
      %s46 = ssub.s32 %s33, %s45
      %s47 = ssub.s32 %s34, %s41
      %s48 = sor.u32 %s46, %s47
      %p49 = scmp.eq.s32.totalorder %s48, 0
      %s51 = sadd.s32 %s50, 1
      %s52 = scalar_select %p49, %s50, %s51
      %p55 = pneg %p49
      %p56 = scmp.eq.s32.totalorder %s26, 3
      %p57 = por %p55, %p56
      %p58 = scmp.ne.s32.totalorder %s50, %s53
      %p59 = scmp.eq.s32.totalorder %s26, 0
      %p60 = por %p58, %p59
      %p61 = scmp.ne.s32.totalorder %s50, %s53
      %p62 = scmp.eq.s32.totalorder %s31, 3
      %p63 = por %p61, %p62
      %p64 = scmp.ne.s32.totalorder %s53, %s54
      %p65 = scmp.eq.s32.totalorder %s31, 0
      %p66 = por %p64, %p65
      %p67 = scmp.ne.s32.totalorder %s53, %s54
      %p68 = scmp.eq.s32.totalorder %s32, 3
      %p69 = por %p67, %p68
      %p71 = scmp.ne.s32.totalorder %s54, %s70
      %p72 = scmp.eq.s32.totalorder %s32, 0
      %p73 = por %p71, %p72
      %s74 = ssub.s32 %s33, %s45
      %s75 = ssub.s32 %s34, %s41
      %s76 = sor.u32 %s74, %s75
      %p77 = scmp.eq.s32.totalorder %s76, 0
      %s79 = sadd.s32 %s78, 1
      %s80 = scalar_select %p77, %s78, %s79
      %p83 = pneg %p77
      %p84 = scmp.eq.s32.totalorder %s26, 3
      %p85 = por %p83, %p84
      %p86 = scmp.ne.s32.totalorder %s78, %s81
      %p87 = scmp.eq.s32.totalorder %s26, 0
      %p88 = por %p86, %p87
      %p89 = scmp.ne.s32.totalorder %s78, %s81
      %p90 = scmp.eq.s32.totalorder %s31, 3
      %p91 = por %p89, %p90
      %p92 = scmp.ne.s32.totalorder %s81, %s82
      %p93 = scmp.eq.s32.totalorder %s31, 0
      %p94 = por %p92, %p93
      %p95 = scmp.ne.s32.totalorder %s81, %s82
      %p96 = scmp.eq.s32.totalorder %s32, 3
      %p97 = por %p95, %p96
      %p99 = scmp.ne.s32.totalorder %s82, %s98
      %p100 = scmp.eq.s32.totalorder %s32, 0
      %p101 = por %p99, %p100
      %s103 = sadd.s32 %s102, 1
      %p106 = scmp.eq.s32.totalorder %s26, 3
      %p107 = scmp.ne.s32.totalorder %s102, %s104
      %p108 = scmp.eq.s32.totalorder %s26, 0
      %p109 = por %p107, %p108
      %p110 = scmp.ne.s32.totalorder %s102, %s104
      %p111 = scmp.eq.s32.totalorder %s31, 3
      %p112 = por %p110, %p111
      %p113 = scmp.ne.s32.totalorder %s104, %s105
      %p114 = scmp.eq.s32.totalorder %s31, 0
      %p115 = por %p113, %p114
      %p116 = scmp.ne.s32.totalorder %s104, %s105
      %p117 = scmp.eq.s32.totalorder %s32, 3
      %p118 = por %p116, %p117
      %p120 = scmp.ne.s32.totalorder %s105, %s119
      %p121 = scmp.eq.s32.totalorder %s32, 0
      %p122 = por %p120, %p121
      %s124 = sadd.s32 %s123, 1
      %p127 = scmp.eq.s32.totalorder %s26, 3
      %p128 = scmp.ne.s32.totalorder %s123, %s125
      %p129 = scmp.eq.s32.totalorder %s26, 0
      %p130 = por %p128, %p129
      %p131 = scmp.ne.s32.totalorder %s123, %s125
      %p132 = scmp.eq.s32.totalorder %s31, 3
      %p133 = por %p131, %p132
      %p134 = scmp.ne.s32.totalorder %s125, %s126
      %p135 = scmp.eq.s32.totalorder %s31, 0
      %p136 = por %p134, %p135
      %p137 = scmp.ne.s32.totalorder %s125, %s126
      %p138 = scmp.eq.s32.totalorder %s32, 3
      %p139 = por %p137, %p138
      %p141 = scmp.ne.s32.totalorder %s126, %s140
      %p142 = scmp.eq.s32.totalorder %s32, 0
      %p143 = por %p141, %p142
      %s145 = sadd.s32 %s144, 1
      %p148 = scmp.eq.s32.totalorder %s26, 3
      %p149 = scmp.ne.s32.totalorder %s144, %s146
      %p150 = scmp.eq.s32.totalorder %s26, 0
      %p151 = por %p149, %p150
      %p152 = scmp.ne.s32.totalorder %s144, %s146
      %p153 = scmp.eq.s32.totalorder %s31, 3
      %p154 = por %p152, %p153
      %p155 = scmp.ne.s32.totalorder %s146, %s147
      %p156 = scmp.eq.s32.totalorder %s31, 0
      %p157 = por %p155, %p156
      %p158 = scmp.ne.s32.totalorder %s146, %s147
      %p159 = scmp.eq.s32.totalorder %s32, 3
      %p160 = por %p158, %p159
      %p162 = scmp.ne.s32.totalorder %s147, %s161
      %p163 = scmp.eq.s32.totalorder %s32, 0
      %p164 = por %p162, %p163
      %s166 = sadd.s32 %s165, 1
      %p169 = scmp.eq.s32.totalorder %s26, 3
      %p170 = scmp.ne.s32.totalorder %s165, %s167
      %p171 = scmp.eq.s32.totalorder %s26, 0
      %p172 = por %p170, %p171
      %p173 = scmp.ne.s32.totalorder %s165, %s167
      %p174 = scmp.eq.s32.totalorder %s31, 3
      %p175 = por %p173, %p174
      %p176 = scmp.ne.s32.totalorder %s167, %s168
      %p177 = scmp.eq.s32.totalorder %s31, 0
      %p178 = por %p176, %p177
      %p179 = scmp.ne.s32.totalorder %s167, %s168
      %p180 = scmp.eq.s32.totalorder %s32, 3
      %p181 = por %p179, %p180
      %p183 = scmp.ne.s32.totalorder %s168, %s182
      %p184 = scmp.eq.s32.totalorder %s32, 0
      %p185 = por %p183, %p184
      %s187 = sadd.s32 %s186, 1
      %p190 = scmp.eq.s32.totalorder %s26, 3
      %p191 = scmp.ne.s32.totalorder %s186, %s188
      %p192 = scmp.eq.s32.totalorder %s26, 0
      %p193 = por %p191, %p192
      %p194 = scmp.ne.s32.totalorder %s186, %s188
      %p195 = scmp.eq.s32.totalorder %s31, 3
      %p196 = por %p194, %p195
      %p197 = scmp.ne.s32.totalorder %s188, %s189
      %p198 = scmp.eq.s32.totalorder %s31, 0
      %p199 = por %p197, %p198
      %p200 = scmp.ne.s32.totalorder %s188, %s189
      %p201 = scmp.eq.s32.totalorder %s32, 3
      %p202 = por %p200, %p201
      %p204 = scmp.ne.s32.totalorder %s189, %s203
      %p205 = scmp.eq.s32.totalorder %s32, 0
      %p206 = por %p204, %p205
      %s208 = sadd.s32 %s207, 1
      %p211 = scmp.eq.s32.totalorder %s26, 3
      %p212 = scmp.ne.s32.totalorder %s207, %s209
      %p213 = scmp.eq.s32.totalorder %s26, 0
      %p214 = por %p212, %p213
      %p215 = scmp.ne.s32.totalorder %s207, %s209
      %p216 = scmp.eq.s32.totalorder %s31, 3
      %p217 = por %p215, %p216
      %p218 = scmp.ne.s32.totalorder %s209, %s210
      %p219 = scmp.eq.s32.totalorder %s31, 0
      %p220 = por %p218, %p219
      %p221 = scmp.ne.s32.totalorder %s209, %s210
      %p222 = scmp.eq.s32.totalorder %s32, 3
      %p223 = por %p221, %p222
      %p225 = scmp.ne.s32.totalorder %s210, %s224
      %p226 = scmp.eq.s32.totalorder %s32, 0
      %p227 = por %p225, %p226
      %s229 = sadd.s32 %s228, 1
      %p232 = scmp.eq.s32.totalorder %s26, 3
      %p233 = scmp.ne.s32.totalorder %s228, %s230
      %p234 = scmp.eq.s32.totalorder %s26, 0
      %p235 = por %p233, %p234
      %p236 = scmp.ne.s32.totalorder %s228, %s230
      %p237 = scmp.eq.s32.totalorder %s31, 3
      %p238 = por %p236, %p237
      %p239 = scmp.ne.s32.totalorder %s230, %s231
      %p240 = scmp.eq.s32.totalorder %s31, 0
      %p241 = por %p239, %p240
      %p242 = scmp.ne.s32.totalorder %s230, %s231
      %p243 = scmp.eq.s32.totalorder %s32, 3
      %p244 = por %p242, %p243
      %p246 = scmp.ne.s32.totalorder %s231, %s245
      %p247 = scmp.eq.s32.totalorder %s32, 0
      %p248 = por %p246, %p247
      %s250 = sadd.s32 %s249, 1
      %p253 = scmp.eq.s32.totalorder %s26, 3
      %p254 = scmp.ne.s32.totalorder %s249, %s251
      %p255 = scmp.eq.s32.totalorder %s26, 0
      %p256 = por %p254, %p255
      %p257 = scmp.ne.s32.totalorder %s249, %s251
      %p258 = scmp.eq.s32.totalorder %s31, 3
      %p259 = por %p257, %p258
      %p260 = scmp.ne.s32.totalorder %s251, %s252
      %p261 = scmp.eq.s32.totalorder %s31, 0
      %p262 = por %p260, %p261
      %p263 = scmp.ne.s32.totalorder %s251, %s252
      %p264 = scmp.eq.s32.totalorder %s32, 3
      %p265 = por %p263, %p264
      %p267 = scmp.ne.s32.totalorder %s252, %s266
      %p268 = scmp.eq.s32.totalorder %s32, 0
      %p269 = por %p267, %p268
      %s271 = sadd.s32 %s270, 1
      %p274 = scmp.eq.s32.totalorder %s26, 3
      %p275 = scmp.ne.s32.totalorder %s270, %s272
      %p276 = scmp.eq.s32.totalorder %s26, 0
      %p277 = por %p275, %p276
      %p278 = scmp.ne.s32.totalorder %s270, %s272
      %p279 = scmp.eq.s32.totalorder %s31, 3
      %p280 = por %p278, %p279
      %p281 = scmp.ne.s32.totalorder %s272, %s273
      %p282 = scmp.eq.s32.totalorder %s31, 0
      %p283 = por %p281, %p282
      %p284 = scmp.ne.s32.totalorder %s272, %s273
      %p285 = scmp.eq.s32.totalorder %s32, 3
      %p286 = por %p284, %p285
      %p288 = scmp.ne.s32.totalorder %s273, %s287
      %p289 = scmp.eq.s32.totalorder %s32, 0
      %p290 = por %p288, %p289
      %s292 = sadd.s32 %s291, 1
      %p295 = scmp.eq.s32.totalorder %s26, 3
      %p296 = scmp.ne.s32.totalorder %s291, %s293
      %p297 = scmp.eq.s32.totalorder %s26, 0
      %p298 = por %p296, %p297
      %p299 = scmp.ne.s32.totalorder %s291, %s293
      %p300 = scmp.eq.s32.totalorder %s31, 3
      %p301 = por %p299, %p300
      %p302 = scmp.ne.s32.totalorder %s293, %s294
      %p303 = scmp.eq.s32.totalorder %s31, 0
      %p304 = por %p302, %p303
      %p305 = scmp.ne.s32.totalorder %s293, %s294
      %p306 = scmp.eq.s32.totalorder %s32, 3
      %p307 = por %p305, %p306
      %p309 = scmp.ne.s32.totalorder %s294, %s308
      %p310 = scmp.eq.s32.totalorder %s32, 0
      %p311 = por %p309, %p310
      %s313 = sadd.s32 %s312, 1
      %p316 = scmp.eq.s32.totalorder %s26, 3
      %p317 = scmp.ne.s32.totalorder %s312, %s314
      %p318 = scmp.eq.s32.totalorder %s26, 0
      %p319 = por %p317, %p318
      %p320 = scmp.ne.s32.totalorder %s312, %s314
      %p321 = scmp.eq.s32.totalorder %s31, 3
      %p322 = por %p320, %p321
      %p323 = scmp.ne.s32.totalorder %s314, %s315
      %p324 = scmp.eq.s32.totalorder %s31, 0
      %p325 = por %p323, %p324
      %p326 = scmp.ne.s32.totalorder %s314, %s315
      %p327 = scmp.eq.s32.totalorder %s32, 3
      %p328 = por %p326, %p327
      %p330 = scmp.ne.s32.totalorder %s315, %s329
      %p331 = scmp.eq.s32.totalorder %s32, 0
      %p332 = por %p330, %p331
      %s334 = sadd.s32 %s333, 1
      %p337 = scmp.eq.s32.totalorder %s26, 3
      %p338 = scmp.ne.s32.totalorder %s333, %s335
      %p339 = scmp.eq.s32.totalorder %s26, 0
      %p340 = por %p338, %p339
      %p341 = scmp.ne.s32.totalorder %s333, %s335
      %p342 = scmp.eq.s32.totalorder %s31, 3
      %p343 = por %p341, %p342
      %p344 = scmp.ne.s32.totalorder %s335, %s336
      %p345 = scmp.eq.s32.totalorder %s31, 0
      %p346 = por %p344, %p345
      %p347 = scmp.ne.s32.totalorder %s335, %s336
      %p348 = scmp.eq.s32.totalorder %s32, 3
      %p349 = por %p347, %p348
      %p351 = scmp.ne.s32.totalorder %s336, %s350
      %p352 = scmp.eq.s32.totalorder %s32, 0
      %p353 = por %p351, %p352
      %s354 = ssub.s32 %s33, %s45
      %s355 = ssub.s32 %s34, %s41
      %s356 = sor.u32 %s354, %s355
      %p357 = scmp.eq.s32.totalorder %s356, 0
      %s359 = sadd.s32 %s358, 1
      %s360 = scalar_select %p357, %s358, %s359
      %p363 = pneg %p357
      %p364 = scmp.eq.s32.totalorder %s26, 3
      %p365 = por %p363, %p364
      %p366 = scmp.ne.s32.totalorder %s358, %s361
      %p367 = scmp.eq.s32.totalorder %s26, 0
      %p368 = por %p366, %p367
      %p369 = scmp.ne.s32.totalorder %s358, %s361
      %p370 = scmp.eq.s32.totalorder %s31, 3
      %p371 = por %p369, %p370
      %p372 = scmp.ne.s32.totalorder %s361, %s362
      %p373 = scmp.eq.s32.totalorder %s31, 0
      %p374 = por %p372, %p373
      %p375 = scmp.ne.s32.totalorder %s361, %s362
      %p376 = scmp.eq.s32.totalorder %s32, 3
      %p377 = por %p375, %p376
      %p379 = scmp.ne.s32.totalorder %s362, %s378
      %p380 = scmp.eq.s32.totalorder %s32, 0
      %p381 = por %p379, %p380
      %p382 = scmp.le.s32.totalorder 1, %s26
      %p383 = scmp.lt.s32.totalorder %s26, 5
      %p384 = pnand %p382, %p383
      %p385 = pneg %p384
      // Predicated region
      $region9: #{tpu_custom_call.1} parent=5 // pred_check
        _
      $region10: #{tpu_custom_call.1} parent=5 // pred_check_branch
        %387 = sbr.rel (%p384) target = $region12
      $region11: #{tpu_custom_call.1} parent=5 // pred_region
        %s388 = ssub.s32 %s26, 1
        // Predicated region
        $region13: #{tpu_custom_call.1} parent=11 // pred_check
          %p389 = pneg %p115
        $region14: #{tpu_custom_call.1} parent=11 // pred_check_branch
          %391 = sbr.rel (%p389) target = $region16
        $region15: #{tpu_custom_call.1} parent=11 // pred_region
          _
        $region16: #{tpu_custom_call.1} parent=11 // pred_fallthru
          _
        // Predicated region
        $region17: #{tpu_custom_call.1} parent=11 // pred_check
          %p392 = pneg %p136
        $region18: #{tpu_custom_call.1} parent=11 // pred_check_branch
          %394 = sbr.rel (%p392) target = $region20
        $region19: #{tpu_custom_call.1} parent=11 // pred_region
          _
        $region20: #{tpu_custom_call.1} parent=11 // pred_fallthru
          _
        // Predicated region
        $region21: #{tpu_custom_call.1} parent=11 // pred_check
          %p395 = pneg %p157
        $region22: #{tpu_custom_call.1} parent=11 // pred_check_branch
          %397 = sbr.rel (%p395) target = $region24
        $region23: #{tpu_custom_call.1} parent=11 // pred_region
          _
        $region24: #{tpu_custom_call.1} parent=11 // pred_fallthru
          _
        // Predicated region
        $region25: #{tpu_custom_call.1} parent=11 // pred_check
          %p398 = pneg %p178
        $region26: #{tpu_custom_call.1} parent=11 // pred_check_branch
          %400 = sbr.rel (%p398) target = $region28
        $region27: #{tpu_custom_call.1} parent=11 // pred_region
          _
        $region28: #{tpu_custom_call.1} parent=11 // pred_fallthru
          _
        // Predicated region
        $region29: #{tpu_custom_call.1} parent=11 // pred_check
          %p401 = pneg %p199
        $region30: #{tpu_custom_call.1} parent=11 // pred_check_branch
          %403 = sbr.rel (%p401) target = $region32
        $region31: #{tpu_custom_call.1} parent=11 // pred_region
          _
        $region32: #{tpu_custom_call.1} parent=11 // pred_fallthru
          _
        // Predicated region
        $region33: #{tpu_custom_call.1} parent=11 // pred_check
          %p404 = pneg %p220
        $region34: #{tpu_custom_call.1} parent=11 // pred_check_branch
          %406 = sbr.rel (%p404) target = $region36
        $region35: #{tpu_custom_call.1} parent=11 // pred_region
          _
        $region36: #{tpu_custom_call.1} parent=11 // pred_fallthru
          _
        // Predicated region
        $region37: #{tpu_custom_call.1} parent=11 // pred_check
          %p407 = pneg %p241
        $region38: #{tpu_custom_call.1} parent=11 // pred_check_branch
          %409 = sbr.rel (%p407) target = $region40
        $region39: #{tpu_custom_call.1} parent=11 // pred_region
          _
        $region40: #{tpu_custom_call.1} parent=11 // pred_fallthru
          _
        // Predicated region
        $region41: #{tpu_custom_call.1} parent=11 // pred_check
          %p410 = pneg %p262
        $region42: #{tpu_custom_call.1} parent=11 // pred_check_branch
          %412 = sbr.rel (%p410) target = $region44
        $region43: #{tpu_custom_call.1} parent=11 // pred_region
          _
        $region44: #{tpu_custom_call.1} parent=11 // pred_fallthru
          _
        // Predicated region
        $region45: #{tpu_custom_call.1} parent=11 // pred_check
          %p413 = pneg %p283
        $region46: #{tpu_custom_call.1} parent=11 // pred_check_branch
          %415 = sbr.rel (%p413) target = $region48
        $region47: #{tpu_custom_call.1} parent=11 // pred_region
          _
        $region48: #{tpu_custom_call.1} parent=11 // pred_fallthru
          _
        // Predicated region
        $region49: #{tpu_custom_call.1} parent=11 // pred_check
          %p416 = pneg %p304
        $region50: #{tpu_custom_call.1} parent=11 // pred_check_branch
          %418 = sbr.rel (%p416) target = $region52
        $region51: #{tpu_custom_call.1} parent=11 // pred_region
          _
        $region52: #{tpu_custom_call.1} parent=11 // pred_fallthru
          _
        // Predicated region
        $region53: #{tpu_custom_call.1} parent=11 // pred_check
          %p419 = pneg %p325
        $region54: #{tpu_custom_call.1} parent=11 // pred_check_branch
          %421 = sbr.rel (%p419) target = $region56
        $region55: #{tpu_custom_call.1} parent=11 // pred_region
          _
        $region56: #{tpu_custom_call.1} parent=11 // pred_fallthru
          _
        // Predicated region
        $region57: #{tpu_custom_call.1} parent=11 // pred_check
          %p422 = pneg %p346
        $region58: #{tpu_custom_call.1} parent=11 // pred_check_branch
          %424 = sbr.rel (%p422) target = $region60
        $region59: #{tpu_custom_call.1} parent=11 // pred_region
          _
        $region60: #{tpu_custom_call.1} parent=11 // pred_fallthru
          _
      $region12: #{tpu_custom_call.1} parent=5 // pred_fallthru
        _
      %p425 = scmp.lt.s32.totalorder %s26, 4
      // Predicated region
      $region61: #{tpu_custom_call.1} parent=5 // pred_check
        %p426 = pneg %p425
      $region62: #{tpu_custom_call.1} parent=5 // pred_check_branch
        %428 = sbr.rel (%p426) target = $region64
      $region63: #{tpu_custom_call.1} parent=5 // pred_region
        // Predicated region
        $region65: #{tpu_custom_call.1} parent=63 // pred_check
          %p429 = pneg %p60
        $region66: #{tpu_custom_call.1} parent=63 // pred_check_branch
          %431 = sbr.rel (%p429) target = $region68
        $region67: #{tpu_custom_call.1} parent=63 // pred_region
          %s432 = sand.u32 %s50, 1
          %s433 = sand.u32 %s50, 1
          %s434 = smul.addr %s433, 16
          %s435 = scalar_lea.vmem [#allocation2], %s434
          %s436 = smul.addr %s33, 4
          %s437 = sadd.s32 %s34, %s436
          %s438 = smul.addr %s437, 8
          %s439 = scalar_lea.vmem %s0, %s438
          // Predicated region
          $region69: #{tpu_custom_call.1} parent=67 // pred_check
            _
          $region70: #{tpu_custom_call.1} parent=67 // pred_check_branch
            %441 = sbr.rel (0) target = $region72
          $region71: #{tpu_custom_call.1} parent=67 // pred_region
            // Predicated region
            $region73: #{tpu_custom_call.1} parent=71 // pred_check
              _
            $region74: #{tpu_custom_call.1} parent=71 // pred_check_branch
              %443 = sbr.rel (0) target = $region76
            $region75: #{tpu_custom_call.1} parent=71 // pred_region
              // Predicated region
              $region88: #{tpu_custom_call.1} parent=75 // pred_check
                _
              $region89: #{tpu_custom_call.1} parent=75 // pred_check_branch
                %460 = sbr.rel (0) target = $region91
              $region90: #{tpu_custom_call.1} parent=75 // pred_region
                loop: start=0, step=1, limit=1
                $region92: #{tpu_custom_call.1} parent=90 // loop_pre_header
                  _
                $region93: #{tpu_custom_call.1} parent=90 // loop_header
                  %s462 = sphi 0, %s466
                  %p463 = scmp.ge.s32.totalorder %s462, 1
                  %s467 = sphi %s439, %s439
                  %s468 = sphi %s435, %s435
                $region94: #{tpu_custom_call.1} parent=90 // loop_header_branch
                  %465 = sbr.rel (%p463) target = $region98
                $region95: #{tpu_custom_call.1} parent=90 // loop_body
                  %v469 = vld [vmem:[%s467] sm:$0xff]
                  %470 = vst [vmem:[%s468] sm:$0xff] %v469
                  %v471 = vld [vmem:[%s467 + $0x10] sm:$0xff]
                  %472 = vst [vmem:[%s468 + $0x8] sm:$0xff] %v471
                $region96: #{tpu_custom_call.1} parent=90 // loop_footer
                  %s466 = sadd.s32 1, %s462
                $region97: #{tpu_custom_call.1} parent=90 // loop_footer_branch
                  %461 = sbr.rel target = $region93
                $region98: #{tpu_custom_call.1} parent=90 // loop_exit
                  _
              $region91: #{tpu_custom_call.1} parent=75 // pred_fallthru
                _
              // Predicated region
              $region99: #{tpu_custom_call.1} parent=75 // pred_check
                _
              $region100: #{tpu_custom_call.1} parent=75 // pred_check_branch
                %474 = sbr.rel target = $region102
              $region101: #{tpu_custom_call.1} parent=75 // pred_region
                _
              $region102: #{tpu_custom_call.1} parent=75 // pred_fallthru
                _
            $region76: #{tpu_custom_call.1} parent=71 // pred_fallthru
              _
            // Predicated region
            $region77: #{tpu_custom_call.1} parent=71 // pred_check
              _
            $region78: #{tpu_custom_call.1} parent=71 // pred_check_branch
              %445 = sbr.rel target = $region80
            $region79: #{tpu_custom_call.1} parent=71 // pred_region
              loop: start=0, step=1, limit=1
              $region81: #{tpu_custom_call.1} parent=79 // loop_pre_header
                _
              $region82: #{tpu_custom_call.1} parent=79 // loop_header
                %s448 = sphi 0, %s452
                %p449 = scmp.ge.s32.totalorder %s448, 1
                %s453 = sphi %s439, %s439
                %s454 = sphi %s435, %s435
              $region83: #{tpu_custom_call.1} parent=79 // loop_header_branch
                %451 = sbr.rel (%p449) target = $region87
              $region84: #{tpu_custom_call.1} parent=79 // loop_body
                %v455 = vld [vmem:[%s453] sm:$0xff]
                %456 = vst [vmem:[%s454] sm:$0xff] %v455
                %v457 = vld [vmem:[%s453 + $0x10] sm:$0xff]
                %458 = vst [vmem:[%s454 + $0x8] sm:$0xff] %v457
              $region85: #{tpu_custom_call.1} parent=79 // loop_footer
                %s452 = sadd.s32 1, %s448
              $region86: #{tpu_custom_call.1} parent=79 // loop_footer_branch
                %447 = sbr.rel target = $region82
              $region87: #{tpu_custom_call.1} parent=79 // loop_exit
                _
            $region80: #{tpu_custom_call.1} parent=71 // pred_fallthru
              _
          $region72: #{tpu_custom_call.1} parent=67 // pred_fallthru
            _
          %475 = vnop
        $region68: #{tpu_custom_call.1} parent=63 // pred_fallthru
          _
        // Predicated region
        $region103: #{tpu_custom_call.1} parent=63 // pred_check
          %p476 = pneg %p88
        $region104: #{tpu_custom_call.1} parent=63 // pred_check_branch
          %478 = sbr.rel (%p476) target = $region106
        $region105: #{tpu_custom_call.1} parent=63 // pred_region
          %s479 = sand.u32 %s78, 1
          %s480 = scalar_lea.sflag [#allocation4], %s479
          %s481 = sand.u32 %s78, 1
          %s482 = smul.addr %s481, 16
          %s483 = scalar_lea.vmem [#allocation3], %s482
          %s485 = ssub.s32 256, 256
          %486 = vsyncadd %s480, %s485
          %s487 = smul.addr %s34, 2
          %s488 = smul.addr %s33, 4
          %s489 = sadd.s32 %s487, %s488
          %s490 = smul.addr %s489, 128
          %s491 = scalar_lea.hbm %s1, %s490
          %s492 = sshll.u32 %s483, 4
          %s493 = int_to_ptr.vmem [resolvable:$true] %s492
          %498 = dma.hbm_to_vmem [thread:$0]  %s491, 256, %s493, %s480, 128, 128, 8
        $region106: #{tpu_custom_call.1} parent=63 // pred_fallthru
          _
      $region64: #{tpu_custom_call.1} parent=5 // pred_fallthru
        _
      %p499 = scmp.le.s32.totalorder 1, %s26
      %p500 = scmp.lt.s32.totalorder %s26, 5
      %p501 = pnand %p499, %p500
      %p502 = pneg %p501
      // Predicated region
      $region107: #{tpu_custom_call.1} parent=5 // pred_check
        _
      $region108: #{tpu_custom_call.1} parent=5 // pred_check_branch
        %504 = sbr.rel (%p501) target = $region110
      $region109: #{tpu_custom_call.1} parent=5 // pred_region
        %s505 = ssub.s32 %s26, 1
        %s506 = sand.u32 %s53, 1
        %s507 = sand.u32 %s53, 1
        %s508 = smul.addr %s507, 16
        %s509 = scalar_lea.vmem [#allocation2], %s508
        // Predicated region
        $region111: #{tpu_custom_call.1} parent=109 // pred_check
          %p510 = pneg %p66
        $region112: #{tpu_custom_call.1} parent=109 // pred_check_branch
          %512 = sbr.rel (%p510) target = $region114
        $region113: #{tpu_custom_call.1} parent=109 // pred_region
          _
        $region114: #{tpu_custom_call.1} parent=109 // pred_fallthru
          _
        %s513 = sand.u32 %s81, 1
        %s514 = scalar_lea.sflag [#allocation4], %s513
        %s515 = sand.u32 %s81, 1
        %s516 = smul.addr %s515, 16
        %s517 = scalar_lea.vmem [#allocation3], %s516
        // Predicated region
        $region115: #{tpu_custom_call.1} parent=109 // pred_check
          %p518 = pneg %p94
        $region116: #{tpu_custom_call.1} parent=109 // pred_check_branch
          %520 = sbr.rel (%p518) target = $region118
        $region117: #{tpu_custom_call.1} parent=109 // pred_region
          %521 = dma.done %s514, 256
        $region118: #{tpu_custom_call.1} parent=109 // pred_fallthru
          _
        %s522 = sand.u32 %s53, 1
        %s523 = sand.u32 %s53, 1
        %s524 = smul.addr %s523, 16
        %s525 = scalar_lea.vmem [#allocation2], %s524
        %p526 = pneg %p66
        %p527 = pneg %p63
        %s528 = sand.u32 %s81, 1
        %s529 = scalar_lea.sflag [#allocation4], %s528
        %s530 = sand.u32 %s81, 1
        %s531 = smul.addr %s530, 16
        %s532 = scalar_lea.vmem [#allocation3], %s531
        %p533 = pneg %p94
        %p534 = pneg %p91
        %p535 = pneg %p115
        %p536 = pneg %p112
        %p537 = pneg %p136
        %p538 = pneg %p133
        %p539 = pneg %p157
        %p540 = pneg %p154
        %p541 = pneg %p178
        %p542 = pneg %p175
        %p543 = pneg %p199
        %p544 = pneg %p196
        %p545 = pneg %p220
        %p546 = pneg %p217
        %p547 = pneg %p241
        %p548 = pneg %p238
        %p549 = pneg %p262
        %p550 = pneg %p259
        %p551 = pneg %p283
        %p552 = pneg %p280
        %p553 = pneg %p304
        %p554 = pneg %p301
        %p555 = pneg %p325
        %p556 = pneg %p322
        %p557 = pneg %p346
        %p558 = pneg %p343
        %p559 = pneg %p374
        %p560 = pneg %p371
        %s561 = sand.u32 %s361, 1
        %s562 = scalar_lea.sflag [#allocation5], %s561
        %s563 = sand.u32 %s361, 1
        %s564 = smul.addr %s563, 16
        %s565 = scalar_lea.vmem [#allocation6], %s564
        %s569 = smul.u32 %s36, 128
        %v570 = vld [vmem:[%s517] sm:$0xff]
        %v571 = vld [vmem:[%s517 + $0x8] sm:$0xff]
        %v572 = vld [vmem:[%s509] sm:$0xff]
        %v573 = vld [vmem:[%s509 + $0x8] sm:$0xff]
        %576 = vrot.lane.b32.xlu0 %v572, 12
        %v577 = vpop.permute.xlu0 %576
        %578 = vrot.lane.b32.xlu0 %v573, 12
        %v579 = vpop.permute.xlu0 %578
        %vm582 = vcmask 97280
        %v583 = vsel %vm582, %v570, %v577
        %v584 = vsel %vm582, %v571, %v579
        %v585 = vsel %vm582, %v577, %v570
        %v586 = vsel %vm582, %v579, %v571
        %v587 = vld [vmem:[%s2] sm:$0xf]
        %v588 = vld [vmem:[%s2 + $0x4] sm:$0xf]
        %v589 = vld [vmem:[%s3] sm:$0xff]
        %v590 = vld [vmem:[%s3 + $0x8] sm:$0xff]
        %v591 = vld [vmem:[%s4] sm:$0xf]
        %v592 = vld [vmem:[%s4 + $0x4] sm:$0xf]
        %v593 = vld [vmem:[%s5] sm:$0xff]
        %v594 = vld [vmem:[%s5 + $0x8] sm:$0xff]
        %vm595 = vcmp.ge.f32.partialorder %v583, 0.0
        %vm596 = vcmp.ge.f32.partialorder %v585, 0.0
        %vm597 = vcmp.ge.f32.partialorder %v584, 0.0
        %vm598 = vcmp.ge.f32.partialorder %v586, 0.0
        %v599 = vmul.f32 %v583, 0.2
        %v600 = vmul.f32 %v585, 0.2
        %v601 = vmul.f32 %v584, 0.2
        %v602 = vmul.f32 %v586, 0.2
        %v603 = vsel %vm595, %v583, %v599
        %v604 = vsel %vm596, %v585, %v600
        %v605 = vsel %vm597, %v584, %v601
        %v606 = vsel %vm598, %v586, %v602
        %v607 = vpack.c.bf16 %v605, %v603
        %v608 = vpack.c.bf16 %v606, %v604
        %v609 = vlaneseq
        %v610 = vand.u32 %v609, 127
        %v611 = vadd.s32 %v610, 128
        %s612 = ssub.s32 12, %s569
        %v613 = vstv %s612
        %vm614 = vcmp.ge.s32.totalorder %v610, %v613
        %vm615 = vcmp.ge.s32.totalorder %v611, %v613
        %s616 = ssub.s32 212, %s569
        %v617 = vstv %s616
        %vm618 = vcmp.lt.s32.totalorder %v610, %v617
        %vm619 = vcmp.lt.s32.totalorder %v611, %v617
        %vm620 = vmand %vm614, %vm618
        %vm621 = vmand %vm615, %vm619
        %v622 = vsel %vm620, 1, 0
        %v623 = vsel %vm621, 1, 0
        %vm624 = vcmp.eq.s32.totalorder %v622, 1
        %vm625 = vcmp.eq.s32.totalorder %v623, 1
        %vm626 = vmpackc.low %vm625, %vm624
        %v627 = vsel %vm626, 65537, 0
        %v628 = vlaneseq
        %v629 = vshrl.u32 %v628, 7
        %v630 = vsub.s32 0, %v629
        %v631 = vrot.slane %v627, %v630
        %v632 = vlaneseq
        %v633 = vshrl.u32 %v632, 7
        %v634 = vsub.s32 4, %v633
        %v635 = vrot.slane %v627, %v634
        %vm636 = vcmp.ne.s16.totalorder %v631, 0
        %vm637 = vcmp.ne.s16.totalorder %v635, 0
        %v638 = vsel %vm636, %v607, 0
        %v639 = vsel %vm637, %v608, 0
        %642 = vrot.lane.b32.xlu0 %v638, 127
        %v643 = vpop.permute.xlu0 %642
        %644 = vrot.lane.b32.xlu0 %v639, 127
        %v645 = vpop.permute.xlu0 %644
        %vm646 = vcmask 1039360
        %v647 = vsel %vm646, %v643, %v645
        %650 = vrot.lane.b32.xlu0 %v638, 126
        %v651 = vpop.permute.xlu0 %650
        %652 = vrot.lane.b32.xlu0 %v639, 126
        %v653 = vpop.permute.xlu0 %652
        %vm654 = vcmask 1031168
        %v655 = vsel %vm654, %v651, %v653
        %659 = vset.pattern.permute.xlu0 0
        %660 = vperm.xlu0 %659, %v589
        %v661 = vpop.permute.xlu0 %660
        %664 = vset.pattern.permute.xlu0 0
        %665 = vperm.xlu0 %664, %v590
        %v666 = vpop.permute.xlu0 %665
        %v670 = vunpack.c.l.b16 %v587
        %v671 = vunpack.c.l.b16 %v588
        %v672 = vpack.c.b16 %v671, %v670
        %vm673 = vcmask 392192
        %v675 = vsel %vm673, %v672, 0
        %677 = vmatprep.subr.bf16.mxu0 %v639
        %678 = vmatpush1.bf16.msra.mxu0 %v638
        %679 = vmatprep.subr.bf16.mxu0 %v645
        %680 = vmatpush1.bf16.msra.mxu0 %v647
        %681 = vmatprep.subr.bf16.mxu0 %v653
        %682 = vmatpush1.bf16.msra.mxu0 %v655
        %683 = vmatprep.subr.bf16.mxu0 0
        %684 = vmatpush1.bf16.msra.mxu0 0
        %685 = vmatprep.subr.bf16.mxu0 0
        %686 = vmatpush1.bf16.msra.mxu0 0
        %687 = vmatprep.subr.bf16.mxu0 0
        %688 = vmatpush1.bf16.msra.mxu0 0
        %689 = vmatprep.subr.bf16.mxu0 0
        %690 = vmatpush1.bf16.msra.mxu0 0
        %691 = vmatprep.subr.bf16.mxu0 0
        %692 = vmatpush1.bf16.msra.mxu0 0
        %693 = vmatprep.subr.bf16.mxu0 0
        %694 = vmatpush1.bf16.msra.mxu0 0
        %695 = vmatprep.subr.bf16.mxu0 0
        %696 = vmatpush1.bf16.msra.mxu0 0
        %697 = vmatprep.subr.bf16.mxu0 0
        %698 = vmatpush1.bf16.msra.mxu0 0
        %699 = vmatprep.subr.bf16.mxu0 0
        %700 = vmatpush1.bf16.msra.mxu0 0
        %701 = vmatprep.subr.bf16.mxu0 0
        %702 = vmatpush1.bf16.msra.mxu0 0
        %703 = vmatprep.subr.bf16.mxu0 0
        %704 = vmatpush1.bf16.msra.mxu0 0
        %705 = vmatprep.subr.bf16.mxu0 0
        %706 = vmatpush1.bf16.msra.mxu0 0
        %707 = vmatprep.subr.bf16.mxu0 0
        %708 = vmatpush1.bf16.msra.mxu0 0
        %709 = vmatprep.mubr.bf16.mxu0 0
        %710 = vmatmul.mubr.bf16.gmra.mrb[0].mxu0 %v675
        %v711 = vpop.f32.mrb[0].mxu0
        %v712 = vadd.f32 %v661, %v711
        %v713 = vpop.f32.mrb[0].mxu0
        %v714 = vadd.f32 %v661, %v713
        %v715 = vpop.f32.mrb[0].mxu0
        %v716 = vadd.f32 %v666, %v715
        %v717 = vpop.f32.mrb[0].mxu0
        %v718 = vadd.f32 %v666, %v717
        %719 = vdwg.mxu0
        %vm720 = vcmp.ge.f32.partialorder %v712, 0.0
        %vm721 = vcmp.ge.f32.partialorder %v714, 0.0
        %vm722 = vcmp.ge.f32.partialorder %v716, 0.0
        %vm723 = vcmp.ge.f32.partialorder %v718, 0.0
        %v724 = vmul.f32 %v712, 0.2
        %v725 = vmul.f32 %v714, 0.2
        %v726 = vmul.f32 %v716, 0.2
        %v727 = vmul.f32 %v718, 0.2
        %v728 = vsel %vm720, %v712, %v724
        %v729 = vsel %vm721, %v714, %v725
        %v730 = vsel %vm722, %v716, %v726
        %v731 = vsel %vm723, %v718, %v727
        %v732 = vpack.c.bf16 %v730, %v728
        %v733 = vpack.c.bf16 %v731, %v729
        %s734 = ssub.s32 11, %s569
        %v735 = vstv %s734
        %vm736 = vcmp.ge.s32.totalorder %v610, %v735
        %vm737 = vcmp.ge.s32.totalorder %v611, %v735
        %s738 = ssub.s32 211, %s569
        %v739 = vstv %s738
        %vm740 = vcmp.lt.s32.totalorder %v610, %v739
        %vm741 = vcmp.lt.s32.totalorder %v611, %v739
        %vm742 = vmand %vm736, %vm740
        %vm743 = vmand %vm737, %vm741
        %v744 = vsel %vm742, 1, 0
        %v745 = vsel %vm743, 1, 0
        %vm746 = vcmp.eq.s32.totalorder %v744, 1
        %vm747 = vcmp.eq.s32.totalorder %v745, 1
        %vm748 = vmpackc.low %vm747, %vm746
        %v749 = vsel %vm748, 65537, 0
        %v750 = vlaneseq
        %v751 = vshrl.u32 %v750, 7
        %v752 = vsub.s32 0, %v751
        %v753 = vrot.slane %v749, %v752
        %v754 = vlaneseq
        %v755 = vshrl.u32 %v754, 7
        %v756 = vsub.s32 4, %v755
        %v757 = vrot.slane %v749, %v756
        %vm758 = vcmp.ne.s16.totalorder %v753, 0
        %vm759 = vcmp.ne.s16.totalorder %v757, 0
        %v760 = vsel %vm758, %v732, 0
        %v761 = vsel %vm759, %v733, 0
        %764 = vrot.lane.b32.xlu0 %v760, 127
        %v765 = vpop.permute.xlu0 %764
        %766 = vrot.lane.b32.xlu0 %v761, 127
        %v767 = vpop.permute.xlu0 %766
        %v768 = vsel %vm646, %v765, %v767
        %771 = vrot.lane.b32.xlu0 %v760, 126
        %v772 = vpop.permute.xlu0 %771
        %773 = vrot.lane.b32.xlu0 %v761, 126
        %v774 = vpop.permute.xlu0 %773
        %v775 = vsel %vm654, %v772, %v774
        %779 = vset.pattern.permute.xlu0 0
        %780 = vperm.xlu0 %779, %v593
        %v781 = vpop.permute.xlu0 %780
        %784 = vset.pattern.permute.xlu0 0
        %785 = vperm.xlu0 %784, %v594
        %v786 = vpop.permute.xlu0 %785
        %v790 = vunpack.c.l.b16 %v591
        %v791 = vunpack.c.l.b16 %v592
        %v792 = vpack.c.b16 %v791, %v790
        %v794 = vsel %vm673, %v792, 0
        %796 = vmatprep.subr.bf16.mxu0 %v761
        %797 = vmatpush1.bf16.msra.mxu0 %v760
        %798 = vmatprep.subr.bf16.mxu0 %v767
        %799 = vmatpush1.bf16.msra.mxu0 %v768
        %800 = vmatprep.subr.bf16.mxu0 %v774
        %801 = vmatpush1.bf16.msra.mxu0 %v775
        %802 = vmatprep.subr.bf16.mxu0 0
        %803 = vmatpush1.bf16.msra.mxu0 0
        %804 = vmatprep.subr.bf16.mxu0 0
        %805 = vmatpush1.bf16.msra.mxu0 0
        %806 = vmatprep.subr.bf16.mxu0 0
        %807 = vmatpush1.bf16.msra.mxu0 0
        %808 = vmatprep.subr.bf16.mxu0 0
        %809 = vmatpush1.bf16.msra.mxu0 0
        %810 = vmatprep.subr.bf16.mxu0 0
        %811 = vmatpush1.bf16.msra.mxu0 0
        %812 = vmatprep.subr.bf16.mxu0 0
        %813 = vmatpush1.bf16.msra.mxu0 0
        %814 = vmatprep.subr.bf16.mxu0 0
        %815 = vmatpush1.bf16.msra.mxu0 0
        %816 = vmatprep.subr.bf16.mxu0 0
        %817 = vmatpush1.bf16.msra.mxu0 0
        %818 = vmatprep.subr.bf16.mxu0 0
        %819 = vmatpush1.bf16.msra.mxu0 0
        %820 = vmatprep.subr.bf16.mxu0 0
        %821 = vmatpush1.bf16.msra.mxu0 0
        %822 = vmatprep.subr.bf16.mxu0 0
        %823 = vmatpush1.bf16.msra.mxu0 0
        %824 = vmatprep.subr.bf16.mxu0 0
        %825 = vmatpush1.bf16.msra.mxu0 0
        %826 = vmatprep.subr.bf16.mxu0 0
        %827 = vmatpush1.bf16.msra.mxu0 0
        %828 = vmatprep.mubr.bf16.mxu0 0
        %829 = vmatmul.mubr.bf16.gmra.mrb[0].mxu0 %v794
        %v830 = vpop.f32.mrb[0].mxu0
        %v831 = vadd.f32 %v781, %v830
        %v832 = vpop.f32.mrb[0].mxu0
        %v833 = vadd.f32 %v781, %v832
        %v834 = vpop.f32.mrb[0].mxu0
        %v835 = vadd.f32 %v786, %v834
        %v836 = vpop.f32.mrb[0].mxu0
        %v837 = vadd.f32 %v786, %v836
        %838 = vdwg.mxu0
        %843 = vrot.lane.b32.xlu0 %v583, 126
        %v844 = vpop.permute.xlu0 %843
        %845 = vrot.lane.b32.xlu0 %v585, 126
        %v846 = vpop.permute.xlu0 %845
        %847 = vrot.lane.b32.xlu0 %v584, 126
        %v848 = vpop.permute.xlu0 %847
        %849 = vrot.lane.b32.xlu0 %v586, 126
        %v850 = vpop.permute.xlu0 %849
        %vm851 = vcmask 1031168
        %v852 = vsel %vm851, %v844, %v846
        %v853 = vsel %vm851, %v848, %v850
        %v858 = vadd.f32 %v831, %v852
        %v859 = vadd.f32 %v833, %v846
        %v860 = vadd.f32 %v835, %v853
        %v861 = vadd.f32 %v837, %v850
        %v862 = vld [vmem:[%s6] sm:$0xf]
        %v863 = vld [vmem:[%s6 + $0x4] sm:$0xf]
        %v864 = vld [vmem:[%s7] sm:$0xff]
        %v865 = vld [vmem:[%s7 + $0x8] sm:$0xff]
        %v866 = vld [vmem:[%s8] sm:$0xf]
        %v867 = vld [vmem:[%s8 + $0x4] sm:$0xf]
        %v868 = vld [vmem:[%s9] sm:$0xff]
        %v869 = vld [vmem:[%s9 + $0x8] sm:$0xff]
        %vm870 = vcmp.ge.f32.partialorder %v858, 0.0
        %vm871 = vcmp.ge.f32.partialorder %v859, 0.0
        %vm872 = vcmp.ge.f32.partialorder %v860, 0.0
        %vm873 = vcmp.ge.f32.partialorder %v861, 0.0
        %v874 = vmul.f32 %v858, 0.2
        %v875 = vmul.f32 %v859, 0.2
        %v876 = vmul.f32 %v860, 0.2
        %v877 = vmul.f32 %v861, 0.2
        %v878 = vsel %vm870, %v858, %v874
        %v879 = vsel %vm871, %v859, %v875
        %v880 = vsel %vm872, %v860, %v876
        %v881 = vsel %vm873, %v861, %v877
        %v882 = vpack.c.bf16 %v880, %v878
        %v883 = vpack.c.bf16 %v881, %v879
        %s884 = ssub.s32 10, %s569
        %v885 = vstv %s884
        %vm886 = vcmp.ge.s32.totalorder %v610, %v885
        %vm887 = vcmp.ge.s32.totalorder %v611, %v885
        %s888 = ssub.s32 210, %s569
        %v889 = vstv %s888
        %vm890 = vcmp.lt.s32.totalorder %v610, %v889
        %vm891 = vcmp.lt.s32.totalorder %v611, %v889
        %vm892 = vmand %vm886, %vm890
        %vm893 = vmand %vm887, %vm891
        %v894 = vsel %vm892, 1, 0
        %v895 = vsel %vm893, 1, 0
        %vm896 = vcmp.eq.s32.totalorder %v894, 1
        %vm897 = vcmp.eq.s32.totalorder %v895, 1
        %vm898 = vmpackc.low %vm897, %vm896
        %v899 = vsel %vm898, 65537, 0
        %v900 = vlaneseq
        %v901 = vshrl.u32 %v900, 7
        %v902 = vsub.s32 0, %v901
        %v903 = vrot.slane %v899, %v902
        %v904 = vlaneseq
        %v905 = vshrl.u32 %v904, 7
        %v906 = vsub.s32 4, %v905
        %v907 = vrot.slane %v899, %v906
        %vm908 = vcmp.ne.s16.totalorder %v903, 0
        %vm909 = vcmp.ne.s16.totalorder %v907, 0
        %v910 = vsel %vm908, %v882, 0
        %v911 = vsel %vm909, %v883, 0
        %914 = vrot.lane.b32.xlu0 %v910, 125
        %v915 = vpop.permute.xlu0 %914
        %916 = vrot.lane.b32.xlu0 %v911, 125
        %v917 = vpop.permute.xlu0 %916
        %vm918 = vcmask 1022976
        %v919 = vsel %vm918, %v915, %v917
        %922 = vrot.lane.b32.xlu0 %v910, 122
        %v923 = vpop.permute.xlu0 %922
        %924 = vrot.lane.b32.xlu0 %v911, 122
        %v925 = vpop.permute.xlu0 %924
        %vm926 = vcmask 998400
        %v927 = vsel %vm926, %v923, %v925
        %931 = vset.pattern.permute.xlu0 0
        %932 = vperm.xlu0 %931, %v864
        %v933 = vpop.permute.xlu0 %932
        %936 = vset.pattern.permute.xlu0 0
        %937 = vperm.xlu0 %936, %v865
        %v938 = vpop.permute.xlu0 %937
        %v942 = vunpack.c.l.b16 %v862
        %v943 = vunpack.c.l.b16 %v863
        %v944 = vpack.c.b16 %v943, %v942
        %v946 = vsel %vm673, %v944, 0
        %948 = vmatprep.subr.bf16.mxu0 %v911
        %949 = vmatpush1.bf16.msra.mxu0 %v910
        %950 = vmatprep.subr.bf16.mxu0 %v917
        %951 = vmatpush1.bf16.msra.mxu0 %v919
        %952 = vmatprep.subr.bf16.mxu0 %v925
        %953 = vmatpush1.bf16.msra.mxu0 %v927
        %954 = vmatprep.subr.bf16.mxu0 0
        %955 = vmatpush1.bf16.msra.mxu0 0
        %956 = vmatprep.subr.bf16.mxu0 0
        %957 = vmatpush1.bf16.msra.mxu0 0
        %958 = vmatprep.subr.bf16.mxu0 0
        %959 = vmatpush1.bf16.msra.mxu0 0
        %960 = vmatprep.subr.bf16.mxu0 0
        %961 = vmatpush1.bf16.msra.mxu0 0
        %962 = vmatprep.subr.bf16.mxu0 0
        %963 = vmatpush1.bf16.msra.mxu0 0
        %964 = vmatprep.subr.bf16.mxu0 0
        %965 = vmatpush1.bf16.msra.mxu0 0
        %966 = vmatprep.subr.bf16.mxu0 0
        %967 = vmatpush1.bf16.msra.mxu0 0
        %968 = vmatprep.subr.bf16.mxu0 0
        %969 = vmatpush1.bf16.msra.mxu0 0
        %970 = vmatprep.subr.bf16.mxu0 0
        %971 = vmatpush1.bf16.msra.mxu0 0
        %972 = vmatprep.subr.bf16.mxu0 0
        %973 = vmatpush1.bf16.msra.mxu0 0
        %974 = vmatprep.subr.bf16.mxu0 0
        %975 = vmatpush1.bf16.msra.mxu0 0
        %976 = vmatprep.subr.bf16.mxu0 0
        %977 = vmatpush1.bf16.msra.mxu0 0
        %978 = vmatprep.subr.bf16.mxu0 0
        %979 = vmatpush1.bf16.msra.mxu0 0
        %980 = vmatprep.mubr.bf16.mxu0 0
        %981 = vmatmul.mubr.bf16.gmra.mrb[0].mxu0 %v946
        %v982 = vpop.f32.mrb[0].mxu0
        %v983 = vadd.f32 %v933, %v982
        %v984 = vpop.f32.mrb[0].mxu0
        %v985 = vadd.f32 %v933, %v984
        %v986 = vpop.f32.mrb[0].mxu0
        %v987 = vadd.f32 %v938, %v986
        %v988 = vpop.f32.mrb[0].mxu0
        %v989 = vadd.f32 %v938, %v988
        %990 = vdwg.mxu0
        %vm991 = vcmp.ge.f32.partialorder %v983, 0.0
        %vm992 = vcmp.ge.f32.partialorder %v985, 0.0
        %vm993 = vcmp.ge.f32.partialorder %v987, 0.0
        %vm994 = vcmp.ge.f32.partialorder %v989, 0.0
        %v995 = vmul.f32 %v983, 0.2
        %v996 = vmul.f32 %v985, 0.2
        %v997 = vmul.f32 %v987, 0.2
        %v998 = vmul.f32 %v989, 0.2
        %v999 = vsel %vm991, %v983, %v995
        %v1000 = vsel %vm992, %v985, %v996
        %v1001 = vsel %vm993, %v987, %v997
        %v1002 = vsel %vm994, %v989, %v998
        %v1003 = vpack.c.bf16 %v1001, %v999
        %v1004 = vpack.c.bf16 %v1002, %v1000
        %s1005 = ssub.s32 7, %s569
        %v1006 = vstv %s1005
        %vm1007 = vcmp.ge.s32.totalorder %v610, %v1006
        %vm1008 = vcmp.ge.s32.totalorder %v611, %v1006
        %s1009 = ssub.s32 207, %s569
        %v1010 = vstv %s1009
        %vm1011 = vcmp.lt.s32.totalorder %v610, %v1010
        %vm1012 = vcmp.lt.s32.totalorder %v611, %v1010
        %vm1013 = vmand %vm1007, %vm1011
        %vm1014 = vmand %vm1008, %vm1012
        %v1015 = vsel %vm1013, 1, 0
        %v1016 = vsel %vm1014, 1, 0
        %vm1017 = vcmp.eq.s32.totalorder %v1015, 1
        %vm1018 = vcmp.eq.s32.totalorder %v1016, 1
        %vm1019 = vmpackc.low %vm1018, %vm1017
        %v1020 = vsel %vm1019, 65537, 0
        %v1021 = vlaneseq
        %v1022 = vshrl.u32 %v1021, 7
        %v1023 = vsub.s32 0, %v1022
        %v1024 = vrot.slane %v1020, %v1023
        %v1025 = vlaneseq
        %v1026 = vshrl.u32 %v1025, 7
        %v1027 = vsub.s32 4, %v1026
        %v1028 = vrot.slane %v1020, %v1027
        %vm1029 = vcmp.ne.s16.totalorder %v1024, 0
        %vm1030 = vcmp.ne.s16.totalorder %v1028, 0
        %v1031 = vsel %vm1029, %v1003, 0
        %v1032 = vsel %vm1030, %v1004, 0
        %1035 = vrot.lane.b32.xlu0 %v1031, 127
        %v1036 = vpop.permute.xlu0 %1035
        %1037 = vrot.lane.b32.xlu0 %v1032, 127
        %v1038 = vpop.permute.xlu0 %1037
        %v1039 = vsel %vm646, %v1036, %v1038
        %1042 = vrot.lane.b32.xlu0 %v1031, 126
        %v1043 = vpop.permute.xlu0 %1042
        %1044 = vrot.lane.b32.xlu0 %v1032, 126
        %v1045 = vpop.permute.xlu0 %1044
        %v1046 = vsel %vm654, %v1043, %v1045
        %1050 = vset.pattern.permute.xlu0 0
        %1051 = vperm.xlu0 %1050, %v868
        %v1052 = vpop.permute.xlu0 %1051
        %1055 = vset.pattern.permute.xlu0 0
        %1056 = vperm.xlu0 %1055, %v869
        %v1057 = vpop.permute.xlu0 %1056
        %v1061 = vunpack.c.l.b16 %v866
        %v1062 = vunpack.c.l.b16 %v867
        %v1063 = vpack.c.b16 %v1062, %v1061
        %v1065 = vsel %vm673, %v1063, 0
        %1067 = vmatprep.subr.bf16.mxu0 %v1032
        %1068 = vmatpush1.bf16.msra.mxu0 %v1031
        %1069 = vmatprep.subr.bf16.mxu0 %v1038
        %1070 = vmatpush1.bf16.msra.mxu0 %v1039
        %1071 = vmatprep.subr.bf16.mxu0 %v1045
        %1072 = vmatpush1.bf16.msra.mxu0 %v1046
        %1073 = vmatprep.subr.bf16.mxu0 0
        %1074 = vmatpush1.bf16.msra.mxu0 0
        %1075 = vmatprep.subr.bf16.mxu0 0
        %1076 = vmatpush1.bf16.msra.mxu0 0
        %1077 = vmatprep.subr.bf16.mxu0 0
        %1078 = vmatpush1.bf16.msra.mxu0 0
        %1079 = vmatprep.subr.bf16.mxu0 0
        %1080 = vmatpush1.bf16.msra.mxu0 0
        %1081 = vmatprep.subr.bf16.mxu0 0
        %1082 = vmatpush1.bf16.msra.mxu0 0
        %1083 = vmatprep.subr.bf16.mxu0 0
        %1084 = vmatpush1.bf16.msra.mxu0 0
        %1085 = vmatprep.subr.bf16.mxu0 0
        %1086 = vmatpush1.bf16.msra.mxu0 0
        %1087 = vmatprep.subr.bf16.mxu0 0
        %1088 = vmatpush1.bf16.msra.mxu0 0
        %1089 = vmatprep.subr.bf16.mxu0 0
        %1090 = vmatpush1.bf16.msra.mxu0 0
        %1091 = vmatprep.subr.bf16.mxu0 0
        %1092 = vmatpush1.bf16.msra.mxu0 0
        %1093 = vmatprep.subr.bf16.mxu0 0
        %1094 = vmatpush1.bf16.msra.mxu0 0
        %1095 = vmatprep.subr.bf16.mxu0 0
        %1096 = vmatpush1.bf16.msra.mxu0 0
        %1097 = vmatprep.subr.bf16.mxu0 0
        %1098 = vmatpush1.bf16.msra.mxu0 0
        %1099 = vmatprep.mubr.bf16.mxu0 0
        %1100 = vmatmul.mubr.bf16.gmra.mrb[0].mxu0 %v1065
        %v1101 = vpop.f32.mrb[0].mxu0
        %v1102 = vadd.f32 %v1052, %v1101
        %v1103 = vpop.f32.mrb[0].mxu0
        %v1104 = vadd.f32 %v1052, %v1103
        %v1105 = vpop.f32.mrb[0].mxu0
        %v1106 = vadd.f32 %v1057, %v1105
        %v1107 = vpop.f32.mrb[0].mxu0
        %v1108 = vadd.f32 %v1057, %v1107
        %1109 = vdwg.mxu0
        %1114 = vrot.lane.b32.xlu0 %v858, 124
        %v1115 = vpop.permute.xlu0 %1114
        %1116 = vrot.lane.b32.xlu0 %v859, 124
        %v1117 = vpop.permute.xlu0 %1116
        %1118 = vrot.lane.b32.xlu0 %v860, 124
        %v1119 = vpop.permute.xlu0 %1118
        %1120 = vrot.lane.b32.xlu0 %v861, 124
        %v1121 = vpop.permute.xlu0 %1120
        %vm1122 = vcmask 1014784
        %v1123 = vsel %vm1122, %v1115, %v1117
        %v1124 = vsel %vm1122, %v1119, %v1121
        %v1129 = vadd.f32 %v1102, %v1123
        %v1130 = vadd.f32 %v1104, %v1117
        %v1131 = vadd.f32 %v1106, %v1124
        %v1132 = vadd.f32 %v1108, %v1121
        %v1133 = vld [vmem:[%s10] sm:$0xf]
        %v1134 = vld [vmem:[%s10 + $0x4] sm:$0xf]
        %v1135 = vld [vmem:[%s11] sm:$0xff]
        %v1136 = vld [vmem:[%s11 + $0x8] sm:$0xff]
        %v1137 = vld [vmem:[%s12] sm:$0xf]
        %v1138 = vld [vmem:[%s12 + $0x4] sm:$0xf]
        %v1139 = vld [vmem:[%s13] sm:$0xff]
        %v1140 = vld [vmem:[%s13 + $0x8] sm:$0xff]
        %vm1141 = vcmp.ge.f32.partialorder %v1129, 0.0
        %vm1142 = vcmp.ge.f32.partialorder %v1130, 0.0
        %vm1143 = vcmp.ge.f32.partialorder %v1131, 0.0
        %vm1144 = vcmp.ge.f32.partialorder %v1132, 0.0
        %v1145 = vmul.f32 %v1129, 0.2
        %v1146 = vmul.f32 %v1130, 0.2
        %v1147 = vmul.f32 %v1131, 0.2
        %v1148 = vmul.f32 %v1132, 0.2
        %v1149 = vsel %vm1141, %v1129, %v1145
        %v1150 = vsel %vm1142, %v1130, %v1146
        %v1151 = vsel %vm1143, %v1131, %v1147
        %v1152 = vsel %vm1144, %v1132, %v1148
        %v1153 = vpack.c.bf16 %v1151, %v1149
        %v1154 = vpack.c.bf16 %v1152, %v1150
        %s1155 = ssub.s32 6, %s569
        %v1156 = vstv %s1155
        %vm1157 = vcmp.ge.s32.totalorder %v610, %v1156
        %vm1158 = vcmp.ge.s32.totalorder %v611, %v1156
        %s1159 = ssub.s32 206, %s569
        %v1160 = vstv %s1159
        %vm1161 = vcmp.lt.s32.totalorder %v610, %v1160
        %vm1162 = vcmp.lt.s32.totalorder %v611, %v1160
        %vm1163 = vmand %vm1157, %vm1161
        %vm1164 = vmand %vm1158, %vm1162
        %v1165 = vsel %vm1163, 1, 0
        %v1166 = vsel %vm1164, 1, 0
        %vm1167 = vcmp.eq.s32.totalorder %v1165, 1
        %vm1168 = vcmp.eq.s32.totalorder %v1166, 1
        %vm1169 = vmpackc.low %vm1168, %vm1167
        %v1170 = vsel %vm1169, 65537, 0
        %v1171 = vlaneseq
        %v1172 = vshrl.u32 %v1171, 7
        %v1173 = vsub.s32 0, %v1172
        %v1174 = vrot.slane %v1170, %v1173
        %v1175 = vlaneseq
        %v1176 = vshrl.u32 %v1175, 7
        %v1177 = vsub.s32 4, %v1176
        %v1178 = vrot.slane %v1170, %v1177
        %vm1179 = vcmp.ne.s16.totalorder %v1174, 0
        %vm1180 = vcmp.ne.s16.totalorder %v1178, 0
        %v1181 = vsel %vm1179, %v1153, 0
        %v1182 = vsel %vm1180, %v1154, 0
        %1185 = vrot.lane.b32.xlu0 %v1181, 123
        %v1186 = vpop.permute.xlu0 %1185
        %1187 = vrot.lane.b32.xlu0 %v1182, 123
        %v1188 = vpop.permute.xlu0 %1187
        %vm1189 = vcmask 1006592
        %v1190 = vsel %vm1189, %v1186, %v1188
        %1193 = vrot.lane.b32.xlu0 %v1181, 118
        %v1194 = vpop.permute.xlu0 %1193
        %1195 = vrot.lane.b32.xlu0 %v1182, 118
        %v1196 = vpop.permute.xlu0 %1195
        %vm1197 = vcmask 965632
        %v1198 = vsel %vm1197, %v1194, %v1196
        %1202 = vset.pattern.permute.xlu0 0
        %1203 = vperm.xlu0 %1202, %v1135
        %v1204 = vpop.permute.xlu0 %1203
        %1207 = vset.pattern.permute.xlu0 0
        %1208 = vperm.xlu0 %1207, %v1136
        %v1209 = vpop.permute.xlu0 %1208
        %v1213 = vunpack.c.l.b16 %v1133
        %v1214 = vunpack.c.l.b16 %v1134
        %v1215 = vpack.c.b16 %v1214, %v1213
        %v1217 = vsel %vm673, %v1215, 0
        %1219 = vmatprep.subr.bf16.mxu0 %v1182
        %1220 = vmatpush1.bf16.msra.mxu0 %v1181
        %1221 = vmatprep.subr.bf16.mxu0 %v1188
        %1222 = vmatpush1.bf16.msra.mxu0 %v1190
        %1223 = vmatprep.subr.bf16.mxu0 %v1196
        %1224 = vmatpush1.bf16.msra.mxu0 %v1198
        %1225 = vmatprep.subr.bf16.mxu0 0
        %1226 = vmatpush1.bf16.msra.mxu0 0
        %1227 = vmatprep.subr.bf16.mxu0 0
        %1228 = vmatpush1.bf16.msra.mxu0 0
        %1229 = vmatprep.subr.bf16.mxu0 0
        %1230 = vmatpush1.bf16.msra.mxu0 0
        %1231 = vmatprep.subr.bf16.mxu0 0
        %1232 = vmatpush1.bf16.msra.mxu0 0
        %1233 = vmatprep.subr.bf16.mxu0 0
        %1234 = vmatpush1.bf16.msra.mxu0 0
        %1235 = vmatprep.subr.bf16.mxu0 0
        %1236 = vmatpush1.bf16.msra.mxu0 0
        %1237 = vmatprep.subr.bf16.mxu0 0
        %1238 = vmatpush1.bf16.msra.mxu0 0
        %1239 = vmatprep.subr.bf16.mxu0 0
        %1240 = vmatpush1.bf16.msra.mxu0 0
        %1241 = vmatprep.subr.bf16.mxu0 0
        %1242 = vmatpush1.bf16.msra.mxu0 0
        %1243 = vmatprep.subr.bf16.mxu0 0
        %1244 = vmatpush1.bf16.msra.mxu0 0
        %1245 = vmatprep.subr.bf16.mxu0 0
        %1246 = vmatpush1.bf16.msra.mxu0 0
        %1247 = vmatprep.subr.bf16.mxu0 0
        %1248 = vmatpush1.bf16.msra.mxu0 0
        %1249 = vmatprep.subr.bf16.mxu0 0
        %1250 = vmatpush1.bf16.msra.mxu0 0
        %1251 = vmatprep.mubr.bf16.mxu0 0
        %1252 = vmatmul.mubr.bf16.gmra.mrb[0].mxu0 %v1217
        %v1253 = vpop.f32.mrb[0].mxu0
        %v1254 = vadd.f32 %v1204, %v1253
        %v1255 = vpop.f32.mrb[0].mxu0
        %v1256 = vadd.f32 %v1204, %v1255
        %v1257 = vpop.f32.mrb[0].mxu0
        %v1258 = vadd.f32 %v1209, %v1257
        %v1259 = vpop.f32.mrb[0].mxu0
        %v1260 = vadd.f32 %v1209, %v1259
        %1261 = vdwg.mxu0
        %vm1262 = vcmp.ge.f32.partialorder %v1254, 0.0
        %vm1263 = vcmp.ge.f32.partialorder %v1256, 0.0
        %vm1264 = vcmp.ge.f32.partialorder %v1258, 0.0
        %vm1265 = vcmp.ge.f32.partialorder %v1260, 0.0
        %v1266 = vmul.f32 %v1254, 0.2
        %v1267 = vmul.f32 %v1256, 0.2
        %v1268 = vmul.f32 %v1258, 0.2
        %v1269 = vmul.f32 %v1260, 0.2
        %v1270 = vsel %vm1262, %v1254, %v1266
        %v1271 = vsel %vm1263, %v1256, %v1267
        %v1272 = vsel %vm1264, %v1258, %v1268
        %v1273 = vsel %vm1265, %v1260, %v1269
        %v1274 = vpack.c.bf16 %v1272, %v1270
        %v1275 = vpack.c.bf16 %v1273, %v1271
        %s1276 = ssub.s32 1, %s569
        %v1277 = vstv %s1276
        %vm1278 = vcmp.ge.s32.totalorder %v610, %v1277
        %vm1279 = vcmp.ge.s32.totalorder %v611, %v1277
        %s1280 = ssub.s32 201, %s569
        %v1281 = vstv %s1280
        %vm1282 = vcmp.lt.s32.totalorder %v610, %v1281
        %vm1283 = vcmp.lt.s32.totalorder %v611, %v1281
        %vm1284 = vmand %vm1278, %vm1282
        %vm1285 = vmand %vm1279, %vm1283
        %v1286 = vsel %vm1284, 1, 0
        %v1287 = vsel %vm1285, 1, 0
        %vm1288 = vcmp.eq.s32.totalorder %v1286, 1
        %vm1289 = vcmp.eq.s32.totalorder %v1287, 1
        %vm1290 = vmpackc.low %vm1289, %vm1288
        %v1291 = vsel %vm1290, 65537, 0
        %v1292 = vlaneseq
        %v1293 = vshrl.u32 %v1292, 7
        %v1294 = vsub.s32 0, %v1293
        %v1295 = vrot.slane %v1291, %v1294
        %v1296 = vlaneseq
        %v1297 = vshrl.u32 %v1296, 7
        %v1298 = vsub.s32 4, %v1297
        %v1299 = vrot.slane %v1291, %v1298
        %vm1300 = vcmp.ne.s16.totalorder %v1295, 0
        %vm1301 = vcmp.ne.s16.totalorder %v1299, 0
        %v1302 = vsel %vm1300, %v1274, 0
        %v1303 = vsel %vm1301, %v1275, 0
        %1306 = vrot.lane.b32.xlu0 %v1302, 127
        %v1307 = vpop.permute.xlu0 %1306
        %1308 = vrot.lane.b32.xlu0 %v1303, 127
        %v1309 = vpop.permute.xlu0 %1308
        %v1310 = vsel %vm646, %v1307, %v1309
        %1312 = vrot.lane.b32.xlu0 %v1302, 126
        %v1313 = vpop.permute.xlu0 %1312
        %1314 = vrot.lane.b32.xlu0 %v1303, 126
        %v1315 = vpop.permute.xlu0 %1314
        %v1316 = vsel %vm654, %v1313, %v1315
        %1319 = vset.pattern.permute.xlu0 0
        %1320 = vperm.xlu0 %1319, %v1139
        %v1321 = vpop.permute.xlu0 %1320
        %1324 = vset.pattern.permute.xlu0 0
        %1325 = vperm.xlu0 %1324, %v1140
        %v1326 = vpop.permute.xlu0 %1325
        %v1330 = vunpack.c.l.b16 %v1137
        %v1331 = vunpack.c.l.b16 %v1138
        %v1332 = vpack.c.b16 %v1331, %v1330
        %v1334 = vsel %vm673, %v1332, 0
        %1336 = vmatprep.subr.bf16.mxu0 0
        %1337 = vmatpush1.bf16.msra.mxu0 %v1302
        %1338 = vmatprep.subr.bf16.mxu0 0
        %1339 = vmatpush1.bf16.msra.mxu0 %v1310
        %1340 = vmatprep.subr.bf16.mxu0 0
        %1341 = vmatpush1.bf16.msra.mxu0 %v1316
        %1342 = vmatprep.subr.bf16.mxu0 0
        %1343 = vmatpush1.bf16.msra.mxu0 0
        %1344 = vmatprep.subr.bf16.mxu0 0
        %1345 = vmatpush1.bf16.msra.mxu0 0
        %1346 = vmatprep.subr.bf16.mxu0 0
        %1347 = vmatpush1.bf16.msra.mxu0 0
        %1348 = vmatprep.subr.bf16.mxu0 0
        %1349 = vmatpush1.bf16.msra.mxu0 0
        %1350 = vmatprep.subr.bf16.mxu0 0
        %1351 = vmatpush1.bf16.msra.mxu0 0
        %1352 = vmatprep.subr.bf16.mxu0 0
        %1353 = vmatpush1.bf16.msra.mxu0 0
        %1354 = vmatprep.subr.bf16.mxu0 0
        %1355 = vmatpush1.bf16.msra.mxu0 0
        %1356 = vmatprep.subr.bf16.mxu0 0
        %1357 = vmatpush1.bf16.msra.mxu0 0
        %1358 = vmatprep.subr.bf16.mxu0 0
        %1359 = vmatpush1.bf16.msra.mxu0 0
        %1360 = vmatprep.subr.bf16.mxu0 0
        %1361 = vmatpush1.bf16.msra.mxu0 0
        %1362 = vmatprep.subr.bf16.mxu0 0
        %1363 = vmatpush1.bf16.msra.mxu0 0
        %1364 = vmatprep.subr.bf16.mxu0 0
        %1365 = vmatpush1.bf16.msra.mxu0 0
        %1366 = vmatprep.subr.bf16.mxu0 0
        %1367 = vmatpush1.bf16.msra.mxu0 0
        %1368 = vmatprep.mubr.bf16.mxu0 0
        %1369 = vmatmul.mubr.bf16.gmra.mrb[0].mxu0 %v1334
        %v1370 = vpop.f32.mrb[0].mxu0
        %v1371 = vadd.f32 %v1321, %v1370
        %v1372 = vpop.f32.mrb[0].mxu0
        %v1373 = vpop.f32.mrb[0].mxu0
        %v1374 = vadd.f32 %v1326, %v1373
        %v1375 = vpop.f32.mrb[0].mxu0
        %1376 = vdwg.mxu0
        %1381 = vrot.lane.b32.xlu0 %v1129, 122
        %v1382 = vpop.permute.xlu0 %1381
        %1383 = vrot.lane.b32.xlu0 %v1130, 122
        %v1384 = vpop.permute.xlu0 %1383
        %1385 = vrot.lane.b32.xlu0 %v1131, 122
        %v1386 = vpop.permute.xlu0 %1385
        %1387 = vrot.lane.b32.xlu0 %v1132, 122
        %v1388 = vpop.permute.xlu0 %1387
        %vm1389 = vcmask 998400
        %v1390 = vsel %vm1389, %v1382, %v1384
        %v1391 = vsel %vm1389, %v1386, %v1388
        %v1394 = vadd.f32 %v1371, %v1390
        %v1395 = vadd.f32 %v1374, %v1391
        %1396 = vst [vmem:[%s565] sm:$0xff] %v1394
        %1397 = vst [vmem:[%s565 + $0x8] sm:$0xff] %v1395
        %s1398 = sand.u32 %s361, 1
        %s1399 = scalar_lea.sflag [#allocation5], %s1398
        %s1400 = sand.u32 %s361, 1
        %s1401 = smul.addr %s1400, 16
        %s1402 = scalar_lea.vmem [#allocation6], %s1401
        // Predicated region
        $region119: #{tpu_custom_call.1} parent=109 // pred_check
          %p1403 = pneg %p371
        $region120: #{tpu_custom_call.1} parent=109 // pred_check_branch
          %1405 = sbr.rel (%p1403) target = $region122
        $region121: #{tpu_custom_call.1} parent=109 // pred_region
          %s1407 = ssub.s32 256, 256
          %1408 = vsyncadd %s1399, %s1407
          %s1409 = smul.addr %s35, 4
          %s1410 = sadd.s32 %s36, %s1409
          %s1411 = smul.addr %s1410, 128
          %s1412 = scalar_lea.hbm %s14, %s1411
          %s1413 = sshll.u32 %s1402, 4
          %s1414 = int_to_ptr.vmem [resolvable:$true] %s1413
          %1419 = dma.vmem_to_hbm [thread:$0]  %s1414, 256, %s1412, %s1399, 128, 256, 8
        $region122: #{tpu_custom_call.1} parent=109 // pred_fallthru
          _
      $region110: #{tpu_custom_call.1} parent=5 // pred_fallthru
        _
      %p1420 = scmp.le.s32.totalorder 2, %s26
      // Predicated region
      $region123: #{tpu_custom_call.1} parent=5 // pred_check
        %p1421 = pneg %p1420
      $region124: #{tpu_custom_call.1} parent=5 // pred_check_branch
        %1423 = sbr.rel (%p1421) target = $region126
      $region125: #{tpu_custom_call.1} parent=5 // pred_region
        %s1424 = ssub.s32 %s26, 2
        // Predicated region
        $region127: #{tpu_custom_call.1} parent=125 // pred_check
          %p1425 = pneg %p377
        $region128: #{tpu_custom_call.1} parent=125 // pred_check_branch
          %1427 = sbr.rel (%p1425) target = $region130
        $region129: #{tpu_custom_call.1} parent=125 // pred_region
          %s1428 = sand.u32 %s362, 1
          %s1429 = scalar_lea.sflag [#allocation5], %s1428
          %s1430 = sand.u32 %s362, 1
          %s1431 = smul.addr %s1430, 16
          %s1432 = scalar_lea.vmem [#allocation6], %s1431
          %1433 = dma.done %s1429, 256
        $region130: #{tpu_custom_call.1} parent=125 // pred_fallthru
          _
      $region126: #{tpu_custom_call.1} parent=5 // pred_fallthru
        _
    $region6: #{tpu_custom_call.1} parent=1 // loop_footer
      %s30 = sadd.s32 1, %s26
    $region7: #{tpu_custom_call.1} parent=1 // loop_footer_branch
      %25 = sbr.rel target = $region3
    $region8: #{tpu_custom_call.1} parent=1 // loop_exit
      _
    %1434 = vsyncpa [#allocation4], 1
    %s1435 = scalar_lea.sflag [#allocation4], 1
    %1436 = vsyncpa %s1435, 1
    %1437 = vsyncpa [#allocation5], 1
    %s1438 = scalar_lea.sflag [#allocation5], 1
    %1439 = vsyncpa %s1438, 1

// kernel: tpu_custom_call.1
$region0: #{tpu_custom_call.1}
  #allocation0 [shape = 'u32[]', space=smem, size = 0x4, offset = 0x4, fixed_abs, tag = 'smem constant byte address 0x4 - core index']
  #allocation1 [shape = 'u32[144,128]{1,0:T(1,128)}', space=vmem, size = 0x12000, scoped, tag = 'internal scratch']
  %s0 = inlined_call_operand.vmem [shape: f32[2,16,200], index: 0, kind: input, shape index: {}]
  %s1 = inlined_call_operand.hbm [shape: f32[2,2,16,24], index: 1, kind: input, shape index: {}]
  %s2 = inlined_call_operand.vmem [shape: bf16[16,48], index: 2, kind: input, shape index: {}]
  %s3 = inlined_call_operand.vmem [shape: f32[16,1], index: 3, kind: input, shape index: {}]
  %s4 = inlined_call_operand.vmem [shape: bf16[16,48], index: 4, kind: input, shape index: {}]
  %s5 = inlined_call_operand.vmem [shape: f32[16,1], index: 5, kind: input, shape index: {}]
  %s6 = inlined_call_operand.vmem [shape: bf16[16,48], index: 6, kind: input, shape index: {}]
  %s7 = inlined_call_operand.vmem [shape: f32[16,1], index: 7, kind: input, shape index: {}]
  %s8 = inlined_call_operand.vmem [shape: bf16[16,48], index: 8, kind: input, shape index: {}]
  %s9 = inlined_call_operand.vmem [shape: f32[16,1], index: 9, kind: input, shape index: {}]
  %s10 = inlined_call_operand.vmem [shape: bf16[16,48], index: 10, kind: input, shape index: {}]
  %s11 = inlined_call_operand.vmem [shape: f32[16,1], index: 11, kind: input, shape index: {}]
  %s12 = inlined_call_operand.vmem [shape: bf16[16,48], index: 12, kind: input, shape index: {}]
  %s13 = inlined_call_operand.vmem [shape: f32[16,1], index: 13, kind: input, shape index: {}]
  %s14 = inlined_call_operand.hbm [shape: f32[2,16,200], index: 14, kind: output, shape index: {}]
  %s15 = sld [smem:[#allocation0]]
  $region131: #{tpu_custom_call.1} parent=0
    _
  %s17 = ssub.s32 1, %s15
  %s18 = scalar_select 0, %s17, %s15
  $region1: #{tpu_custom_call.1} parent=0
    #allocation2 [shape = 'u8[16384]{0}', space=vmem, size = 0x4000, scoped, tag = 'input window, operand 0']
    #allocation3 [shape = 'u8[16384]{0}', space=vmem, size = 0x4000, scoped, tag = 'input window, operand 1']
    #allocation4 [shape = 's32[2]{0}', space=sflag, size = 0x8, scoped, tag = 'scoped memory for tpu_custom_call.1']
    #allocation5 [shape = 's32[2]{0}', space=sflag, size = 0x8, scoped, tag = 'scoped memory for tpu_custom_call.1']
    #allocation6 [shape = 'u8[16384]{0}', space=vmem, size = 0x4000, scoped, tag = 'output window, operand 0']
    %19 = vsyncpa [#allocation4], 0
    %s20 = scalar_lea.sflag [#allocation4], 1
    %21 = vsyncpa %s20, 0
    %22 = vsyncpa [#allocation5], 0
    %s23 = scalar_lea.sflag [#allocation5], 1
    %24 = vsyncpa %s23, 0
    loop: start=0, step=1, limit=6
    $region2: #{tpu_custom_call.1} parent=1 // loop_pre_header
      _
    $region3: #{tpu_custom_call.1} parent=1 // loop_header
      %s26 = sphi 0, %s30
      %p27 = scmp.ge.s32.totalorder %s26, 6
      %s33 = sphi 0, %s45
      %s34 = sphi 0, %s41
      %s35 = sphi 0, %s33
      %s36 = sphi 0, %s34
      %s37 = sphi 0, %s35
      %s38 = sphi 0, %s36
      %s50 = sphi 0, %s52
      %s53 = sphi 0, %s50
      %s54 = sphi 0, %s53
      %s70 = sphi 0, %s54
      %s78 = sphi 0, %s80
      %s81 = sphi 0, %s78
      %s82 = sphi 0, %s81
      %s98 = sphi 0, %s82
      %s102 = sphi 0, %s102
      %s104 = sphi 0, %s102
      %s105 = sphi 0, %s104
      %s119 = sphi 0, %s105
      %s123 = sphi 0, %s123
      %s125 = sphi 0, %s123
      %s126 = sphi 0, %s125
      %s140 = sphi 0, %s126
      %s144 = sphi 0, %s144
      %s146 = sphi 0, %s144
      %s147 = sphi 0, %s146
      %s161 = sphi 0, %s147
      %s165 = sphi 0, %s165
      %s167 = sphi 0, %s165
      %s168 = sphi 0, %s167
      %s182 = sphi 0, %s168
      %s186 = sphi 0, %s186
      %s188 = sphi 0, %s186
      %s189 = sphi 0, %s188
      %s203 = sphi 0, %s189
      %s207 = sphi 0, %s207
      %s209 = sphi 0, %s207
      %s210 = sphi 0, %s209
      %s224 = sphi 0, %s210
      %s228 = sphi 0, %s228
      %s230 = sphi 0, %s228
      %s231 = sphi 0, %s230
      %s245 = sphi 0, %s231
      %s249 = sphi 0, %s249
      %s251 = sphi 0, %s249
      %s252 = sphi 0, %s251
      %s266 = sphi 0, %s252
      %s270 = sphi 0, %s270
      %s272 = sphi 0, %s270
      %s273 = sphi 0, %s272
      %s287 = sphi 0, %s273
      %s291 = sphi 0, %s291
      %s293 = sphi 0, %s291
      %s294 = sphi 0, %s293
      %s308 = sphi 0, %s294
      %s312 = sphi 0, %s312
      %s314 = sphi 0, %s312
      %s315 = sphi 0, %s314
      %s329 = sphi 0, %s315
      %s333 = sphi 0, %s333
      %s335 = sphi 0, %s333
      %s336 = sphi 0, %s335
      %s350 = sphi 0, %s336
      %s358 = sphi 0, %s360
      %s361 = sphi 0, %s358
      %s362 = sphi 0, %s361
      %s378 = sphi 0, %s362
    $region4: #{tpu_custom_call.1} parent=1 // loop_header_branch
      %29 = sbr.rel (%p27) target = $region8
    $region5: #{tpu_custom_call.1} parent=1 // loop_body
      %s31 = ssub.s32 %s26, 1
      %s32 = ssub.s32 %s26, 2
      %s39 = sadd.s32 1, %s34
      %p40 = scmp.ge.s32.totalorder %s39, 2
      %s41 = scalar_select %p40, 0, %s39
      %s42 = sadd.s32 1, %s33
      %s43 = scalar_select %p40, %s42, %s33
      %p44 = scmp.ge.s32.totalorder %s43, 2
      %s45 = scalar_select %p44, 0, %s43
      %s46 = ssub.s32 %s33, %s45
      %s47 = ssub.s32 %s34, %s41
      %s48 = sor.u32 %s46, %s47
      %p49 = scmp.eq.s32.totalorder %s48, 0
      %s51 = sadd.s32 %s50, 1
      %s52 = scalar_select %p49, %s50, %s51
      %p55 = pneg %p49
      %p56 = scmp.eq.s32.totalorder %s26, 3
      %p57 = por %p55, %p56
      %p58 = scmp.ne.s32.totalorder %s50, %s53
      %p59 = scmp.eq.s32.totalorder %s26, 0
      %p60 = por %p58, %p59
      %p61 = scmp.ne.s32.totalorder %s50, %s53
      %p62 = scmp.eq.s32.totalorder %s31, 3
      %p63 = por %p61, %p62
      %p64 = scmp.ne.s32.totalorder %s53, %s54
      %p65 = scmp.eq.s32.totalorder %s31, 0
      %p66 = por %p64, %p65
      %p67 = scmp.ne.s32.totalorder %s53, %s54
      %p68 = scmp.eq.s32.totalorder %s32, 3
      %p69 = por %p67, %p68
      %p71 = scmp.ne.s32.totalorder %s54, %s70
      %p72 = scmp.eq.s32.totalorder %s32, 0
      %p73 = por %p71, %p72
      %s74 = ssub.s32 %s33, %s45
      %s75 = ssub.s32 %s34, %s41
      %s76 = sor.u32 %s74, %s75
      %p77 = scmp.eq.s32.totalorder %s76, 0
      %s79 = sadd.s32 %s78, 1
      %s80 = scalar_select %p77, %s78, %s79
      %p83 = pneg %p77
      %p84 = scmp.eq.s32.totalorder %s26, 3
      %p85 = por %p83, %p84
      %p86 = scmp.ne.s32.totalorder %s78, %s81
      %p87 = scmp.eq.s32.totalorder %s26, 0
      %p88 = por %p86, %p87
      %p89 = scmp.ne.s32.totalorder %s78, %s81
      %p90 = scmp.eq.s32.totalorder %s31, 3
      %p91 = por %p89, %p90
      %p92 = scmp.ne.s32.totalorder %s81, %s82
      %p93 = scmp.eq.s32.totalorder %s31, 0
      %p94 = por %p92, %p93
      %p95 = scmp.ne.s32.totalorder %s81, %s82
      %p96 = scmp.eq.s32.totalorder %s32, 3
      %p97 = por %p95, %p96
      %p99 = scmp.ne.s32.totalorder %s82, %s98
      %p100 = scmp.eq.s32.totalorder %s32, 0
      %p101 = por %p99, %p100
      %s103 = sadd.s32 %s102, 1
      %p106 = scmp.eq.s32.totalorder %s26, 3
      %p107 = scmp.ne.s32.totalorder %s102, %s104
      %p108 = scmp.eq.s32.totalorder %s26, 0
      %p109 = por %p107, %p108
      %p110 = scmp.ne.s32.totalorder %s102, %s104
      %p111 = scmp.eq.s32.totalorder %s31, 3
      %p112 = por %p110, %p111
      %p113 = scmp.ne.s32.totalorder %s104, %s105
      %p114 = scmp.eq.s32.totalorder %s31, 0
      %p115 = por %p113, %p114
      %p116 = scmp.ne.s32.totalorder %s104, %s105
      %p117 = scmp.eq.s32.totalorder %s32, 3
      %p118 = por %p116, %p117
      %p120 = scmp.ne.s32.totalorder %s105, %s119
      %p121 = scmp.eq.s32.totalorder %s32, 0
      %p122 = por %p120, %p121
      %s124 = sadd.s32 %s123, 1
      %p127 = scmp.eq.s32.totalorder %s26, 3
      %p128 = scmp.ne.s32.totalorder %s123, %s125
      %p129 = scmp.eq.s32.totalorder %s26, 0
      %p130 = por %p128, %p129
      %p131 = scmp.ne.s32.totalorder %s123, %s125
      %p132 = scmp.eq.s32.totalorder %s31, 3
      %p133 = por %p131, %p132
      %p134 = scmp.ne.s32.totalorder %s125, %s126
      %p135 = scmp.eq.s32.totalorder %s31, 0
      %p136 = por %p134, %p135
      %p137 = scmp.ne.s32.totalorder %s125, %s126
      %p138 = scmp.eq.s32.totalorder %s32, 3
      %p139 = por %p137, %p138
      %p141 = scmp.ne.s32.totalorder %s126, %s140
      %p142 = scmp.eq.s32.totalorder %s32, 0
      %p143 = por %p141, %p142
      %s145 = sadd.s32 %s144, 1
      %p148 = scmp.eq.s32.totalorder %s26, 3
      %p149 = scmp.ne.s32.totalorder %s144, %s146
      %p150 = scmp.eq.s32.totalorder %s26, 0
      %p151 = por %p149, %p150
      %p152 = scmp.ne.s32.totalorder %s144, %s146
      %p153 = scmp.eq.s32.totalorder %s31, 3
      %p154 = por %p152, %p153
      %p155 = scmp.ne.s32.totalorder %s146, %s147
      %p156 = scmp.eq.s32.totalorder %s31, 0
      %p157 = por %p155, %p156
      %p158 = scmp.ne.s32.totalorder %s146, %s147
      %p159 = scmp.eq.s32.totalorder %s32, 3
      %p160 = por %p158, %p159
      %p162 = scmp.ne.s32.totalorder %s147, %s161
      %p163 = scmp.eq.s32.totalorder %s32, 0
      %p164 = por %p162, %p163
      %s166 = sadd.s32 %s165, 1
      %p169 = scmp.eq.s32.totalorder %s26, 3
      %p170 = scmp.ne.s32.totalorder %s165, %s167
      %p171 = scmp.eq.s32.totalorder %s26, 0
      %p172 = por %p170, %p171
      %p173 = scmp.ne.s32.totalorder %s165, %s167
      %p174 = scmp.eq.s32.totalorder %s31, 3
      %p175 = por %p173, %p174
      %p176 = scmp.ne.s32.totalorder %s167, %s168
      %p177 = scmp.eq.s32.totalorder %s31, 0
      %p178 = por %p176, %p177
      %p179 = scmp.ne.s32.totalorder %s167, %s168
      %p180 = scmp.eq.s32.totalorder %s32, 3
      %p181 = por %p179, %p180
      %p183 = scmp.ne.s32.totalorder %s168, %s182
      %p184 = scmp.eq.s32.totalorder %s32, 0
      %p185 = por %p183, %p184
      %s187 = sadd.s32 %s186, 1
      %p190 = scmp.eq.s32.totalorder %s26, 3
      %p191 = scmp.ne.s32.totalorder %s186, %s188
      %p192 = scmp.eq.s32.totalorder %s26, 0
      %p193 = por %p191, %p192
      %p194 = scmp.ne.s32.totalorder %s186, %s188
      %p195 = scmp.eq.s32.totalorder %s31, 3
      %p196 = por %p194, %p195
      %p197 = scmp.ne.s32.totalorder %s188, %s189
      %p198 = scmp.eq.s32.totalorder %s31, 0
      %p199 = por %p197, %p198
      %p200 = scmp.ne.s32.totalorder %s188, %s189
      %p201 = scmp.eq.s32.totalorder %s32, 3
      %p202 = por %p200, %p201
      %p204 = scmp.ne.s32.totalorder %s189, %s203
      %p205 = scmp.eq.s32.totalorder %s32, 0
      %p206 = por %p204, %p205
      %s208 = sadd.s32 %s207, 1
      %p211 = scmp.eq.s32.totalorder %s26, 3
      %p212 = scmp.ne.s32.totalorder %s207, %s209
      %p213 = scmp.eq.s32.totalorder %s26, 0
      %p214 = por %p212, %p213
      %p215 = scmp.ne.s32.totalorder %s207, %s209
      %p216 = scmp.eq.s32.totalorder %s31, 3
      %p217 = por %p215, %p216
      %p218 = scmp.ne.s32.totalorder %s209, %s210
      %p219 = scmp.eq.s32.totalorder %s31, 0
      %p220 = por %p218, %p219
      %p221 = scmp.ne.s32.totalorder %s209, %s210
      %p222 = scmp.eq.s32.totalorder %s32, 3
      %p223 = por %p221, %p222
      %p225 = scmp.ne.s32.totalorder %s210, %s224
      %p226 = scmp.eq.s32.totalorder %s32, 0
      %p227 = por %p225, %p226
      %s229 = sadd.s32 %s228, 1
      %p232 = scmp.eq.s32.totalorder %s26, 3
      %p233 = scmp.ne.s32.totalorder %s228, %s230
      %p234 = scmp.eq.s32.totalorder %s26, 0
      %p235 = por %p233, %p234
      %p236 = scmp.ne.s32.totalorder %s228, %s230
      %p237 = scmp.eq.s32.totalorder %s31, 3
      %p238 = por %p236, %p237
      %p239 = scmp.ne.s32.totalorder %s230, %s231
      %p240 = scmp.eq.s32.totalorder %s31, 0
      %p241 = por %p239, %p240
      %p242 = scmp.ne.s32.totalorder %s230, %s231
      %p243 = scmp.eq.s32.totalorder %s32, 3
      %p244 = por %p242, %p243
      %p246 = scmp.ne.s32.totalorder %s231, %s245
      %p247 = scmp.eq.s32.totalorder %s32, 0
      %p248 = por %p246, %p247
      %s250 = sadd.s32 %s249, 1
      %p253 = scmp.eq.s32.totalorder %s26, 3
      %p254 = scmp.ne.s32.totalorder %s249, %s251
      %p255 = scmp.eq.s32.totalorder %s26, 0
      %p256 = por %p254, %p255
      %p257 = scmp.ne.s32.totalorder %s249, %s251
      %p258 = scmp.eq.s32.totalorder %s31, 3
      %p259 = por %p257, %p258
      %p260 = scmp.ne.s32.totalorder %s251, %s252
      %p261 = scmp.eq.s32.totalorder %s31, 0
      %p262 = por %p260, %p261
      %p263 = scmp.ne.s32.totalorder %s251, %s252
      %p264 = scmp.eq.s32.totalorder %s32, 3
      %p265 = por %p263, %p264
      %p267 = scmp.ne.s32.totalorder %s252, %s266
      %p268 = scmp.eq.s32.totalorder %s32, 0
      %p269 = por %p267, %p268
      %s271 = sadd.s32 %s270, 1
      %p274 = scmp.eq.s32.totalorder %s26, 3
      %p275 = scmp.ne.s32.totalorder %s270, %s272
      %p276 = scmp.eq.s32.totalorder %s26, 0
      %p277 = por %p275, %p276
      %p278 = scmp.ne.s32.totalorder %s270, %s272
      %p279 = scmp.eq.s32.totalorder %s31, 3
      %p280 = por %p278, %p279
      %p281 = scmp.ne.s32.totalorder %s272, %s273
      %p282 = scmp.eq.s32.totalorder %s31, 0
      %p283 = por %p281, %p282
      %p284 = scmp.ne.s32.totalorder %s272, %s273
      %p285 = scmp.eq.s32.totalorder %s32, 3
      %p286 = por %p284, %p285
      %p288 = scmp.ne.s32.totalorder %s273, %s287
      %p289 = scmp.eq.s32.totalorder %s32, 0
      %p290 = por %p288, %p289
      %s292 = sadd.s32 %s291, 1
      %p295 = scmp.eq.s32.totalorder %s26, 3
      %p296 = scmp.ne.s32.totalorder %s291, %s293
      %p297 = scmp.eq.s32.totalorder %s26, 0
      %p298 = por %p296, %p297
      %p299 = scmp.ne.s32.totalorder %s291, %s293
      %p300 = scmp.eq.s32.totalorder %s31, 3
      %p301 = por %p299, %p300
      %p302 = scmp.ne.s32.totalorder %s293, %s294
      %p303 = scmp.eq.s32.totalorder %s31, 0
      %p304 = por %p302, %p303
      %p305 = scmp.ne.s32.totalorder %s293, %s294
      %p306 = scmp.eq.s32.totalorder %s32, 3
      %p307 = por %p305, %p306
      %p309 = scmp.ne.s32.totalorder %s294, %s308
      %p310 = scmp.eq.s32.totalorder %s32, 0
      %p311 = por %p309, %p310
      %s313 = sadd.s32 %s312, 1
      %p316 = scmp.eq.s32.totalorder %s26, 3
      %p317 = scmp.ne.s32.totalorder %s312, %s314
      %p318 = scmp.eq.s32.totalorder %s26, 0
      %p319 = por %p317, %p318
      %p320 = scmp.ne.s32.totalorder %s312, %s314
      %p321 = scmp.eq.s32.totalorder %s31, 3
      %p322 = por %p320, %p321
      %p323 = scmp.ne.s32.totalorder %s314, %s315
      %p324 = scmp.eq.s32.totalorder %s31, 0
      %p325 = por %p323, %p324
      %p326 = scmp.ne.s32.totalorder %s314, %s315
      %p327 = scmp.eq.s32.totalorder %s32, 3
      %p328 = por %p326, %p327
      %p330 = scmp.ne.s32.totalorder %s315, %s329
      %p331 = scmp.eq.s32.totalorder %s32, 0
      %p332 = por %p330, %p331
      %s334 = sadd.s32 %s333, 1
      %p337 = scmp.eq.s32.totalorder %s26, 3
      %p338 = scmp.ne.s32.totalorder %s333, %s335
      %p339 = scmp.eq.s32.totalorder %s26, 0
      %p340 = por %p338, %p339
      %p341 = scmp.ne.s32.totalorder %s333, %s335
      %p342 = scmp.eq.s32.totalorder %s31, 3
      %p343 = por %p341, %p342
      %p344 = scmp.ne.s32.totalorder %s335, %s336
      %p345 = scmp.eq.s32.totalorder %s31, 0
      %p346 = por %p344, %p345
      %p347 = scmp.ne.s32.totalorder %s335, %s336
      %p348 = scmp.eq.s32.totalorder %s32, 3
      %p349 = por %p347, %p348
      %p351 = scmp.ne.s32.totalorder %s336, %s350
      %p352 = scmp.eq.s32.totalorder %s32, 0
      %p353 = por %p351, %p352
      %s354 = ssub.s32 %s33, %s45
      %s355 = ssub.s32 %s34, %s41
      %s356 = sor.u32 %s354, %s355
      %p357 = scmp.eq.s32.totalorder %s356, 0
      %s359 = sadd.s32 %s358, 1
      %s360 = scalar_select %p357, %s358, %s359
      %p363 = pneg %p357
      %p364 = scmp.eq.s32.totalorder %s26, 3
      %p365 = por %p363, %p364
      %p366 = scmp.ne.s32.totalorder %s358, %s361
      %p367 = scmp.eq.s32.totalorder %s26, 0
      %p368 = por %p366, %p367
      %p369 = scmp.ne.s32.totalorder %s358, %s361
      %p370 = scmp.eq.s32.totalorder %s31, 3
      %p371 = por %p369, %p370
      %p372 = scmp.ne.s32.totalorder %s361, %s362
      %p373 = scmp.eq.s32.totalorder %s31, 0
      %p374 = por %p372, %p373
      %p375 = scmp.ne.s32.totalorder %s361, %s362
      %p376 = scmp.eq.s32.totalorder %s32, 3
      %p377 = por %p375, %p376
      %p379 = scmp.ne.s32.totalorder %s362, %s378
      %p380 = scmp.eq.s32.totalorder %s32, 0
      %p381 = por %p379, %p380
      %p382 = scmp.le.s32.totalorder 1, %s26
      %p383 = scmp.lt.s32.totalorder %s26, 5
      %p384 = pnand %p382, %p383
      %p385 = pneg %p384
      // Predicated region
      $region9: #{tpu_custom_call.1} parent=5 // pred_check
        _
      $region10: #{tpu_custom_call.1} parent=5 // pred_check_branch
        %387 = sbr.rel (%p384) target = $region12
      $region11: #{tpu_custom_call.1} parent=5 // pred_region
        %s388 = ssub.s32 %s26, 1
        // Predicated region
        $region13: #{tpu_custom_call.1} parent=11 // pred_check
          %p389 = pneg %p115
        $region14: #{tpu_custom_call.1} parent=11 // pred_check_branch
          %391 = sbr.rel (%p389) target = $region16
        $region15: #{tpu_custom_call.1} parent=11 // pred_region
          _
        $region16: #{tpu_custom_call.1} parent=11 // pred_fallthru
          _
        // Predicated region
        $region17: #{tpu_custom_call.1} parent=11 // pred_check
          %p392 = pneg %p136
        $region18: #{tpu_custom_call.1} parent=11 // pred_check_branch
          %394 = sbr.rel (%p392) target = $region20
        $region19: #{tpu_custom_call.1} parent=11 // pred_region
          _
        $region20: #{tpu_custom_call.1} parent=11 // pred_fallthru
          _
        // Predicated region
        $region21: #{tpu_custom_call.1} parent=11 // pred_check
          %p395 = pneg %p157
        $region22: #{tpu_custom_call.1} parent=11 // pred_check_branch
          %397 = sbr.rel (%p395) target = $region24
        $region23: #{tpu_custom_call.1} parent=11 // pred_region
          _
        $region24: #{tpu_custom_call.1} parent=11 // pred_fallthru
          _
        // Predicated region
        $region25: #{tpu_custom_call.1} parent=11 // pred_check
          %p398 = pneg %p178
        $region26: #{tpu_custom_call.1} parent=11 // pred_check_branch
          %400 = sbr.rel (%p398) target = $region28
        $region27: #{tpu_custom_call.1} parent=11 // pred_region
          _
        $region28: #{tpu_custom_call.1} parent=11 // pred_fallthru
          _
        // Predicated region
        $region29: #{tpu_custom_call.1} parent=11 // pred_check
          %p401 = pneg %p199
        $region30: #{tpu_custom_call.1} parent=11 // pred_check_branch
          %403 = sbr.rel (%p401) target = $region32
        $region31: #{tpu_custom_call.1} parent=11 // pred_region
          _
        $region32: #{tpu_custom_call.1} parent=11 // pred_fallthru
          _
        // Predicated region
        $region33: #{tpu_custom_call.1} parent=11 // pred_check
          %p404 = pneg %p220
        $region34: #{tpu_custom_call.1} parent=11 // pred_check_branch
          %406 = sbr.rel (%p404) target = $region36
        $region35: #{tpu_custom_call.1} parent=11 // pred_region
          _
        $region36: #{tpu_custom_call.1} parent=11 // pred_fallthru
          _
        // Predicated region
        $region37: #{tpu_custom_call.1} parent=11 // pred_check
          %p407 = pneg %p241
        $region38: #{tpu_custom_call.1} parent=11 // pred_check_branch
          %409 = sbr.rel (%p407) target = $region40
        $region39: #{tpu_custom_call.1} parent=11 // pred_region
          _
        $region40: #{tpu_custom_call.1} parent=11 // pred_fallthru
          _
        // Predicated region
        $region41: #{tpu_custom_call.1} parent=11 // pred_check
          %p410 = pneg %p262
        $region42: #{tpu_custom_call.1} parent=11 // pred_check_branch
          %412 = sbr.rel (%p410) target = $region44
        $region43: #{tpu_custom_call.1} parent=11 // pred_region
          _
        $region44: #{tpu_custom_call.1} parent=11 // pred_fallthru
          _
        // Predicated region
        $region45: #{tpu_custom_call.1} parent=11 // pred_check
          %p413 = pneg %p283
        $region46: #{tpu_custom_call.1} parent=11 // pred_check_branch
          %415 = sbr.rel (%p413) target = $region48
        $region47: #{tpu_custom_call.1} parent=11 // pred_region
          _
        $region48: #{tpu_custom_call.1} parent=11 // pred_fallthru
          _
        // Predicated region
        $region49: #{tpu_custom_call.1} parent=11 // pred_check
          %p416 = pneg %p304
        $region50: #{tpu_custom_call.1} parent=11 // pred_check_branch
          %418 = sbr.rel (%p416) target = $region52
        $region51: #{tpu_custom_call.1} parent=11 // pred_region
          _
        $region52: #{tpu_custom_call.1} parent=11 // pred_fallthru
          _
        // Predicated region
        $region53: #{tpu_custom_call.1} parent=11 // pred_check
          %p419 = pneg %p325
        $region54: #{tpu_custom_call.1} parent=11 // pred_check_branch
          %421 = sbr.rel (%p419) target = $region56
        $region55: #{tpu_custom_call.1} parent=11 // pred_region
          _
        $region56: #{tpu_custom_call.1} parent=11 // pred_fallthru
          _
        // Predicated region
        $region57: #{tpu_custom_call.1} parent=11 // pred_check
          %p422 = pneg %p346
        $region58: #{tpu_custom_call.1} parent=11 // pred_check_branch
          %424 = sbr.rel (%p422) target = $region60
        $region59: #{tpu_custom_call.1} parent=11 // pred_region
          _
        $region60: #{tpu_custom_call.1} parent=11 // pred_fallthru
          _
      $region12: #{tpu_custom_call.1} parent=5 // pred_fallthru
        _
      %p425 = scmp.lt.s32.totalorder %s26, 4
      // Predicated region
      $region61: #{tpu_custom_call.1} parent=5 // pred_check
        %p426 = pneg %p425
      $region62: #{tpu_custom_call.1} parent=5 // pred_check_branch
        %428 = sbr.rel (%p426) target = $region64
      $region63: #{tpu_custom_call.1} parent=5 // pred_region
        // Predicated region
        $region65: #{tpu_custom_call.1} parent=63 // pred_check
          %p429 = pneg %p60
        $region66: #{tpu_custom_call.1} parent=63 // pred_check_branch
          %431 = sbr.rel (%p429) target = $region68
        $region67: #{tpu_custom_call.1} parent=63 // pred_region
          %s432 = sand.u32 %s50, 1
          %s433 = sand.u32 %s50, 1
          %s434 = smul.addr %s433, 16
          %s435 = scalar_lea.vmem [#allocation2], %s434
          %s436 = smul.addr %s33, 4
          %s437 = sadd.s32 %s34, %s436
          %s438 = smul.addr %s437, 8
          %s439 = scalar_lea.vmem %s0, %s438
          // Predicated region
          $region69: #{tpu_custom_call.1} parent=67 // pred_check
            _
          $region70: #{tpu_custom_call.1} parent=67 // pred_check_branch
            %441 = sbr.rel (0) target = $region72
          $region71: #{tpu_custom_call.1} parent=67 // pred_region
            // Predicated region
            $region73: #{tpu_custom_call.1} parent=71 // pred_check
              _
            $region74: #{tpu_custom_call.1} parent=71 // pred_check_branch
              %443 = sbr.rel (0) target = $region76
            $region75: #{tpu_custom_call.1} parent=71 // pred_region
              // Predicated region
              $region88: #{tpu_custom_call.1} parent=75 // pred_check
                _
              $region89: #{tpu_custom_call.1} parent=75 // pred_check_branch
                %460 = sbr.rel (0) target = $region91
              $region90: #{tpu_custom_call.1} parent=75 // pred_region
                loop: start=0, step=1, limit=1
                $region92: #{tpu_custom_call.1} parent=90 // loop_pre_header
                  _
                $region93: #{tpu_custom_call.1} parent=90 // loop_header
                  %s462 = sphi 0, %s466
                  %p463 = scmp.ge.s32.totalorder %s462, 1
                  %s467 = sphi %s439, %s439
                  %s468 = sphi %s435, %s435
                $region94: #{tpu_custom_call.1} parent=90 // loop_header_branch
                  %465 = sbr.rel (%p463) target = $region98
                $region95: #{tpu_custom_call.1} parent=90 // loop_body
                  %v469 = vld [vmem:[%s467] sm:$0xff]
                  %470 = vst [vmem:[%s468] sm:$0xff] %v469
                  %v471 = vld [vmem:[%s467 + $0x10] sm:$0xff]
                  %472 = vst [vmem:[%s468 + $0x8] sm:$0xff] %v471
                $region96: #{tpu_custom_call.1} parent=90 // loop_footer
                  %s466 = sadd.s32 1, %s462
                $region97: #{tpu_custom_call.1} parent=90 // loop_footer_branch
                  %461 = sbr.rel target = $region93
                $region98: #{tpu_custom_call.1} parent=90 // loop_exit
                  _
              $region91: #{tpu_custom_call.1} parent=75 // pred_fallthru
                _
              // Predicated region
              $region99: #{tpu_custom_call.1} parent=75 // pred_check
                _
              $region100: #{tpu_custom_call.1} parent=75 // pred_check_branch
                %474 = sbr.rel target = $region102
              $region101: #{tpu_custom_call.1} parent=75 // pred_region
                _
              $region102: #{tpu_custom_call.1} parent=75 // pred_fallthru
                _
            $region76: #{tpu_custom_call.1} parent=71 // pred_fallthru
              _
            // Predicated region
            $region77: #{tpu_custom_call.1} parent=71 // pred_check
              _
            $region78: #{tpu_custom_call.1} parent=71 // pred_check_branch
              %445 = sbr.rel target = $region80
            $region79: #{tpu_custom_call.1} parent=71 // pred_region
              loop: start=0, step=1, limit=1
              $region81: #{tpu_custom_call.1} parent=79 // loop_pre_header
                _
              $region82: #{tpu_custom_call.1} parent=79 // loop_header
                %s448 = sphi 0, %s452
                %p449 = scmp.ge.s32.totalorder %s448, 1
                %s453 = sphi %s439, %s439
                %s454 = sphi %s435, %s435
              $region83: #{tpu_custom_call.1} parent=79 // loop_header_branch
                %451 = sbr.rel (%p449) target = $region87
              $region84: #{tpu_custom_call.1} parent=79 // loop_body
                %v455 = vld [vmem:[%s453] sm:$0xff]
                %456 = vst [vmem:[%s454] sm:$0xff] %v455
                %v457 = vld [vmem:[%s453 + $0x10] sm:$0xff]
                %458 = vst [vmem:[%s454 + $0x8] sm:$0xff] %v457
              $region85: #{tpu_custom_call.1} parent=79 // loop_footer
                %s452 = sadd.s32 1, %s448
              $region86: #{tpu_custom_call.1} parent=79 // loop_footer_branch
                %447 = sbr.rel target = $region82
              $region87: #{tpu_custom_call.1} parent=79 // loop_exit
                _
            $region80: #{tpu_custom_call.1} parent=71 // pred_fallthru
              _
          $region72: #{tpu_custom_call.1} parent=67 // pred_fallthru
            _
          %475 = vnop
        $region68: #{tpu_custom_call.1} parent=63 // pred_fallthru
          _
        // Predicated region
        $region103: #{tpu_custom_call.1} parent=63 // pred_check
          %p476 = pneg %p88
        $region104: #{tpu_custom_call.1} parent=63 // pred_check_branch
          %478 = sbr.rel (%p476) target = $region106
        $region105: #{tpu_custom_call.1} parent=63 // pred_region
          %s479 = sand.u32 %s78, 1
          %s480 = scalar_lea.sflag [#allocation4], %s479
          %s481 = sand.u32 %s78, 1
          %s482 = smul.addr %s481, 16
          %s483 = scalar_lea.vmem [#allocation3], %s482
          %s485 = ssub.s32 256, 256
          %486 = vsyncadd %s480, %s485
          %s487 = smul.addr %s34, 2
          %s488 = smul.addr %s33, 4
          %s489 = sadd.s32 %s487, %s488
          %s490 = smul.addr %s489, 128
          %s491 = scalar_lea.hbm %s1, %s490
          %s492 = sshll.u32 %s483, 4
          %s493 = int_to_ptr.vmem [resolvable:$true] %s492
          %498 = dma.hbm_to_vmem [thread:$0]  %s491, 256, %s493, %s480, 128, 128, 8
        $region106: #{tpu_custom_call.1} parent=63 // pred_fallthru
          _
      $region64: #{tpu_custom_call.1} parent=5 // pred_fallthru
        _
      %p499 = scmp.le.s32.totalorder 1, %s26
      %p500 = scmp.lt.s32.totalorder %s26, 5
      %p501 = pnand %p499, %p500
      %p502 = pneg %p501
      // Predicated region
      $region107: #{tpu_custom_call.1} parent=5 // pred_check
        _
      $region108: #{tpu_custom_call.1} parent=5 // pred_check_branch
        %504 = sbr.rel (%p501) target = $region110
      $region109: #{tpu_custom_call.1} parent=5 // pred_region
        %s505 = ssub.s32 %s26, 1
        %s506 = sand.u32 %s53, 1
        %s507 = sand.u32 %s53, 1
        %s508 = smul.addr %s507, 16
        %s509 = scalar_lea.vmem [#allocation2], %s508
        // Predicated region
        $region111: #{tpu_custom_call.1} parent=109 // pred_check
          %p510 = pneg %p66
        $region112: #{tpu_custom_call.1} parent=109 // pred_check_branch
          %512 = sbr.rel (%p510) target = $region114
        $region113: #{tpu_custom_call.1} parent=109 // pred_region
          _
        $region114: #{tpu_custom_call.1} parent=109 // pred_fallthru
          _
        %s513 = sand.u32 %s81, 1
        %s514 = scalar_lea.sflag [#allocation4], %s513
        %s515 = sand.u32 %s81, 1
        %s516 = smul.addr %s515, 16
        %s517 = scalar_lea.vmem [#allocation3], %s516
        // Predicated region
        $region115: #{tpu_custom_call.1} parent=109 // pred_check
          %p518 = pneg %p94
        $region116: #{tpu_custom_call.1} parent=109 // pred_check_branch
          %520 = sbr.rel (%p518) target = $region118
        $region117: #{tpu_custom_call.1} parent=109 // pred_region
          %521 = dma.done %s514, 256
        $region118: #{tpu_custom_call.1} parent=109 // pred_fallthru
          _
        %s522 = sand.u32 %s53, 1
        %s523 = sand.u32 %s53, 1
        %s524 = smul.addr %s523, 16
        %s525 = scalar_lea.vmem [#allocation2], %s524
        %p526 = pneg %p66
        %p527 = pneg %p63
        %s528 = sand.u32 %s81, 1
        %s529 = scalar_lea.sflag [#allocation4], %s528
        %s530 = sand.u32 %s81, 1
        %s531 = smul.addr %s530, 16
        %s532 = scalar_lea.vmem [#allocation3], %s531
        %p533 = pneg %p94
        %p534 = pneg %p91
        %p535 = pneg %p115
        %p536 = pneg %p112
        %p537 = pneg %p136
        %p538 = pneg %p133
        %p539 = pneg %p157
        %p540 = pneg %p154
        %p541 = pneg %p178
        %p542 = pneg %p175
        %p543 = pneg %p199
        %p544 = pneg %p196
        %p545 = pneg %p220
        %p546 = pneg %p217
        %p547 = pneg %p241
        %p548 = pneg %p238
        %p549 = pneg %p262
        %p550 = pneg %p259
        %p551 = pneg %p283
        %p552 = pneg %p280
        %p553 = pneg %p304
        %p554 = pneg %p301
        %p555 = pneg %p325
        %p556 = pneg %p322
        %p557 = pneg %p346
        %p558 = pneg %p343
        %p559 = pneg %p374
        %p560 = pneg %p371
        %s561 = sand.u32 %s361, 1
        %s562 = scalar_lea.sflag [#allocation5], %s561
        %s563 = sand.u32 %s361, 1
        %s564 = smul.addr %s563, 16
        %s565 = scalar_lea.vmem [#allocation6], %s564
        %s569 = smul.u32 %s36, 128
        %v570 = vld [vmem:[%s517] sm:$0xff]
        %v571 = vld [vmem:[%s517 + $0x8] sm:$0xff]
        %v572 = vld [vmem:[%s509] sm:$0xff]
        %v573 = vld [vmem:[%s509 + $0x8] sm:$0xff]
        %576 = vrot.lane.b32.xlu0 %v572, 12
        %v577 = vpop.permute.xlu0 %576
        %578 = vrot.lane.b32.xlu0 %v573, 12
        %v579 = vpop.permute.xlu0 %578
        %vm582 = vcmask 97280
        %v583 = vsel %vm582, %v570, %v577
        %v584 = vsel %vm582, %v571, %v579
        %v585 = vsel %vm582, %v577, %v570
        %v586 = vsel %vm582, %v579, %v571
        %v587 = vld [vmem:[%s2] sm:$0xf]
        %v588 = vld [vmem:[%s2 + $0x4] sm:$0xf]
        %v589 = vld [vmem:[%s3] sm:$0xff]
        %v590 = vld [vmem:[%s3 + $0x8] sm:$0xff]
        %v591 = vld [vmem:[%s4] sm:$0xf]
        %v592 = vld [vmem:[%s4 + $0x4] sm:$0xf]
        %v593 = vld [vmem:[%s5] sm:$0xff]
        %v594 = vld [vmem:[%s5 + $0x8] sm:$0xff]
        %vm595 = vcmp.ge.f32.partialorder %v583, 0.0
        %vm596 = vcmp.ge.f32.partialorder %v585, 0.0
        %vm597 = vcmp.ge.f32.partialorder %v584, 0.0
        %vm598 = vcmp.ge.f32.partialorder %v586, 0.0
        %v599 = vmul.f32 %v583, 0.2
        %v600 = vmul.f32 %v585, 0.2
        %v601 = vmul.f32 %v584, 0.2
        %v602 = vmul.f32 %v586, 0.2
        %v603 = vsel %vm595, %v583, %v599
        %v604 = vsel %vm596, %v585, %v600
        %v605 = vsel %vm597, %v584, %v601
        %v606 = vsel %vm598, %v586, %v602
        %v607 = vpack.c.bf16 %v605, %v603
        %v608 = vpack.c.bf16 %v606, %v604
        %v609 = vlaneseq
        %v610 = vand.u32 %v609, 127
        %v611 = vadd.s32 %v610, 128
        %s612 = ssub.s32 12, %s569
        %v613 = vstv %s612
        %vm614 = vcmp.ge.s32.totalorder %v610, %v613
        %vm615 = vcmp.ge.s32.totalorder %v611, %v613
        %s616 = ssub.s32 212, %s569
        %v617 = vstv %s616
        %vm618 = vcmp.lt.s32.totalorder %v610, %v617
        %vm619 = vcmp.lt.s32.totalorder %v611, %v617
        %vm620 = vmand %vm614, %vm618
        %vm621 = vmand %vm615, %vm619
        %v622 = vsel %vm620, 1, 0
        %v623 = vsel %vm621, 1, 0
        %vm624 = vcmp.eq.s32.totalorder %v622, 1
        %vm625 = vcmp.eq.s32.totalorder %v623, 1
        %vm626 = vmpackc.low %vm625, %vm624
        %v627 = vsel %vm626, 65537, 0
        %v628 = vlaneseq
        %v629 = vshrl.u32 %v628, 7
        %v630 = vsub.s32 0, %v629
        %v631 = vrot.slane %v627, %v630
        %v632 = vlaneseq
        %v633 = vshrl.u32 %v632, 7
        %v634 = vsub.s32 4, %v633
        %v635 = vrot.slane %v627, %v634
        %vm636 = vcmp.ne.s16.totalorder %v631, 0
        %vm637 = vcmp.ne.s16.totalorder %v635, 0
        %v638 = vsel %vm636, %v607, 0
        %v639 = vsel %vm637, %v608, 0
        %642 = vrot.lane.b32.xlu0 %v638, 127
        %v643 = vpop.permute.xlu0 %642
        %644 = vrot.lane.b32.xlu0 %v639, 127
        %v645 = vpop.permute.xlu0 %644
        %vm646 = vcmask 1039360
        %v647 = vsel %vm646, %v643, %v645
        %650 = vrot.lane.b32.xlu0 %v638, 126
        %v651 = vpop.permute.xlu0 %650
        %652 = vrot.lane.b32.xlu0 %v639, 126
        %v653 = vpop.permute.xlu0 %652
        %vm654 = vcmask 1031168
        %v655 = vsel %vm654, %v651, %v653
        %659 = vset.pattern.permute.xlu0 0
        %660 = vperm.xlu0 %659, %v589
        %v661 = vpop.permute.xlu0 %660
        %664 = vset.pattern.permute.xlu0 0
        %665 = vperm.xlu0 %664, %v590
        %v666 = vpop.permute.xlu0 %665
        %v670 = vunpack.c.l.b16 %v587
        %v671 = vunpack.c.l.b16 %v588
        %v672 = vpack.c.b16 %v671, %v670
        %vm673 = vcmask 392192
        %v675 = vsel %vm673, %v672, 0
        %677 = vmatprep.subr.bf16.mxu0 %v639
        %678 = vmatpush1.bf16.msra.mxu0 %v638
        %679 = vmatprep.subr.bf16.mxu0 %v645
        %680 = vmatpush1.bf16.msra.mxu0 %v647
        %681 = vmatprep.subr.bf16.mxu0 %v653
        %682 = vmatpush1.bf16.msra.mxu0 %v655
        %683 = vmatprep.subr.bf16.mxu0 0
        %684 = vmatpush1.bf16.msra.mxu0 0
        %685 = vmatprep.subr.bf16.mxu0 0
        %686 = vmatpush1.bf16.msra.mxu0 0
        %687 = vmatprep.subr.bf16.mxu0 0
        %688 = vmatpush1.bf16.msra.mxu0 0
        %689 = vmatprep.subr.bf16.mxu0 0
        %690 = vmatpush1.bf16.msra.mxu0 0
        %691 = vmatprep.subr.bf16.mxu0 0
        %692 = vmatpush1.bf16.msra.mxu0 0
        %693 = vmatprep.subr.bf16.mxu0 0
        %694 = vmatpush1.bf16.msra.mxu0 0
        %695 = vmatprep.subr.bf16.mxu0 0
        %696 = vmatpush1.bf16.msra.mxu0 0
        %697 = vmatprep.subr.bf16.mxu0 0
        %698 = vmatpush1.bf16.msra.mxu0 0
        %699 = vmatprep.subr.bf16.mxu0 0
        %700 = vmatpush1.bf16.msra.mxu0 0
        %701 = vmatprep.subr.bf16.mxu0 0
        %702 = vmatpush1.bf16.msra.mxu0 0
        %703 = vmatprep.subr.bf16.mxu0 0
        %704 = vmatpush1.bf16.msra.mxu0 0
        %705 = vmatprep.subr.bf16.mxu0 0
        %706 = vmatpush1.bf16.msra.mxu0 0
        %707 = vmatprep.subr.bf16.mxu0 0
        %708 = vmatpush1.bf16.msra.mxu0 0
        %709 = vmatprep.mubr.bf16.mxu0 0
        %710 = vmatmul.mubr.bf16.gmra.mrb[0].mxu0 %v675
        %v711 = vpop.f32.mrb[0].mxu0
        %v712 = vadd.f32 %v661, %v711
        %v713 = vpop.f32.mrb[0].mxu0
        %v714 = vadd.f32 %v661, %v713
        %v715 = vpop.f32.mrb[0].mxu0
        %v716 = vadd.f32 %v666, %v715
        %v717 = vpop.f32.mrb[0].mxu0
        %v718 = vadd.f32 %v666, %v717
        %719 = vdwg.mxu0
        %vm720 = vcmp.ge.f32.partialorder %v712, 0.0
        %vm721 = vcmp.ge.f32.partialorder %v714, 0.0
        %vm722 = vcmp.ge.f32.partialorder %v716, 0.0
        %vm723 = vcmp.ge.f32.partialorder %v718, 0.0
        %v724 = vmul.f32 %v712, 0.2
        %v725 = vmul.f32 %v714, 0.2
        %v726 = vmul.f32 %v716, 0.2
        %v727 = vmul.f32 %v718, 0.2
        %v728 = vsel %vm720, %v712, %v724
        %v729 = vsel %vm721, %v714, %v725
        %v730 = vsel %vm722, %v716, %v726
        %v731 = vsel %vm723, %v718, %v727
        %v732 = vpack.c.bf16 %v730, %v728
        %v733 = vpack.c.bf16 %v731, %v729
        %s734 = ssub.s32 11, %s569
        %v735 = vstv %s734
        %vm736 = vcmp.ge.s32.totalorder %v610, %v735
        %vm737 = vcmp.ge.s32.totalorder %v611, %v735
        %s738 = ssub.s32 211, %s569
        %v739 = vstv %s738
        %vm740 = vcmp.lt.s32.totalorder %v610, %v739
        %vm741 = vcmp.lt.s32.totalorder %v611, %v739
        %vm742 = vmand %vm736, %vm740
        %vm743 = vmand %vm737, %vm741
        %v744 = vsel %vm742, 1, 0
        %v745 = vsel %vm743, 1, 0
        %vm746 = vcmp.eq.s32.totalorder %v744, 1
        %vm747 = vcmp.eq.s32.totalorder %v745, 1
        %vm748 = vmpackc.low %vm747, %vm746
        %v749 = vsel %vm748, 65537, 0
        %v750 = vlaneseq
        %v751 = vshrl.u32 %v750, 7
        %v752 = vsub.s32 0, %v751
        %v753 = vrot.slane %v749, %v752
        %v754 = vlaneseq
        %v755 = vshrl.u32 %v754, 7
        %v756 = vsub.s32 4, %v755
        %v757 = vrot.slane %v749, %v756
        %vm758 = vcmp.ne.s16.totalorder %v753, 0
        %vm759 = vcmp.ne.s16.totalorder %v757, 0
        %v760 = vsel %vm758, %v732, 0
        %v761 = vsel %vm759, %v733, 0
        %764 = vrot.lane.b32.xlu0 %v760, 127
        %v765 = vpop.permute.xlu0 %764
        %766 = vrot.lane.b32.xlu0 %v761, 127
        %v767 = vpop.permute.xlu0 %766
        %v768 = vsel %vm646, %v765, %v767
        %771 = vrot.lane.b32.xlu0 %v760, 126
        %v772 = vpop.permute.xlu0 %771
        %773 = vrot.lane.b32.xlu0 %v761, 126
        %v774 = vpop.permute.xlu0 %773
        %v775 = vsel %vm654, %v772, %v774
        %779 = vset.pattern.permute.xlu0 0
        %780 = vperm.xlu0 %779, %v593
        %v781 = vpop.permute.xlu0 %780
        %784 = vset.pattern.permute.xlu0 0
        %785 = vperm.xlu0 %784, %v594
        %v786 = vpop.permute.xlu0 %785
        %v790 = vunpack.c.l.b16 %v591
        %v791 = vunpack.c.l.b16 %v592
        %v792 = vpack.c.b16 %v791, %v790
        %v794 = vsel %vm673, %v792, 0
        %796 = vmatprep.subr.bf16.mxu0 %v761
        %797 = vmatpush1.bf16.msra.mxu0 %v760
        %798 = vmatprep.subr.bf16.mxu0 %v767
        %799 = vmatpush1.bf16.msra.mxu0 %v768
        %800 = vmatprep.subr.bf16.mxu0 %v774
        %801 = vmatpush1.bf16.msra.mxu0 %v775
        %802 = vmatprep.subr.bf16.mxu0 0
        %803 = vmatpush1.bf16.msra.mxu0 0
        %804 = vmatprep.subr.bf16.mxu0 0
        %805 = vmatpush1.bf16.msra.mxu0 0
        %806 = vmatprep.subr.bf16.mxu0 0
        %807 = vmatpush1.bf16.msra.mxu0 0
        %808 = vmatprep.subr.bf16.mxu0 0
        %809 = vmatpush1.bf16.msra.mxu0 0
        %810 = vmatprep.subr.bf16.mxu0 0
        %811 = vmatpush1.bf16.msra.mxu0 0
        %812 = vmatprep.subr.bf16.mxu0 0
        %813 = vmatpush1.bf16.msra.mxu0 0
        %814 = vmatprep.subr.bf16.mxu0 0
        %815 = vmatpush1.bf16.msra.mxu0 0
        %816 = vmatprep.subr.bf16.mxu0 0
        %817 = vmatpush1.bf16.msra.mxu0 0
        %818 = vmatprep.subr.bf16.mxu0 0
        %819 = vmatpush1.bf16.msra.mxu0 0
        %820 = vmatprep.subr.bf16.mxu0 0
        %821 = vmatpush1.bf16.msra.mxu0 0
        %822 = vmatprep.subr.bf16.mxu0 0
        %823 = vmatpush1.bf16.msra.mxu0 0
        %824 = vmatprep.subr.bf16.mxu0 0
        %825 = vmatpush1.bf16.msra.mxu0 0
        %826 = vmatprep.subr.bf16.mxu0 0
        %827 = vmatpush1.bf16.msra.mxu0 0
        %828 = vmatprep.mubr.bf16.mxu0 0
        %829 = vmatmul.mubr.bf16.gmra.mrb[0].mxu0 %v794
        %v830 = vpop.f32.mrb[0].mxu0
        %v831 = vadd.f32 %v781, %v830
        %v832 = vpop.f32.mrb[0].mxu0
        %v833 = vadd.f32 %v781, %v832
        %v834 = vpop.f32.mrb[0].mxu0
        %v835 = vadd.f32 %v786, %v834
        %v836 = vpop.f32.mrb[0].mxu0
        %v837 = vadd.f32 %v786, %v836
        %838 = vdwg.mxu0
        %843 = vrot.lane.b32.xlu0 %v583, 126
        %v844 = vpop.permute.xlu0 %843
        %845 = vrot.lane.b32.xlu0 %v585, 126
        %v846 = vpop.permute.xlu0 %845
        %847 = vrot.lane.b32.xlu0 %v584, 126
        %v848 = vpop.permute.xlu0 %847
        %849 = vrot.lane.b32.xlu0 %v586, 126
        %v850 = vpop.permute.xlu0 %849
        %vm851 = vcmask 1031168
        %v852 = vsel %vm851, %v844, %v846
        %v853 = vsel %vm851, %v848, %v850
        %v858 = vadd.f32 %v831, %v852
        %v859 = vadd.f32 %v833, %v846
        %v860 = vadd.f32 %v835, %v853
        %v861 = vadd.f32 %v837, %v850
        %v862 = vld [vmem:[%s6] sm:$0xf]
        %v863 = vld [vmem:[%s6 + $0x4] sm:$0xf]
        %v864 = vld [vmem:[%s7] sm:$0xff]
        %v865 = vld [vmem:[%s7 + $0x8] sm:$0xff]
        %v866 = vld [vmem:[%s8] sm:$0xf]
        %v867 = vld [vmem:[%s8 + $0x4] sm:$0xf]
        %v868 = vld [vmem:[%s9] sm:$0xff]
        %v869 = vld [vmem:[%s9 + $0x8] sm:$0xff]
        %vm870 = vcmp.ge.f32.partialorder %v858, 0.0
        %vm871 = vcmp.ge.f32.partialorder %v859, 0.0
        %vm872 = vcmp.ge.f32.partialorder %v860, 0.0
        %vm873 = vcmp.ge.f32.partialorder %v861, 0.0
        %v874 = vmul.f32 %v858, 0.2
        %v875 = vmul.f32 %v859, 0.2
        %v876 = vmul.f32 %v860, 0.2
        %v877 = vmul.f32 %v861, 0.2
        %v878 = vsel %vm870, %v858, %v874
        %v879 = vsel %vm871, %v859, %v875
        %v880 = vsel %vm872, %v860, %v876
        %v881 = vsel %vm873, %v861, %v877
        %v882 = vpack.c.bf16 %v880, %v878
        %v883 = vpack.c.bf16 %v881, %v879
        %s884 = ssub.s32 10, %s569
        %v885 = vstv %s884
        %vm886 = vcmp.ge.s32.totalorder %v610, %v885
        %vm887 = vcmp.ge.s32.totalorder %v611, %v885
        %s888 = ssub.s32 210, %s569
        %v889 = vstv %s888
        %vm890 = vcmp.lt.s32.totalorder %v610, %v889
        %vm891 = vcmp.lt.s32.totalorder %v611, %v889
        %vm892 = vmand %vm886, %vm890
        %vm893 = vmand %vm887, %vm891
        %v894 = vsel %vm892, 1, 0
        %v895 = vsel %vm893, 1, 0
        %vm896 = vcmp.eq.s32.totalorder %v894, 1
        %vm897 = vcmp.eq.s32.totalorder %v895, 1
        %vm898 = vmpackc.low %vm897, %vm896
        %v899 = vsel %vm898, 65537, 0
        %v900 = vlaneseq
        %v901 = vshrl.u32 %v900, 7
        %v902 = vsub.s32 0, %v901
        %v903 = vrot.slane %v899, %v902
        %v904 = vlaneseq
        %v905 = vshrl.u32 %v904, 7
        %v906 = vsub.s32 4, %v905
        %v907 = vrot.slane %v899, %v906
        %vm908 = vcmp.ne.s16.totalorder %v903, 0
        %vm909 = vcmp.ne.s16.totalorder %v907, 0
        %v910 = vsel %vm908, %v882, 0
        %v911 = vsel %vm909, %v883, 0
        %914 = vrot.lane.b32.xlu0 %v910, 125
        %v915 = vpop.permute.xlu0 %914
        %916 = vrot.lane.b32.xlu0 %v911, 125
        %v917 = vpop.permute.xlu0 %916
        %vm918 = vcmask 1022976
        %v919 = vsel %vm918, %v915, %v917
        %922 = vrot.lane.b32.xlu0 %v910, 122
        %v923 = vpop.permute.xlu0 %922
        %924 = vrot.lane.b32.xlu0 %v911, 122
        %v925 = vpop.permute.xlu0 %924
        %vm926 = vcmask 998400
        %v927 = vsel %vm926, %v923, %v925
        %931 = vset.pattern.permute.xlu0 0
        %932 = vperm.xlu0 %931, %v864
        %v933 = vpop.permute.xlu0 %932
        %936 = vset.pattern.permute.xlu0 0
        %937 = vperm.xlu0 %936, %v865
        %v938 = vpop.permute.xlu0 %937
        %v942 = vunpack.c.l.b16 %v862
        %v943 = vunpack.c.l.b16 %v863
        %v944 = vpack.c.b16 %v943, %v942
        %v946 = vsel %vm673, %v944, 0
        %948 = vmatprep.subr.bf16.mxu0 %v911
        %949 = vmatpush1.bf16.msra.mxu0 %v910
        %950 = vmatprep.subr.bf16.mxu0 %v917
        %951 = vmatpush1.bf16.msra.mxu0 %v919
        %952 = vmatprep.subr.bf16.mxu0 %v925
        %953 = vmatpush1.bf16.msra.mxu0 %v927
        %954 = vmatprep.subr.bf16.mxu0 0
        %955 = vmatpush1.bf16.msra.mxu0 0
        %956 = vmatprep.subr.bf16.mxu0 0
        %957 = vmatpush1.bf16.msra.mxu0 0
        %958 = vmatprep.subr.bf16.mxu0 0
        %959 = vmatpush1.bf16.msra.mxu0 0
        %960 = vmatprep.subr.bf16.mxu0 0
        %961 = vmatpush1.bf16.msra.mxu0 0
        %962 = vmatprep.subr.bf16.mxu0 0
        %963 = vmatpush1.bf16.msra.mxu0 0
        %964 = vmatprep.subr.bf16.mxu0 0
        %965 = vmatpush1.bf16.msra.mxu0 0
        %966 = vmatprep.subr.bf16.mxu0 0
        %967 = vmatpush1.bf16.msra.mxu0 0
        %968 = vmatprep.subr.bf16.mxu0 0
        %969 = vmatpush1.bf16.msra.mxu0 0
        %970 = vmatprep.subr.bf16.mxu0 0
        %971 = vmatpush1.bf16.msra.mxu0 0
        %972 = vmatprep.subr.bf16.mxu0 0
        %973 = vmatpush1.bf16.msra.mxu0 0
        %974 = vmatprep.subr.bf16.mxu0 0
        %975 = vmatpush1.bf16.msra.mxu0 0
        %976 = vmatprep.subr.bf16.mxu0 0
        %977 = vmatpush1.bf16.msra.mxu0 0
        %978 = vmatprep.subr.bf16.mxu0 0
        %979 = vmatpush1.bf16.msra.mxu0 0
        %980 = vmatprep.mubr.bf16.mxu0 0
        %981 = vmatmul.mubr.bf16.gmra.mrb[0].mxu0 %v946
        %v982 = vpop.f32.mrb[0].mxu0
        %v983 = vadd.f32 %v933, %v982
        %v984 = vpop.f32.mrb[0].mxu0
        %v985 = vadd.f32 %v933, %v984
        %v986 = vpop.f32.mrb[0].mxu0
        %v987 = vadd.f32 %v938, %v986
        %v988 = vpop.f32.mrb[0].mxu0
        %v989 = vadd.f32 %v938, %v988
        %990 = vdwg.mxu0
        %vm991 = vcmp.ge.f32.partialorder %v983, 0.0
        %vm992 = vcmp.ge.f32.partialorder %v985, 0.0
        %vm993 = vcmp.ge.f32.partialorder %v987, 0.0
        %vm994 = vcmp.ge.f32.partialorder %v989, 0.0
        %v995 = vmul.f32 %v983, 0.2
        %v996 = vmul.f32 %v985, 0.2
        %v997 = vmul.f32 %v987, 0.2
        %v998 = vmul.f32 %v989, 0.2
        %v999 = vsel %vm991, %v983, %v995
        %v1000 = vsel %vm992, %v985, %v996
        %v1001 = vsel %vm993, %v987, %v997
        %v1002 = vsel %vm994, %v989, %v998
        %v1003 = vpack.c.bf16 %v1001, %v999
        %v1004 = vpack.c.bf16 %v1002, %v1000
        %s1005 = ssub.s32 7, %s569
        %v1006 = vstv %s1005
        %vm1007 = vcmp.ge.s32.totalorder %v610, %v1006
        %vm1008 = vcmp.ge.s32.totalorder %v611, %v1006
        %s1009 = ssub.s32 207, %s569
        %v1010 = vstv %s1009
        %vm1011 = vcmp.lt.s32.totalorder %v610, %v1010
        %vm1012 = vcmp.lt.s32.totalorder %v611, %v1010
        %vm1013 = vmand %vm1007, %vm1011
        %vm1014 = vmand %vm1008, %vm1012
        %v1015 = vsel %vm1013, 1, 0
        %v1016 = vsel %vm1014, 1, 0
        %vm1017 = vcmp.eq.s32.totalorder %v1015, 1
        %vm1018 = vcmp.eq.s32.totalorder %v1016, 1
        %vm1019 = vmpackc.low %vm1018, %vm1017
        %v1020 = vsel %vm1019, 65537, 0
        %v1021 = vlaneseq
        %v1022 = vshrl.u32 %v1021, 7
        %v1023 = vsub.s32 0, %v1022
        %v1024 = vrot.slane %v1020, %v1023
        %v1025 = vlaneseq
        %v1026 = vshrl.u32 %v1025, 7
        %v1027 = vsub.s32 4, %v1026
        %v1028 = vrot.slane %v1020, %v1027
        %vm1029 = vcmp.ne.s16.totalorder %v1024, 0
        %vm1030 = vcmp.ne.s16.totalorder %v1028, 0
        %v1031 = vsel %vm1029, %v1003, 0
        %v1032 = vsel %vm1030, %v1004, 0
        %1035 = vrot.lane.b32.xlu0 %v1031, 127
        %v1036 = vpop.permute.xlu0 %1035
        %1037 = vrot.lane.b32.xlu0 %v1032, 127
        %v1038 = vpop.permute.xlu0 %1037
        %v1039 = vsel %vm646, %v1036, %v1038
        %1042 = vrot.lane.b32.xlu0 %v1031, 126
        %v1043 = vpop.permute.xlu0 %1042
        %1044 = vrot.lane.b32.xlu0 %v1032, 126
        %v1045 = vpop.permute.xlu0 %1044
        %v1046 = vsel %vm654, %v1043, %v1045
        %1050 = vset.pattern.permute.xlu0 0
        %1051 = vperm.xlu0 %1050, %v868
        %v1052 = vpop.permute.xlu0 %1051
        %1055 = vset.pattern.permute.xlu0 0
        %1056 = vperm.xlu0 %1055, %v869
        %v1057 = vpop.permute.xlu0 %1056
        %v1061 = vunpack.c.l.b16 %v866
        %v1062 = vunpack.c.l.b16 %v867
        %v1063 = vpack.c.b16 %v1062, %v1061
        %v1065 = vsel %vm673, %v1063, 0
        %1067 = vmatprep.subr.bf16.mxu0 %v1032
        %1068 = vmatpush1.bf16.msra.mxu0 %v1031
        %1069 = vmatprep.subr.bf16.mxu0 %v1038
        %1070 = vmatpush1.bf16.msra.mxu0 %v1039
        %1071 = vmatprep.subr.bf16.mxu0 %v1045
        %1072 = vmatpush1.bf16.msra.mxu0 %v1046
        %1073 = vmatprep.subr.bf16.mxu0 0
        %1074 = vmatpush1.bf16.msra.mxu0 0
        %1075 = vmatprep.subr.bf16.mxu0 0
        %1076 = vmatpush1.bf16.msra.mxu0 0
        %1077 = vmatprep.subr.bf16.mxu0 0
        %1078 = vmatpush1.bf16.msra.mxu0 0
        %1079 = vmatprep.subr.bf16.mxu0 0
        %1080 = vmatpush1.bf16.msra.mxu0 0
        %1081 = vmatprep.subr.bf16.mxu0 0
        %1082 = vmatpush1.bf16.msra.mxu0 0
        %1083 = vmatprep.subr.bf16.mxu0 0
        %1084 = vmatpush1.bf16.msra.mxu0 0
        %1085 = vmatprep.subr.bf16.mxu0 0
        %1086 = vmatpush1.bf16.msra.mxu0 0
        %1087 = vmatprep.subr.bf16.mxu0 0
        %1088 = vmatpush1.bf16.msra.mxu0 0
        %1089 = vmatprep.subr.bf16.mxu0 0
        %1090 = vmatpush1.bf16.msra.mxu0 0
        %1091 = vmatprep.subr.bf16.mxu0 0
        %1092 = vmatpush1.bf16.msra.mxu0 0
        %1093 = vmatprep.subr.bf16.mxu0 0
        %1094 = vmatpush1.bf16.msra.mxu0 0
        %1095 = vmatprep.subr.bf16.mxu0 0
        %1096 = vmatpush1.bf16.msra.mxu0 0
        %1097 = vmatprep.subr.bf16.mxu0 0
        %1098 = vmatpush1.bf16.msra.mxu0 0
        %1099 = vmatprep.mubr.bf16.mxu0 0
        %1100 = vmatmul.mubr.bf16.gmra.mrb[0].mxu0 %v1065
        %v1101 = vpop.f32.mrb[0].mxu0
        %v1102 = vadd.f32 %v1052, %v1101
        %v1103 = vpop.f32.mrb[0].mxu0
        %v1104 = vadd.f32 %v1052, %v1103
        %v1105 = vpop.f32.mrb[0].mxu0
        %v1106 = vadd.f32 %v1057, %v1105
        %v1107 = vpop.f32.mrb[0].mxu0
        %v1108 = vadd.f32 %v1057, %v1107
        %1109 = vdwg.mxu0
        %1114 = vrot.lane.b32.xlu0 %v858, 124
        %v1115 = vpop.permute.xlu0 %1114
        %1116 = vrot.lane.b32.xlu0 %v859, 124
        %v1117 = vpop.permute.xlu0 %1116
        %1118 = vrot.lane.b32.xlu0 %v860, 124
        %v1119 = vpop.permute.xlu0 %1118
        %1120 = vrot.lane.b32.xlu0 %v861, 124
        %v1121 = vpop.permute.xlu0 %1120
        %vm1122 = vcmask 1014784
        %v1123 = vsel %vm1122, %v1115, %v1117
        %v1124 = vsel %vm1122, %v1119, %v1121
        %v1129 = vadd.f32 %v1102, %v1123
        %v1130 = vadd.f32 %v1104, %v1117
        %v1131 = vadd.f32 %v1106, %v1124
        %v1132 = vadd.f32 %v1108, %v1121
        %v1133 = vld [vmem:[%s10] sm:$0xf]
        %v1134 = vld [vmem:[%s10 + $0x4] sm:$0xf]
        %v1135 = vld [vmem:[%s11] sm:$0xff]
        %v1136 = vld [vmem:[%s11 + $0x8] sm:$0xff]
        %v1137 = vld [vmem:[%s12] sm:$0xf]
        %v1138 = vld [vmem:[%s12 + $0x4] sm:$0xf]
        %v1139 = vld [vmem:[%s13] sm:$0xff]
        %v1140 = vld [vmem:[%s13 + $0x8] sm:$0xff]
        %vm1141 = vcmp.ge.f32.partialorder %v1129, 0.0
        %vm1142 = vcmp.ge.f32.partialorder %v1130, 0.0
        %vm1143 = vcmp.ge.f32.partialorder %v1131, 0.0
        %vm1144 = vcmp.ge.f32.partialorder %v1132, 0.0
        %v1145 = vmul.f32 %v1129, 0.2
        %v1146 = vmul.f32 %v1130, 0.2
        %v1147 = vmul.f32 %v1131, 0.2
        %v1148 = vmul.f32 %v1132, 0.2
        %v1149 = vsel %vm1141, %v1129, %v1145
        %v1150 = vsel %vm1142, %v1130, %v1146
        %v1151 = vsel %vm1143, %v1131, %v1147
        %v1152 = vsel %vm1144, %v1132, %v1148
        %v1153 = vpack.c.bf16 %v1151, %v1149
        %v1154 = vpack.c.bf16 %v1152, %v1150
        %s1155 = ssub.s32 6, %s569
        %v1156 = vstv %s1155
        %vm1157 = vcmp.ge.s32.totalorder %v610, %v1156
        %vm1158 = vcmp.ge.s32.totalorder %v611, %v1156
        %s1159 = ssub.s32 206, %s569
        %v1160 = vstv %s1159
        %vm1161 = vcmp.lt.s32.totalorder %v610, %v1160
        %vm1162 = vcmp.lt.s32.totalorder %v611, %v1160
        %vm1163 = vmand %vm1157, %vm1161
        %vm1164 = vmand %vm1158, %vm1162
        %v1165 = vsel %vm1163, 1, 0
        %v1166 = vsel %vm1164, 1, 0
        %vm1167 = vcmp.eq.s32.totalorder %v1165, 1
        %vm1168 = vcmp.eq.s32.totalorder %v1166, 1
        %vm1169 = vmpackc.low %vm1168, %vm1167
        %v1170 = vsel %vm1169, 65537, 0
        %v1171 = vlaneseq
        %v1172 = vshrl.u32 %v1171, 7
        %v1173 = vsub.s32 0, %v1172
        %v1174 = vrot.slane %v1170, %v1173
        %v1175 = vlaneseq
        %v1176 = vshrl.u32 %v1175, 7
        %v1177 = vsub.s32 4, %v1176
        %v1178 = vrot.slane %v1170, %v1177
        %vm1179 = vcmp.ne.s16.totalorder %v1174, 0
        %vm1180 = vcmp.ne.s16.totalorder %v1178, 0
        %v1181 = vsel %vm1179, %v1153, 0
        %v1182 = vsel %vm1180, %v1154, 0
        %1185 = vrot.lane.b32.xlu0 %v1181, 123
        %v1186 = vpop.permute.xlu0 %1185
        %1187 = vrot.lane.b32.xlu0 %v1182, 123
        %v1188 = vpop.permute.xlu0 %1187
        %vm1189 = vcmask 1006592
        %v1190 = vsel %vm1189, %v1186, %v1188
        %1193 = vrot.lane.b32.xlu0 %v1181, 118
        %v1194 = vpop.permute.xlu0 %1193
        %1195 = vrot.lane.b32.xlu0 %v1182, 118
        %v1196 = vpop.permute.xlu0 %1195
        %vm1197 = vcmask 965632
        %v1198 = vsel %vm1197, %v1194, %v1196
        %1202 = vset.pattern.permute.xlu0 0
        %1203 = vperm.xlu0 %1202, %v1135
        %v1204 = vpop.permute.xlu0 %1203
        %1207 = vset.pattern.permute.xlu0 0
        %1208 = vperm.xlu0 %1207, %v1136
        %v1209 = vpop.permute.xlu0 %1208
        %v1213 = vunpack.c.l.b16 %v1133
        %v1214 = vunpack.c.l.b16 %v1134
        %v1215 = vpack.c.b16 %v1214, %v1213
        %v1217 = vsel %vm673, %v1215, 0
        %1219 = vmatprep.subr.bf16.mxu0 %v1182
        %1220 = vmatpush1.bf16.msra.mxu0 %v1181
        %1221 = vmatprep.subr.bf16.mxu0 %v1188
        %1222 = vmatpush1.bf16.msra.mxu0 %v1190
        %1223 = vmatprep.subr.bf16.mxu0 %v1196
        %1224 = vmatpush1.bf16.msra.mxu0 %v1198
        %1225 = vmatprep.subr.bf16.mxu0 0
        %1226 = vmatpush1.bf16.msra.mxu0 0
        %1227 = vmatprep.subr.bf16.mxu0 0
        %1228 = vmatpush1.bf16.msra.mxu0 0
        %1229 = vmatprep.subr.bf16.mxu0 0
        %1230 = vmatpush1.bf16.msra.mxu0 0
        %1231 = vmatprep.subr.bf16.mxu0 0
        %1232 = vmatpush1.bf16.msra.mxu0 0
        %1233 = vmatprep.subr.bf16.mxu0 0
        %1234 = vmatpush1.bf16.msra.mxu0 0
        %1235 = vmatprep.subr.bf16.mxu0 0
        %1236 = vmatpush1.bf16.msra.mxu0 0
        %1237 = vmatprep.subr.bf16.mxu0 0
        %1238 = vmatpush1.bf16.msra.mxu0 0
        %1239 = vmatprep.subr.bf16.mxu0 0
        %1240 = vmatpush1.bf16.msra.mxu0 0
        %1241 = vmatprep.subr.bf16.mxu0 0
        %1242 = vmatpush1.bf16.msra.mxu0 0
        %1243 = vmatprep.subr.bf16.mxu0 0
        %1244 = vmatpush1.bf16.msra.mxu0 0
        %1245 = vmatprep.subr.bf16.mxu0 0
        %1246 = vmatpush1.bf16.msra.mxu0 0
        %1247 = vmatprep.subr.bf16.mxu0 0
        %1248 = vmatpush1.bf16.msra.mxu0 0
        %1249 = vmatprep.subr.bf16.mxu0 0
        %1250 = vmatpush1.bf16.msra.mxu0 0
        %1251 = vmatprep.mubr.bf16.mxu0 0
        %1252 = vmatmul.mubr.bf16.gmra.mrb[0].mxu0 %v1217
        %v1253 = vpop.f32.mrb[0].mxu0
        %v1254 = vadd.f32 %v1204, %v1253
        %v1255 = vpop.f32.mrb[0].mxu0
        %v1256 = vadd.f32 %v1204, %v1255
        %v1257 = vpop.f32.mrb[0].mxu0
        %v1258 = vadd.f32 %v1209, %v1257
        %v1259 = vpop.f32.mrb[0].mxu0
        %v1260 = vadd.f32 %v1209, %v1259
        %1261 = vdwg.mxu0
        %vm1262 = vcmp.ge.f32.partialorder %v1254, 0.0
        %vm1263 = vcmp.ge.f32.partialorder %v1256, 0.0
        %vm1264 = vcmp.ge.f32.partialorder %v1258, 0.0
        %vm1265 = vcmp.ge.f32.partialorder %v1260, 0.0
        %v1266 = vmul.f32 %v1254, 0.2
        %v1267 = vmul.f32 %v1256, 0.2
        %v1268 = vmul.f32 %v1258, 0.2
        %v1269 = vmul.f32 %v1260, 0.2
        %v1270 = vsel %vm1262, %v1254, %v1266
        %v1271 = vsel %vm1263, %v1256, %v1267
        %v1272 = vsel %vm1264, %v1258, %v1268
        %v1273 = vsel %vm1265, %v1260, %v1269
        %v1274 = vpack.c.bf16 %v1272, %v1270
        %v1275 = vpack.c.bf16 %v1273, %v1271
        %s1276 = ssub.s32 1, %s569
        %v1277 = vstv %s1276
        %vm1278 = vcmp.ge.s32.totalorder %v610, %v1277
        %vm1279 = vcmp.ge.s32.totalorder %v611, %v1277
        %s1280 = ssub.s32 201, %s569
        %v1281 = vstv %s1280
        %vm1282 = vcmp.lt.s32.totalorder %v610, %v1281
        %vm1283 = vcmp.lt.s32.totalorder %v611, %v1281
        %vm1284 = vmand %vm1278, %vm1282
        %vm1285 = vmand %vm1279, %vm1283
        %v1286 = vsel %vm1284, 1, 0
        %v1287 = vsel %vm1285, 1, 0
        %vm1288 = vcmp.eq.s32.totalorder %v1286, 1
        %vm1289 = vcmp.eq.s32.totalorder %v1287, 1
        %vm1290 = vmpackc.low %vm1289, %vm1288
        %v1291 = vsel %vm1290, 65537, 0
        %v1292 = vlaneseq
        %v1293 = vshrl.u32 %v1292, 7
        %v1294 = vsub.s32 0, %v1293
        %v1295 = vrot.slane %v1291, %v1294
        %v1296 = vlaneseq
        %v1297 = vshrl.u32 %v1296, 7
        %v1298 = vsub.s32 4, %v1297
        %v1299 = vrot.slane %v1291, %v1298
        %vm1300 = vcmp.ne.s16.totalorder %v1295, 0
        %vm1301 = vcmp.ne.s16.totalorder %v1299, 0
        %v1302 = vsel %vm1300, %v1274, 0
        %v1303 = vsel %vm1301, %v1275, 0
        %1306 = vrot.lane.b32.xlu0 %v1302, 127
        %v1307 = vpop.permute.xlu0 %1306
        %1308 = vrot.lane.b32.xlu0 %v1303, 127
        %v1309 = vpop.permute.xlu0 %1308
        %v1310 = vsel %vm646, %v1307, %v1309
        %1312 = vrot.lane.b32.xlu0 %v1302, 126
        %v1313 = vpop.permute.xlu0 %1312
        %1314 = vrot.lane.b32.xlu0 %v1303, 126
        %v1315 = vpop.permute.xlu0 %1314
        %v1316 = vsel %vm654, %v1313, %v1315
        %1319 = vset.pattern.permute.xlu0 0
        %1320 = vperm.xlu0 %1319, %v1139
        %v1321 = vpop.permute.xlu0 %1320
        %1324 = vset.pattern.permute.xlu0 0
        %1325 = vperm.xlu0 %1324, %v1140
        %v1326 = vpop.permute.xlu0 %1325
        %v1330 = vunpack.c.l.b16 %v1137
        %v1331 = vunpack.c.l.b16 %v1138
        %v1332 = vpack.c.b16 %v1331, %v1330
        %v1334 = vsel %vm673, %v1332, 0
        %1336 = vmatprep.subr.bf16.mxu0 0
        %1337 = vmatpush1.bf16.msra.mxu0 %v1302
        %1338 = vmatprep.subr.bf16.mxu0 0
        %1339 = vmatpush1.bf16.msra.mxu0 %v1310
        %1340 = vmatprep.subr.bf16.mxu0 0
        %1341 = vmatpush1.bf16.msra.mxu0 %v1316
        %1342 = vmatprep.subr.bf16.mxu0 0
        %1343 = vmatpush1.bf16.msra.mxu0 0
        %1344 = vmatprep.subr.bf16.mxu0 0
        %1345 = vmatpush1.bf16.msra.mxu0 0
        %1346 = vmatprep.subr.bf16.mxu0 0
        %1347 = vmatpush1.bf16.msra.mxu0 0
        %1348 = vmatprep.subr.bf16.mxu0 0
        %1349 = vmatpush1.bf16.msra.mxu0 0
        %1350 = vmatprep.subr.bf16.mxu0 0
        %1351 = vmatpush1.bf16.msra.mxu0 0
        %1352 = vmatprep.subr.bf16.mxu0 0
        %1353 = vmatpush1.bf16.msra.mxu0 0
        %1354 = vmatprep.subr.bf16.mxu0 0
        %1355 = vmatpush1.bf16.msra.mxu0 0
        %1356 = vmatprep.subr.bf16.mxu0 0
        %1357 = vmatpush1.bf16.msra.mxu0 0
        %1358 = vmatprep.subr.bf16.mxu0 0
        %1359 = vmatpush1.bf16.msra.mxu0 0
        %1360 = vmatprep.subr.bf16.mxu0 0
        %1361 = vmatpush1.bf16.msra.mxu0 0
        %1362 = vmatprep.subr.bf16.mxu0 0
        %1363 = vmatpush1.bf16.msra.mxu0 0
        %1364 = vmatprep.subr.bf16.mxu0 0
        %1365 = vmatpush1.bf16.msra.mxu0 0
        %1366 = vmatprep.subr.bf16.mxu0 0
        %1367 = vmatpush1.bf16.msra.mxu0 0
        %1368 = vmatprep.mubr.bf16.mxu0 0
        %1369 = vmatmul.mubr.bf16.gmra.mrb[0].mxu0 %v1334
        %v1370 = vpop.f32.mrb[0].mxu0
        %v1371 = vadd.f32 %v1321, %v1370
        %v1372 = vpop.f32.mrb[0].mxu0
        %v1373 = vpop.f32.mrb[0].mxu0
        %v1374 = vadd.f32 %v1326, %v1373
        %v1375 = vpop.f32.mrb[0].mxu0
        %1376 = vdwg.mxu0
        %1381 = vrot.lane.b32.xlu0 %v1129, 122
        %v1382 = vpop.permute.xlu0 %1381
        %1383 = vrot.lane.b32.xlu0 %v1130, 122
        %v1384 = vpop.permute.xlu0 %1383
        %1385 = vrot.lane.b32.xlu0 %v1131, 122
        %v1386 = vpop.permute.xlu0 %1385
        %1387 = vrot.lane.b32.xlu0 %v1132, 122
        %v1388 = vpop.permute.xlu0 %1387
        %vm1389 = vcmask 998400
        %v1390 = vsel %vm1389, %v1382, %v1384
        %v1391 = vsel %vm1389, %v1386, %v1388
        %v1394 = vadd.f32 %v1371, %v1390
        %v1395 = vadd.f32 %v1374, %v1391
        %1396 = vst [vmem:[%s565] sm:$0xff] %v1394
        %1397 = vst [vmem:[%s565 + $0x8] sm:$0xff] %v1395
        %s1398 = sand.u32 %s361, 1
        %s1399 = scalar_lea.sflag [#allocation5], %s1398
        %s1400 = sand.u32 %s361, 1
        %s1401 = smul.addr %s1400, 16
        %s1402 = scalar_lea.vmem [#allocation6], %s1401
        // Predicated region
        $region119: #{tpu_custom_call.1} parent=109 // pred_check
          %p1403 = pneg %p371
        $region120: #{tpu_custom_call.1} parent=109 // pred_check_branch
          %1405 = sbr.rel (%p1403) target = $region122
        $region121: #{tpu_custom_call.1} parent=109 // pred_region
          %s1407 = ssub.s32 256, 256
          %1408 = vsyncadd %s1399, %s1407
          %s1409 = smul.addr %s35, 4
          %s1410 = sadd.s32 %s36, %s1409
          %s1411 = smul.addr %s1410, 128
          %s1412 = scalar_lea.hbm %s14, %s1411
          %s1413 = sshll.u32 %s1402, 4
          %s1414 = int_to_ptr.vmem [resolvable:$true] %s1413
          %1419 = dma.vmem_to_hbm [thread:$0]  %s1414, 256, %s1412, %s1399, 128, 256, 8
        $region122: #{tpu_custom_call.1} parent=109 // pred_fallthru
          _
      $region110: #{tpu_custom_call.1} parent=5 // pred_fallthru
        _
      %p1420 = scmp.le.s32.totalorder 2, %s26
      // Predicated region
      $region123: #{tpu_custom_call.1} parent=5 // pred_check
        %p1421 = pneg %p1420
      $region124: #{tpu_custom_call.1} parent=5 // pred_check_branch
        %1423 = sbr.rel (%p1421) target = $region126
      $region125: #{tpu_custom_call.1} parent=5 // pred_region
        %s1424 = ssub.s32 %s26, 2
        // Predicated region
        $region127: #{tpu_custom_call.1} parent=125 // pred_check
          %p1425 = pneg %p377
        $region128: #{tpu_custom_call.1} parent=125 // pred_check_branch
          %1427 = sbr.rel (%p1425) target = $region130
        $region129: #{tpu_custom_call.1} parent=125 // pred_region
          %s1428 = sand.u32 %s362, 1
          %s1429 = scalar_lea.sflag [#allocation5], %s1428
          %s1430 = sand.u32 %s362, 1
          %s1431 = smul.addr %s1430, 16
          %s1432 = scalar_lea.vmem [#allocation6], %s1431
          %1433 = dma.done %s1429, 256
        $region130: #{tpu_custom_call.1} parent=125 // pred_fallthru
          _
      $region126: #{tpu_custom_call.1} parent=5 // pred_fallthru
        _
    $region6: #{tpu_custom_call.1} parent=1 // loop_footer
      %s30 = sadd.s32 1, %s26
    $region7: #{tpu_custom_call.1} parent=1 // loop_footer_branch
      %25 = sbr.rel target = $region3
    $region8: #{tpu_custom_call.1} parent=1 // loop_exit
      _
    %1434 = vsyncpa [#allocation4], 1
    %s1435 = scalar_lea.sflag [#allocation4], 1
    %1436 = vsyncpa %s1435, 1
    %1437 = vsyncpa [#allocation5], 1
    %s1438 = scalar_lea.sflag [#allocation5], 1
    %1439 = vsyncpa %s1438, 1

</llo_original>
